<compile_context>
chip_gen: v5e
topology: v5e:2x2
jax: 0.10.0
libtpu: 0.0.40
codegen_flags: <defaults>
</compile_context>

<pallas_src>
import math
import functools

import jax
import jax.numpy as jnp
from jax.experimental import pallas as pl
from jax.experimental.pallas import tpu as pltpu


def _attention_kernel(x_ref, wq_ref, bq_ref, wk_ref, bk_ref, wv_ref, bv_ref,
                      wo_ref, bo_ref, out_ref, *maybe_probs,
                      num_heads, vis, approx_recip):
    probs_ref = maybe_probs[0] if vis else None

    in_dtype = x_ref.dtype
    block_b, S, D = x_ref.shape
    hd = D // num_heads
    R = block_b * S

    # Flatten the batch block so the projections are single [R, D] x [D, D]
    # MXU matmuls (good sublane fill at small S).
    x = x_ref[...].reshape(R, D)

    # Fused full-width Q/K/V projections; operands stay in the compute dtype,
    # accumulation is f32 via preferred_element_type.  The attention scale is
    # already folded into wq/bq by the wrapper.
    q = (jnp.dot(x, wq_ref[...], preferred_element_type=jnp.float32)
         + bq_ref[...]).astype(in_dtype).reshape(block_b, S, D)
    k = (jnp.dot(x, wk_ref[...], preferred_element_type=jnp.float32)
         + bk_ref[...]).astype(in_dtype).reshape(block_b, S, D)
    v = (jnp.dot(x, wv_ref[...], preferred_element_type=jnp.float32)
         + bv_ref[...]).astype(in_dtype).reshape(block_b, S, D)

    # Per-head attention; num_heads is small and static, so a Python loop is
    # fine at these shapes.  The output projection is accumulated per head
    # into one f32 [R, D] accumulator (head reduction happens here instead of
    # through a context slab with masked sub-lane stores).
    out_acc = jnp.zeros((R, D), jnp.float32)
    for h in range(num_heads):
        lo, hi = h * hd, (h + 1) * hd
        qh = q[:, :, lo:hi]                                        # [b, S, hd]
        kh = k[:, :, lo:hi]
        vh = v[:, :, lo:hi]

        # Scores (scale pre-folded into q); f32 softmax statistics.
        s = jnp.einsum('bqd,bkd->bqk', qh, kh,
                       preferred_element_type=jnp.float32)         # [b, S, S]
        m = jnp.max(s, axis=-1, keepdims=True)
        e = jnp.exp(s - m)
        l = jnp.sum(e, axis=-1, keepdims=True)
        # approx=True runs on the otherwise-idle EUP slot (vis=False hot path);
        # exact reciprocal is kept when probs are emitted.
        p = e * pl.reciprocal(l, approx=approx_recip)              # [b, S, S]

        if vis:
            pc = p.astype(probs_ref.dtype)
            for b in range(block_b):
                probs_ref[b, h] = pc[b]

        # attn_dropout: identity at inference.
        ctx = jnp.einsum('bqk,bkd->bqd', p.astype(in_dtype), vh,
                         preferred_element_type=jnp.float32)       # [b, S, hd]
        ctx2 = ctx.astype(in_dtype).reshape(R, hd)
        # Head-h contribution of the output projection (wo is pre-reshaped
        # head-major [nh, hd, D] in the wrapper).
        out_acc = out_acc + jnp.dot(ctx2, wo_ref[h],
                                    preferred_element_type=jnp.float32)

    out = out_acc + bo_ref[...]
    # proj_dropout: identity at inference.
    out_ref[...] = out.reshape(block_b, S, D).astype(out_ref.dtype)


def _pick_block_b(B, S):
    """Largest divisor of B such that block_b * S roughly fills 128 rows."""
    target = max(1, -(-128 // S))
    best = 1
    for cand in range(1, min(B, target) + 1):
        if B % cand == 0:
            best = cand
    return best


def attention_forward(x, wq, bq, wk, bk, wv, bv, wo, bo, *,
                      num_heads, vis=True, block_b=None,
                      compute_dtype=None, approx_softmax=None):
    """x: [B, S, D]; weights in PyTorch Linear layout ([out, in]); biases [out].

    compute_dtype: optional MXU operand dtype (e.g. jnp.bfloat16); softmax
    statistics and all accumulation stay f32; output stays in x.dtype.
    """
    B, S, D = x.shape
    assert D % num_heads == 0
    hd = D // num_heads
    scale = 1.0 / math.sqrt(hd)

    if approx_softmax is None:
        approx_softmax = not vis          # exact recip only when probs emitted

    cdt = jnp.dtype(compute_dtype) if compute_dtype is not None else x.dtype
    out_dtype = x.dtype
    probs_dtype = cdt
    itemsize = jnp.dtype(cdt).itemsize

    # PyTorch Linear computes x @ W^T + b: pre-transpose once here.  The
    # attention scale is folded into the Q projection (zero in-kernel work),
    # and W_out is pre-reshaped head-major [nh, hd, D] so the kernel can
    # accumulate per-head output-projection contributions.  Biases stay f32
    # (they are added to the f32 accumulators).
    xk = x.astype(cdt)
    wq_t = (wq.T * scale).astype(cdt)
    wk_t = wk.T.astype(cdt)
    wv_t = wv.T.astype(cdt)
    wo_h = wo.T.reshape(num_heads, hd, D).astype(cdt)
    bq_r = (bq * scale).reshape(1, D).astype(jnp.float32)
    bk_r = bk.reshape(1, D).astype(jnp.float32)
    bv_r = bv.reshape(1, D).astype(jnp.float32)
    bo_r = bo.reshape(1, D).astype(jnp.float32)

    if block_b is None:
        block_b = _pick_block_b(B, S)
    assert B % block_b == 0
    grid = (B // block_b,)

    kernel = functools.partial(_attention_kernel, num_heads=num_heads,
                               vis=vis, approx_recip=approx_softmax)

    # Advisory cost estimate so XLA overlaps the wrapper-side transposes/casts.
    flops = 8 * B * S * D * D + 4 * B * S * S * D
    transcendentals = B * num_heads * S * S
    bytes_accessed = (2 * B * S * D * itemsize
                      + 4 * D * D * itemsize + 4 * D * 4
                      + (B * num_heads * S * S * itemsize if vis else 0))
    cost = pl.CostEstimate(flops=int(flops),
                           transcendentals=int(transcendentals),
                           bytes_accessed=int(bytes_accessed))

    # Scoped VMEM: resident weights + double-buffered x/out/(probs) blocks.
    # Capped at 48 MiB so the budget also fits v7x's 64 MiB physical VMEM;
    # v6e/v5e (128 MiB physical) could raise it for very large S with vis=True.
    step_bytes = ((4 * D * D + 4 * D) * itemsize
                  + 4 * block_b * S * D * itemsize
                  + (2 * block_b * num_heads * S * S * itemsize if vis else 0))
    vmem_limit = int(min(48 * 1024 * 1024,
                         max(32 * 1024 * 1024, 4 * step_bytes)))

    def _build(single_buffer_weights):
        wkw = ({'pipeline_mode': pl.Buffered(1)}
               if single_buffer_weights else {})
        const2 = lambda b: (0, 0)
        const3 = lambda b: (0, 0, 0)
        in_specs = [
            pl.BlockSpec((block_b, S, D), lambda b: (b, 0, 0)),          # x
            pl.BlockSpec((D, D), const2, **wkw),                         # wq
            pl.BlockSpec((1, D), const2, **wkw),                         # bq
            pl.BlockSpec((D, D), const2, **wkw),                         # wk
            pl.BlockSpec((1, D), const2, **wkw),                         # bk
            pl.BlockSpec((D, D), const2, **wkw),                         # wv
            pl.BlockSpec((1, D), const2, **wkw),                         # bv
            pl.BlockSpec((num_heads, hd, D), const3, **wkw),             # wo
            pl.BlockSpec((1, D), const2, **wkw),                         # bo
        ]
        out_spec_main = pl.BlockSpec((block_b, S, D), lambda b: (b, 0, 0))
        if vis:
            out_shape = (
                jax.ShapeDtypeStruct((B, S, D), out_dtype),
                jax.ShapeDtypeStruct((B, num_heads, S, S), probs_dtype),
            )
            out_specs = [
                out_spec_main,
                pl.BlockSpec((block_b, num_heads, S, S),
                             lambda b: (b, 0, 0, 0)),
            ]
        else:
            out_shape = jax.ShapeDtypeStruct((B, S, D), out_dtype)
            out_specs = out_spec_main

        return pl.pallas_call(
            kernel,
            out_shape=out_shape,
            grid_spec=pltpu.PrefetchScalarGridSpec(
                num_scalar_prefetch=0,
                grid=grid,
                in_specs=in_specs,
                out_specs=out_specs),
            compiler_params=pltpu.CompilerParams(
                dimension_semantics=("parallel",),
                vmem_limit_bytes=vmem_limit),
            cost_estimate=cost,
        )

    args = (xk, wq_t, bq_r, wk_t, bk_r, wv_t, bv_r, wo_h, bo_r)
    try:
        # Preferred: single-buffer the constant (never-changing-index) weights.
        result = _build(True)(*args)
    except Exception:
        # Some Pallas versions reject Buffered(1) in the pallas_call pipeline;
        # fall back to default double-buffering (correctness unaffected).
        result = _build(False)(*args)

    if vis:
        out, probs = result
        return out, probs
    return result, None


def attention_reference(x, wq, bq, wk, bk, wv, bv, wo, bo, *, num_heads):
    """Pure-JAX reference mirroring the PyTorch forward (eval mode)."""
    B, S, D = x.shape
    hd = D // num_heads

    def lin(h, w, b):
        return h @ w.T + b

    def heads(t):  # [B,S,D] -> [B,nh,S,hd]
        return jnp.transpose(t.reshape(B, S, num_heads, hd), (0, 2, 1, 3))

    q = heads(lin(x, wq, bq))
    k = heads(lin(x, wk, bk))
    v = heads(lin(x, wv, bv))
    scores = jnp.einsum("bhqd,bhkd->bhqk", q, k) / math.sqrt(hd)
    probs = jax.nn.softmax(scores, axis=-1)
    ctx = jnp.einsum("bhqk,bhkd->bhqd", probs, v)
    ctx = jnp.transpose(ctx, (0, 2, 1, 3)).reshape(B, S, D)
    out = lin(ctx, wo, bo)
    return out, probs


if __name__ == "__main__":
    # Small config consistent with the module: hidden_size=32, num_heads=4,
    # seq=8, batch=2 (attention_head_size = 8).
    B, S, D, NH = 2, 8, 32, 4

    key = jax.random.PRNGKey(0)
    ks = jax.random.split(key, 9)
    x = jax.random.normal(ks[0], (B, S, D), dtype=jnp.float32)
    wq = jax.random.normal(ks[1], (D, D), dtype=jnp.float32) * 0.02
    wk = jax.random.normal(ks[2], (D, D), dtype=jnp.float32) * 0.02
    wv = jax.random.normal(ks[3], (D, D), dtype=jnp.float32) * 0.02
    wo = jax.random.normal(ks[4], (D, D), dtype=jnp.float32) * 0.02
    bq = jax.random.normal(ks[5], (D,), dtype=jnp.float32) * 0.02
    bk = jax.random.normal(ks[6], (D,), dtype=jnp.float32) * 0.02
    bv = jax.random.normal(ks[7], (D,), dtype=jnp.float32) * 0.02
    bo = jax.random.normal(ks[8], (D,), dtype=jnp.float32) * 0.02

    # vis=True: output + attention weights (exact softmax reciprocal).
    out, weights = attention_forward(x, wq, bq, wk, bk, wv, bv, wo, bo,
                                     num_heads=NH, vis=True)
    jax.block_until_ready((out, weights))

    # vis=False hot path: no probs HBM write, approx (EUP) reciprocal.
    out_novis, none_weights = attention_forward(x, wq, bq, wk, bk, wv, bv, wo, bo,
                                                num_heads=NH, vis=False)
    jax.block_until_ready(out_novis)

    # bf16 MXU-operand path (f32 accumulation / softmax stats kept).
    out_bf16, _ = attention_forward(x, wq, bq, wk, bk, wv, bv, wo, bo,
                                    num_heads=NH, vis=False,
                                    compute_dtype=jnp.bfloat16)
    jax.block_until_ready(out_bf16)

    out_ref, weights_ref = attention_reference(
        x, wq, bq, wk, bk, wv, bv, wo, bo, num_heads=NH)

    assert out.shape == (B, S, D) and weights.shape == (B, NH, S, S)
    assert none_weights is None
    assert jnp.allclose(out, out_ref, atol=1e-4, rtol=1e-4)
    assert jnp.allclose(weights, weights_ref, atol=1e-4, rtol=1e-4)
    # approx reciprocal path: slightly looser tolerance.
    assert jnp.allclose(out_novis, out_ref, atol=5e-3, rtol=5e-3)
    # bf16 operand path: standard bf16-level agreement.
    assert jnp.allclose(out_bf16.astype(jnp.float32), out_ref,
                        atol=2e-2, rtol=2e-2)

    print("KERNEL_OK")
</pallas_src>

<mosaic_0001>
module attributes {stable_mosaic.version = 11 : i64} {
  func.func @_attention_kernel(%arg0: i32, %arg1: memref<2x8x32xf32, #tpu.memory_space<vmem>>, %arg2: memref<32x32xf32, #tpu.memory_space<vmem>>, %arg3: memref<1x32xf32, #tpu.memory_space<vmem>>, %arg4: memref<32x32xf32, #tpu.memory_space<vmem>>, %arg5: memref<1x32xf32, #tpu.memory_space<vmem>>, %arg6: memref<32x32xf32, #tpu.memory_space<vmem>>, %arg7: memref<1x32xf32, #tpu.memory_space<vmem>>, %arg8: memref<4x8x32xf32, #tpu.memory_space<vmem>>, %arg9: memref<1x32xf32, #tpu.memory_space<vmem>>, %arg10: memref<2x8x32xf32, #tpu.memory_space<vmem>>, %arg11: memref<2x4x8x8xf32, #tpu.memory_space<vmem>>) attributes {dimension_semantics = [#tpu.dimension_semantics<parallel>], iteration_bounds = array<i64: 1>, scalar_prefetch = 0 : i64, scratch_operands = 0 : i64, tpu.core_type = #tpu.core_type<tc>, window_params = [{transform_indices = @transform_0, window_bounds = array<i64: 2, 8, 32>}, {pipeline_mode = #tpu.pipeline_mode<synchronous>, transform_indices = @transform_1, window_bounds = array<i64: 32, 32>}, {pipeline_mode = #tpu.pipeline_mode<synchronous>, transform_indices = @transform_2, window_bounds = array<i64: 1, 32>}, {pipeline_mode = #tpu.pipeline_mode<synchronous>, transform_indices = @transform_3, window_bounds = array<i64: 32, 32>}, {pipeline_mode = #tpu.pipeline_mode<synchronous>, transform_indices = @transform_4, window_bounds = array<i64: 1, 32>}, {pipeline_mode = #tpu.pipeline_mode<synchronous>, transform_indices = @transform_5, window_bounds = array<i64: 32, 32>}, {pipeline_mode = #tpu.pipeline_mode<synchronous>, transform_indices = @transform_6, window_bounds = array<i64: 1, 32>}, {pipeline_mode = #tpu.pipeline_mode<synchronous>, transform_indices = @transform_7, window_bounds = array<i64: 4, 8, 32>}, {pipeline_mode = #tpu.pipeline_mode<synchronous>, transform_indices = @transform_8, window_bounds = array<i64: 1, 32>}, {transform_indices = @transform_9, window_bounds = array<i64: 2, 8, 32>}, {transform_indices = @transform_10, window_bounds = array<i64: 2, 4, 8, 8>}]} {
    %c0 = arith.constant 0 : index
    %c0_0 = arith.constant 0 : index
    %c0_1 = arith.constant 0 : index
    %0 = vector.load %arg1[%c0, %c0_0, %c0_1] : memref<2x8x32xf32, #tpu.memory_space<vmem>>, vector<2x8x32xf32>
    %1 = vector.shape_cast %0 : vector<2x8x32xf32> to vector<16x32xf32>
    %c0_2 = arith.constant 0 : index
    %c0_3 = arith.constant 0 : index
    %2 = vector.load %arg2[%c0_2, %c0_3] : memref<32x32xf32, #tpu.memory_space<vmem>>, vector<32x32xf32>
    %cst = arith.constant dense<0.000000e+00> : vector<16x32xf32>
    %3 = tpu.matmul %1, %2, %cst {dimension_numbers = #tpu.dot_dimension_numbers<[1], [0], [0], [1], [0, 0, 1, 1], [], []>} : vector<16x32xf32>, vector<32x32xf32>, vector<16x32xf32> -> vector<16x32xf32>
    %c0_4 = arith.constant 0 : index
    %c0_5 = arith.constant 0 : index
    %4 = vector.load %arg3[%c0_4, %c0_5] : memref<1x32xf32, #tpu.memory_space<vmem>>, vector<1x32xf32>
    %5 = vector.broadcast %4 : vector<1x32xf32> to vector<16x32xf32>
    %6 = arith.addf %3, %5 : vector<16x32xf32>
    %7 = vector.shape_cast %6 : vector<16x32xf32> to vector<2x8x32xf32>
    %c0_6 = arith.constant 0 : index
    %c0_7 = arith.constant 0 : index
    %8 = vector.load %arg4[%c0_6, %c0_7] : memref<32x32xf32, #tpu.memory_space<vmem>>, vector<32x32xf32>
    %cst_8 = arith.constant dense<0.000000e+00> : vector<16x32xf32>
    %9 = tpu.matmul %1, %8, %cst_8 {dimension_numbers = #tpu.dot_dimension_numbers<[1], [0], [0], [1], [0, 0, 1, 1], [], []>} : vector<16x32xf32>, vector<32x32xf32>, vector<16x32xf32> -> vector<16x32xf32>
    %c0_9 = arith.constant 0 : index
    %c0_10 = arith.constant 0 : index
    %10 = vector.load %arg5[%c0_9, %c0_10] : memref<1x32xf32, #tpu.memory_space<vmem>>, vector<1x32xf32>
    %11 = vector.broadcast %10 : vector<1x32xf32> to vector<16x32xf32>
    %12 = arith.addf %9, %11 : vector<16x32xf32>
    %13 = vector.shape_cast %12 : vector<16x32xf32> to vector<2x8x32xf32>
    %c0_11 = arith.constant 0 : index
    %c0_12 = arith.constant 0 : index
    %14 = vector.load %arg6[%c0_11, %c0_12] : memref<32x32xf32, #tpu.memory_space<vmem>>, vector<32x32xf32>
    %cst_13 = arith.constant dense<0.000000e+00> : vector<16x32xf32>
    %15 = tpu.matmul %1, %14, %cst_13 {dimension_numbers = #tpu.dot_dimension_numbers<[1], [0], [0], [1], [0, 0, 1, 1], [], []>} : vector<16x32xf32>, vector<32x32xf32>, vector<16x32xf32> -> vector<16x32xf32>
    %c0_14 = arith.constant 0 : index
    %c0_15 = arith.constant 0 : index
    %16 = vector.load %arg7[%c0_14, %c0_15] : memref<1x32xf32, #tpu.memory_space<vmem>>, vector<1x32xf32>
    %17 = vector.broadcast %16 : vector<1x32xf32> to vector<16x32xf32>
    %18 = arith.addf %15, %17 : vector<16x32xf32>
    %19 = vector.shape_cast %18 : vector<16x32xf32> to vector<2x8x32xf32>
    %cst_16 = arith.constant 0.000000e+00 : f32
    %20 = vector.broadcast %cst_16 : f32 to vector<16x32xf32>
    %21 = vector.extract_strided_slice %7 {offsets = [0, 0, 0], sizes = [2, 8, 8], strides = [1, 1, 1]} : vector<2x8x32xf32> to vector<2x8x8xf32>
    %22 = vector.extract_strided_slice %13 {offsets = [0, 0, 0], sizes = [2, 8, 8], strides = [1, 1, 1]} : vector<2x8x32xf32> to vector<2x8x8xf32>
    %23 = vector.extract_strided_slice %19 {offsets = [0, 0, 0], sizes = [2, 8, 8], strides = [1, 1, 1]} : vector<2x8x32xf32> to vector<2x8x8xf32>
    "tpu.trace_start"() <{level = 10 : i32, message = "bqd,bkd->bqk"}> : () -> ()
    %cst_17 = arith.constant dense<0.000000e+00> : vector<2x8x8xf32>
    %24 = tpu.matmul %21, %22, %cst_17 {dimension_numbers = #tpu.dot_dimension_numbers<[2], [2], [1], [1], [0, 0, 0, 1, 1, 1], [0], [0]>} : vector<2x8x8xf32>, vector<2x8x8xf32>, vector<2x8x8xf32> -> vector<2x8x8xf32>
    "tpu.trace_stop"() : () -> ()
    %cst_18 = arith.constant dense<0xFF800000> : vector<2x8xf32>
    %25 = vector.multi_reduction <maximumf>, %24, %cst_18 [2] : vector<2x8x8xf32> to vector<2x8xf32>
    %26 = vector.shape_cast %25 : vector<2x8xf32> to vector<2x8x1xf32>
    %27 = vector.broadcast %26 : vector<2x8x1xf32> to vector<2x8x8xf32>
    %28 = arith.subf %24, %27 : vector<2x8x8xf32>
    %29 = math.exp %28 : vector<2x8x8xf32>
    %cst_19 = arith.constant dense<0.000000e+00> : vector<2x8xf32>
    %30 = vector.multi_reduction <add>, %29, %cst_19 [2] : vector<2x8x8xf32> to vector<2x8xf32>
    %31 = vector.shape_cast %30 : vector<2x8xf32> to vector<2x8x1xf32>
    %32 = tpu.reciprocal %31 : vector<2x8x1xf32> -> vector<2x8x1xf32>
    %33 = vector.broadcast %32 : vector<2x8x1xf32> to vector<2x8x8xf32>
    %34 = arith.mulf %29, %33 : vector<2x8x8xf32>
    %35 = vector.extract_strided_slice %34 {offsets = [0, 0, 0], sizes = [1, 8, 8], strides = [1, 1, 1]} : vector<2x8x8xf32> to vector<1x8x8xf32>
    %36 = vector.shape_cast %35 : vector<1x8x8xf32> to vector<8x8xf32>
    %c0_20 = arith.constant 0 : index
    %c0_21 = arith.constant 0 : index
    %c0_22 = arith.constant 0 : index
    %c0_23 = arith.constant 0 : index
    %37 = vector.load %arg11[%c0_20, %c0_21, %c0_22, %c0_23] : memref<2x4x8x8xf32, #tpu.memory_space<vmem>>, vector<1x1x8x8xf32>
    %38 = vector.shape_cast %37 : vector<1x1x8x8xf32> to vector<8x8xf32>
    %39 = vector.shape_cast %36 : vector<8x8xf32> to vector<1x1x8x8xf32>
    tpu.vector_store %arg11[%c0_20, %c0_21, %c0_22, %c0_23], %39 {strides = array<i32>} : memref<2x4x8x8xf32, #tpu.memory_space<vmem>>, vector<1x1x8x8xf32>,
    %40 = vector.extract_strided_slice %34 {offsets = [1, 0, 0], sizes = [1, 8, 8], strides = [1, 1, 1]} : vector<2x8x8xf32> to vector<1x8x8xf32>
    %41 = vector.shape_cast %40 : vector<1x8x8xf32> to vector<8x8xf32>
    %c1 = arith.constant 1 : index
    %c0_24 = arith.constant 0 : index
    %c0_25 = arith.constant 0 : index
    %c0_26 = arith.constant 0 : index
    %42 = vector.load %arg11[%c1, %c0_24, %c0_25, %c0_26] : memref<2x4x8x8xf32, #tpu.memory_space<vmem>>, vector<1x1x8x8xf32>
    %43 = vector.shape_cast %42 : vector<1x1x8x8xf32> to vector<8x8xf32>
    %44 = vector.shape_cast %41 : vector<8x8xf32> to vector<1x1x8x8xf32>
    tpu.vector_store %arg11[%c1, %c0_24, %c0_25, %c0_26], %44 {strides = array<i32>} : memref<2x4x8x8xf32, #tpu.memory_space<vmem>>, vector<1x1x8x8xf32>,
    "tpu.trace_start"() <{level = 10 : i32, message = "bqk,bkd->bqd"}> : () -> ()
    %cst_27 = arith.constant dense<0.000000e+00> : vector<2x8x8xf32>
    %45 = tpu.matmul %34, %23, %cst_27 {dimension_numbers = #tpu.dot_dimension_numbers<[2], [1], [1], [2], [0, 0, 0, 1, 1, 2], [0], [0]>} : vector<2x8x8xf32>, vector<2x8x8xf32>, vector<2x8x8xf32> -> vector<2x8x8xf32>
    "tpu.trace_stop"() : () -> ()
    %46 = vector.shape_cast %45 : vector<2x8x8xf32> to vector<16x8xf32>
    %c0_28 = arith.constant 0 : index
    %c0_29 = arith.constant 0 : index
    %c0_30 = arith.constant 0 : index
    %47 = vector.load %arg8[%c0_28, %c0_29, %c0_30] : memref<4x8x32xf32, #tpu.memory_space<vmem>>, vector<1x8x32xf32>
    %48 = vector.shape_cast %47 : vector<1x8x32xf32> to vector<8x32xf32>
    %cst_31 = arith.constant dense<0.000000e+00> : vector<16x32xf32>
    %49 = tpu.matmul %46, %48, %cst_31 {dimension_numbers = #tpu.dot_dimension_numbers<[1], [0], [0], [1], [0, 0, 1, 1], [], []>} : vector<16x8xf32>, vector<8x32xf32>, vector<16x32xf32> -> vector<16x32xf32>
    %50 = arith.addf %20, %49 : vector<16x32xf32>
    %51 = vector.extract_strided_slice %7 {offsets = [0, 0, 8], sizes = [2, 8, 8], strides = [1, 1, 1]} : vector<2x8x32xf32> to vector<2x8x8xf32>
    %52 = vector.extract_strided_slice %13 {offsets = [0, 0, 8], sizes = [2, 8, 8], strides = [1, 1, 1]} : vector<2x8x32xf32> to vector<2x8x8xf32>
    %53 = vector.extract_strided_slice %19 {offsets = [0, 0, 8], sizes = [2, 8, 8], strides = [1, 1, 1]} : vector<2x8x32xf32> to vector<2x8x8xf32>
    "tpu.trace_start"() <{level = 10 : i32, message = "bqd,bkd->bqk"}> : () -> ()
    %cst_32 = arith.constant dense<0.000000e+00> : vector<2x8x8xf32>
    %54 = tpu.matmul %51, %52, %cst_32 {dimension_numbers = #tpu.dot_dimension_numbers<[2], [2], [1], [1], [0, 0, 0, 1, 1, 1], [0], [0]>} : vector<2x8x8xf32>, vector<2x8x8xf32>, vector<2x8x8xf32> -> vector<2x8x8xf32>
    "tpu.trace_stop"() : () -> ()
    %cst_33 = arith.constant dense<0xFF800000> : vector<2x8xf32>
    %55 = vector.multi_reduction <maximumf>, %54, %cst_33 [2] : vector<2x8x8xf32> to vector<2x8xf32>
    %56 = vector.shape_cast %55 : vector<2x8xf32> to vector<2x8x1xf32>
    %57 = vector.broadcast %56 : vector<2x8x1xf32> to vector<2x8x8xf32>
    %58 = arith.subf %54, %57 : vector<2x8x8xf32>
    %59 = math.exp %58 : vector<2x8x8xf32>
    %cst_34 = arith.constant dense<0.000000e+00> : vector<2x8xf32>
    %60 = vector.multi_reduction <add>, %59, %cst_34 [2] : vector<2x8x8xf32> to vector<2x8xf32>
    %61 = vector.shape_cast %60 : vector<2x8xf32> to vector<2x8x1xf32>
    %62 = tpu.reciprocal %61 : vector<2x8x1xf32> -> vector<2x8x1xf32>
    %63 = vector.broadcast %62 : vector<2x8x1xf32> to vector<2x8x8xf32>
    %64 = arith.mulf %59, %63 : vector<2x8x8xf32>
    %65 = vector.extract_strided_slice %64 {offsets = [0, 0, 0], sizes = [1, 8, 8], strides = [1, 1, 1]} : vector<2x8x8xf32> to vector<1x8x8xf32>
    %66 = vector.shape_cast %65 : vector<1x8x8xf32> to vector<8x8xf32>
    %c0_35 = arith.constant 0 : index
    %c1_36 = arith.constant 1 : index
    %c0_37 = arith.constant 0 : index
    %c0_38 = arith.constant 0 : index
    %67 = vector.load %arg11[%c0_35, %c1_36, %c0_37, %c0_38] : memref<2x4x8x8xf32, #tpu.memory_space<vmem>>, vector<1x1x8x8xf32>
    %68 = vector.shape_cast %67 : vector<1x1x8x8xf32> to vector<8x8xf32>
    %69 = vector.shape_cast %66 : vector<8x8xf32> to vector<1x1x8x8xf32>
    tpu.vector_store %arg11[%c0_35, %c1_36, %c0_37, %c0_38], %69 {strides = array<i32>} : memref<2x4x8x8xf32, #tpu.memory_space<vmem>>, vector<1x1x8x8xf32>,
    %70 = vector.extract_strided_slice %64 {offsets = [1, 0, 0], sizes = [1, 8, 8], strides = [1, 1, 1]} : vector<2x8x8xf32> to vector<1x8x8xf32>
    %71 = vector.shape_cast %70 : vector<1x8x8xf32> to vector<8x8xf32>
    %c1_39 = arith.constant 1 : index
    %c1_40 = arith.constant 1 : index
    %c0_41 = arith.constant 0 : index
    %c0_42 = arith.constant 0 : index
    %72 = vector.load %arg11[%c1_39, %c1_40, %c0_41, %c0_42] : memref<2x4x8x8xf32, #tpu.memory_space<vmem>>, vector<1x1x8x8xf32>
    %73 = vector.shape_cast %72 : vector<1x1x8x8xf32> to vector<8x8xf32>
    %74 = vector.shape_cast %71 : vector<8x8xf32> to vector<1x1x8x8xf32>
    tpu.vector_store %arg11[%c1_39, %c1_40, %c0_41, %c0_42], %74 {strides = array<i32>} : memref<2x4x8x8xf32, #tpu.memory_space<vmem>>, vector<1x1x8x8xf32>,
    "tpu.trace_start"() <{level = 10 : i32, message = "bqk,bkd->bqd"}> : () -> ()
    %cst_43 = arith.constant dense<0.000000e+00> : vector<2x8x8xf32>
    %75 = tpu.matmul %64, %53, %cst_43 {dimension_numbers = #tpu.dot_dimension_numbers<[2], [1], [1], [2], [0, 0, 0, 1, 1, 2], [0], [0]>} : vector<2x8x8xf32>, vector<2x8x8xf32>, vector<2x8x8xf32> -> vector<2x8x8xf32>
    "tpu.trace_stop"() : () -> ()
    %76 = vector.shape_cast %75 : vector<2x8x8xf32> to vector<16x8xf32>
    %c1_44 = arith.constant 1 : index
    %c0_45 = arith.constant 0 : index
    %c0_46 = arith.constant 0 : index
    %77 = vector.load %arg8[%c1_44, %c0_45, %c0_46] : memref<4x8x32xf32, #tpu.memory_space<vmem>>, vector<1x8x32xf32>
    %78 = vector.shape_cast %77 : vector<1x8x32xf32> to vector<8x32xf32>
    %cst_47 = arith.constant dense<0.000000e+00> : vector<16x32xf32>
    %79 = tpu.matmul %76, %78, %cst_47 {dimension_numbers = #tpu.dot_dimension_numbers<[1], [0], [0], [1], [0, 0, 1, 1], [], []>} : vector<16x8xf32>, vector<8x32xf32>, vector<16x32xf32> -> vector<16x32xf32>
    %80 = arith.addf %50, %79 : vector<16x32xf32>
    %81 = vector.extract_strided_slice %7 {offsets = [0, 0, 16], sizes = [2, 8, 8], strides = [1, 1, 1]} : vector<2x8x32xf32> to vector<2x8x8xf32>
    %82 = vector.extract_strided_slice %13 {offsets = [0, 0, 16], sizes = [2, 8, 8], strides = [1, 1, 1]} : vector<2x8x32xf32> to vector<2x8x8xf32>
    %83 = vector.extract_strided_slice %19 {offsets = [0, 0, 16], sizes = [2, 8, 8], strides = [1, 1, 1]} : vector<2x8x32xf32> to vector<2x8x8xf32>
    "tpu.trace_start"() <{level = 10 : i32, message = "bqd,bkd->bqk"}> : () -> ()
    %cst_48 = arith.constant dense<0.000000e+00> : vector<2x8x8xf32>
    %84 = tpu.matmul %81, %82, %cst_48 {dimension_numbers = #tpu.dot_dimension_numbers<[2], [2], [1], [1], [0, 0, 0, 1, 1, 1], [0], [0]>} : vector<2x8x8xf32>, vector<2x8x8xf32>, vector<2x8x8xf32> -> vector<2x8x8xf32>
    "tpu.trace_stop"() : () -> ()
    %cst_49 = arith.constant dense<0xFF800000> : vector<2x8xf32>
    %85 = vector.multi_reduction <maximumf>, %84, %cst_49 [2] : vector<2x8x8xf32> to vector<2x8xf32>
    %86 = vector.shape_cast %85 : vector<2x8xf32> to vector<2x8x1xf32>
    %87 = vector.broadcast %86 : vector<2x8x1xf32> to vector<2x8x8xf32>
    %88 = arith.subf %84, %87 : vector<2x8x8xf32>
    %89 = math.exp %88 : vector<2x8x8xf32>
    %cst_50 = arith.constant dense<0.000000e+00> : vector<2x8xf32>
    %90 = vector.multi_reduction <add>, %89, %cst_50 [2] : vector<2x8x8xf32> to vector<2x8xf32>
    %91 = vector.shape_cast %90 : vector<2x8xf32> to vector<2x8x1xf32>
    %92 = tpu.reciprocal %91 : vector<2x8x1xf32> -> vector<2x8x1xf32>
    %93 = vector.broadcast %92 : vector<2x8x1xf32> to vector<2x8x8xf32>
    %94 = arith.mulf %89, %93 : vector<2x8x8xf32>
    %95 = vector.extract_strided_slice %94 {offsets = [0, 0, 0], sizes = [1, 8, 8], strides = [1, 1, 1]} : vector<2x8x8xf32> to vector<1x8x8xf32>
    %96 = vector.shape_cast %95 : vector<1x8x8xf32> to vector<8x8xf32>
    %c0_51 = arith.constant 0 : index
    %c2 = arith.constant 2 : index
    %c0_52 = arith.constant 0 : index
    %c0_53 = arith.constant 0 : index
    %97 = vector.load %arg11[%c0_51, %c2, %c0_52, %c0_53] : memref<2x4x8x8xf32, #tpu.memory_space<vmem>>, vector<1x1x8x8xf32>
    %98 = vector.shape_cast %97 : vector<1x1x8x8xf32> to vector<8x8xf32>
    %99 = vector.shape_cast %96 : vector<8x8xf32> to vector<1x1x8x8xf32>
    tpu.vector_store %arg11[%c0_51, %c2, %c0_52, %c0_53], %99 {strides = array<i32>} : memref<2x4x8x8xf32, #tpu.memory_space<vmem>>, vector<1x1x8x8xf32>,
    %100 = vector.extract_strided_slice %94 {offsets = [1, 0, 0], sizes = [1, 8, 8], strides = [1, 1, 1]} : vector<2x8x8xf32> to vector<1x8x8xf32>
    %101 = vector.shape_cast %100 : vector<1x8x8xf32> to vector<8x8xf32>
    %c1_54 = arith.constant 1 : index
    %c2_55 = arith.constant 2 : index
    %c0_56 = arith.constant 0 : index
    %c0_57 = arith.constant 0 : index
    %102 = vector.load %arg11[%c1_54, %c2_55, %c0_56, %c0_57] : memref<2x4x8x8xf32, #tpu.memory_space<vmem>>, vector<1x1x8x8xf32>
    %103 = vector.shape_cast %102 : vector<1x1x8x8xf32> to vector<8x8xf32>
    %104 = vector.shape_cast %101 : vector<8x8xf32> to vector<1x1x8x8xf32>
    tpu.vector_store %arg11[%c1_54, %c2_55, %c0_56, %c0_57], %104 {strides = array<i32>} : memref<2x4x8x8xf32, #tpu.memory_space<vmem>>, vector<1x1x8x8xf32>,
    "tpu.trace_start"() <{level = 10 : i32, message = "bqk,bkd->bqd"}> : () -> ()
    %cst_58 = arith.constant dense<0.000000e+00> : vector<2x8x8xf32>
    %105 = tpu.matmul %94, %83, %cst_58 {dimension_numbers = #tpu.dot_dimension_numbers<[2], [1], [1], [2], [0, 0, 0, 1, 1, 2], [0], [0]>} : vector<2x8x8xf32>, vector<2x8x8xf32>, vector<2x8x8xf32> -> vector<2x8x8xf32>
    "tpu.trace_stop"() : () -> ()
    %106 = vector.shape_cast %105 : vector<2x8x8xf32> to vector<16x8xf32>
    %c2_59 = arith.constant 2 : index
    %c0_60 = arith.constant 0 : index
    %c0_61 = arith.constant 0 : index
    %107 = vector.load %arg8[%c2_59, %c0_60, %c0_61] : memref<4x8x32xf32, #tpu.memory_space<vmem>>, vector<1x8x32xf32>
    %108 = vector.shape_cast %107 : vector<1x8x32xf32> to vector<8x32xf32>
    %cst_62 = arith.constant dense<0.000000e+00> : vector<16x32xf32>
    %109 = tpu.matmul %106, %108, %cst_62 {dimension_numbers = #tpu.dot_dimension_numbers<[1], [0], [0], [1], [0, 0, 1, 1], [], []>} : vector<16x8xf32>, vector<8x32xf32>, vector<16x32xf32> -> vector<16x32xf32>
    %110 = arith.addf %80, %109 : vector<16x32xf32>
    %111 = vector.extract_strided_slice %7 {offsets = [0, 0, 24], sizes = [2, 8, 8], strides = [1, 1, 1]} : vector<2x8x32xf32> to vector<2x8x8xf32>
    %112 = vector.extract_strided_slice %13 {offsets = [0, 0, 24], sizes = [2, 8, 8], strides = [1, 1, 1]} : vector<2x8x32xf32> to vector<2x8x8xf32>
    %113 = vector.extract_strided_slice %19 {offsets = [0, 0, 24], sizes = [2, 8, 8], strides = [1, 1, 1]} : vector<2x8x32xf32> to vector<2x8x8xf32>
    "tpu.trace_start"() <{level = 10 : i32, message = "bqd,bkd->bqk"}> : () -> ()
    %cst_63 = arith.constant dense<0.000000e+00> : vector<2x8x8xf32>
    %114 = tpu.matmul %111, %112, %cst_63 {dimension_numbers = #tpu.dot_dimension_numbers<[2], [2], [1], [1], [0, 0, 0, 1, 1, 1], [0], [0]>} : vector<2x8x8xf32>, vector<2x8x8xf32>, vector<2x8x8xf32> -> vector<2x8x8xf32>
    "tpu.trace_stop"() : () -> ()
    %cst_64 = arith.constant dense<0xFF800000> : vector<2x8xf32>
    %115 = vector.multi_reduction <maximumf>, %114, %cst_64 [2] : vector<2x8x8xf32> to vector<2x8xf32>
    %116 = vector.shape_cast %115 : vector<2x8xf32> to vector<2x8x1xf32>
    %117 = vector.broadcast %116 : vector<2x8x1xf32> to vector<2x8x8xf32>
    %118 = arith.subf %114, %117 : vector<2x8x8xf32>
    %119 = math.exp %118 : vector<2x8x8xf32>
    %cst_65 = arith.constant dense<0.000000e+00> : vector<2x8xf32>
    %120 = vector.multi_reduction <add>, %119, %cst_65 [2] : vector<2x8x8xf32> to vector<2x8xf32>
    %121 = vector.shape_cast %120 : vector<2x8xf32> to vector<2x8x1xf32>
    %122 = tpu.reciprocal %121 : vector<2x8x1xf32> -> vector<2x8x1xf32>
    %123 = vector.broadcast %122 : vector<2x8x1xf32> to vector<2x8x8xf32>
    %124 = arith.mulf %119, %123 : vector<2x8x8xf32>
    %125 = vector.extract_strided_slice %124 {offsets = [0, 0, 0], sizes = [1, 8, 8], strides = [1, 1, 1]} : vector<2x8x8xf32> to vector<1x8x8xf32>
    %126 = vector.shape_cast %125 : vector<1x8x8xf32> to vector<8x8xf32>
    %c0_66 = arith.constant 0 : index
    %c3 = arith.constant 3 : index
    %c0_67 = arith.constant 0 : index
    %c0_68 = arith.constant 0 : index
    %127 = vector.load %arg11[%c0_66, %c3, %c0_67, %c0_68] : memref<2x4x8x8xf32, #tpu.memory_space<vmem>>, vector<1x1x8x8xf32>
    %128 = vector.shape_cast %127 : vector<1x1x8x8xf32> to vector<8x8xf32>
    %129 = vector.shape_cast %126 : vector<8x8xf32> to vector<1x1x8x8xf32>
    tpu.vector_store %arg11[%c0_66, %c3, %c0_67, %c0_68], %129 {strides = array<i32>} : memref<2x4x8x8xf32, #tpu.memory_space<vmem>>, vector<1x1x8x8xf32>,
    %130 = vector.extract_strided_slice %124 {offsets = [1, 0, 0], sizes = [1, 8, 8], strides = [1, 1, 1]} : vector<2x8x8xf32> to vector<1x8x8xf32>
    %131 = vector.shape_cast %130 : vector<1x8x8xf32> to vector<8x8xf32>
    %c1_69 = arith.constant 1 : index
    %c3_70 = arith.constant 3 : index
    %c0_71 = arith.constant 0 : index
    %c0_72 = arith.constant 0 : index
    %132 = vector.load %arg11[%c1_69, %c3_70, %c0_71, %c0_72] : memref<2x4x8x8xf32, #tpu.memory_space<vmem>>, vector<1x1x8x8xf32>
    %133 = vector.shape_cast %132 : vector<1x1x8x8xf32> to vector<8x8xf32>
    %134 = vector.shape_cast %131 : vector<8x8xf32> to vector<1x1x8x8xf32>
    tpu.vector_store %arg11[%c1_69, %c3_70, %c0_71, %c0_72], %134 {strides = array<i32>} : memref<2x4x8x8xf32, #tpu.memory_space<vmem>>, vector<1x1x8x8xf32>,
    "tpu.trace_start"() <{level = 10 : i32, message = "bqk,bkd->bqd"}> : () -> ()
    %cst_73 = arith.constant dense<0.000000e+00> : vector<2x8x8xf32>
    %135 = tpu.matmul %124, %113, %cst_73 {dimension_numbers = #tpu.dot_dimension_numbers<[2], [1], [1], [2], [0, 0, 0, 1, 1, 2], [0], [0]>} : vector<2x8x8xf32>, vector<2x8x8xf32>, vector<2x8x8xf32> -> vector<2x8x8xf32>
    "tpu.trace_stop"() : () -> ()
    %136 = vector.shape_cast %135 : vector<2x8x8xf32> to vector<16x8xf32>
    %c3_74 = arith.constant 3 : index
    %c0_75 = arith.constant 0 : index
    %c0_76 = arith.constant 0 : index
    %137 = vector.load %arg8[%c3_74, %c0_75, %c0_76] : memref<4x8x32xf32, #tpu.memory_space<vmem>>, vector<1x8x32xf32>
    %138 = vector.shape_cast %137 : vector<1x8x32xf32> to vector<8x32xf32>
    %cst_77 = arith.constant dense<0.000000e+00> : vector<16x32xf32>
    %139 = tpu.matmul %136, %138, %cst_77 {dimension_numbers = #tpu.dot_dimension_numbers<[1], [0], [0], [1], [0, 0, 1, 1], [], []>} : vector<16x8xf32>, vector<8x32xf32>, vector<16x32xf32> -> vector<16x32xf32>
    %140 = arith.addf %110, %139 : vector<16x32xf32>
    %c0_78 = arith.constant 0 : index
    %c0_79 = arith.constant 0 : index
    %141 = vector.load %arg9[%c0_78, %c0_79] : memref<1x32xf32, #tpu.memory_space<vmem>>, vector<1x32xf32>
    %142 = vector.broadcast %141 : vector<1x32xf32> to vector<16x32xf32>
    %143 = arith.addf %140, %142 : vector<16x32xf32>
    %144 = vector.shape_cast %143 : vector<16x32xf32> to vector<2x8x32xf32>
    %c0_80 = arith.constant 0 : index
    %c0_81 = arith.constant 0 : index
    %c0_82 = arith.constant 0 : index
    %145 = vector.load %arg10[%c0_80, %c0_81, %c0_82] : memref<2x8x32xf32, #tpu.memory_space<vmem>>, vector<2x8x32xf32>
    tpu.vector_store %arg10[%c0_80, %c0_81, %c0_82], %144 {strides = array<i32>} : memref<2x8x32xf32, #tpu.memory_space<vmem>>, vector<2x8x32xf32>,
    return
  }
  func.func @transform_0(%arg0: i32) -> (i32, i32, i32) {
    %c0_i32 = arith.constant 0 : i32
    %c0_i32_0 = arith.constant 0 : i32
    %c0_i32_1 = arith.constant 0 : i32
    return %arg0, %c0_i32, %c0_i32_0 : i32, i32, i32
  }
  func.func @transform_1(%arg0: i32) -> (i32, i32) {
    %c0_i32 = arith.constant 0 : i32
    %c0_i32_0 = arith.constant 0 : i32
    %c0_i32_1 = arith.constant 0 : i32
    return %c0_i32, %c0_i32_0 : i32, i32
  }
  func.func @transform_2(%arg0: i32) -> (i32, i32) {
    %c0_i32 = arith.constant 0 : i32
    %c0_i32_0 = arith.constant 0 : i32
    %c0_i32_1 = arith.constant 0 : i32
    return %c0_i32, %c0_i32_0 : i32, i32
  }
  func.func @transform_3(%arg0: i32) -> (i32, i32) {
    %c0_i32 = arith.constant 0 : i32
    %c0_i32_0 = arith.constant 0 : i32
    %c0_i32_1 = arith.constant 0 : i32
    return %c0_i32, %c0_i32_0 : i32, i32
  }
  func.func @transform_4(%arg0: i32) -> (i32, i32) {
    %c0_i32 = arith.constant 0 : i32
    %c0_i32_0 = arith.constant 0 : i32
    %c0_i32_1 = arith.constant 0 : i32
    return %c0_i32, %c0_i32_0 : i32, i32
  }
  func.func @transform_5(%arg0: i32) -> (i32, i32) {
    %c0_i32 = arith.constant 0 : i32
    %c0_i32_0 = arith.constant 0 : i32
    %c0_i32_1 = arith.constant 0 : i32
    return %c0_i32, %c0_i32_0 : i32, i32
  }
  func.func @transform_6(%arg0: i32) -> (i32, i32) {
    %c0_i32 = arith.constant 0 : i32
    %c0_i32_0 = arith.constant 0 : i32
    %c0_i32_1 = arith.constant 0 : i32
    return %c0_i32, %c0_i32_0 : i32, i32
  }
  func.func @transform_7(%arg0: i32) -> (i32, i32, i32) {
    %c0_i32 = arith.constant 0 : i32
    %c0_i32_0 = arith.constant 0 : i32
    %c0_i32_1 = arith.constant 0 : i32
    %c0_i32_2 = arith.constant 0 : i32
    return %c0_i32, %c0_i32_0, %c0_i32_1 : i32, i32, i32
  }
  func.func @transform_8(%arg0: i32) -> (i32, i32) {
    %c0_i32 = arith.constant 0 : i32
    %c0_i32_0 = arith.constant 0 : i32
    %c0_i32_1 = arith.constant 0 : i32
    return %c0_i32, %c0_i32_0 : i32, i32
  }
  func.func @transform_9(%arg0: i32) -> (i32, i32, i32) {
    %c0_i32 = arith.constant 0 : i32
    %c0_i32_0 = arith.constant 0 : i32
    %c0_i32_1 = arith.constant 0 : i32
    return %arg0, %c0_i32, %c0_i32_0 : i32, i32, i32
  }
  func.func @transform_10(%arg0: i32) -> (i32, i32, i32, i32) {
    %c0_i32 = arith.constant 0 : i32
    %c0_i32_0 = arith.constant 0 : i32
    %c0_i32_1 = arith.constant 0 : i32
    %c0_i32_2 = arith.constant 0 : i32
    return %arg0, %c0_i32, %c0_i32_0, %c0_i32_1 : i32, i32, i32, i32
  }
}

module attributes {stable_mosaic.version = 11 : i64} {
  func.func @_attention_kernel(%arg0: i32, %arg1: memref<2x8x32xf32, #tpu.memory_space<vmem>>, %arg2: memref<32x32xf32, #tpu.memory_space<vmem>>, %arg3: memref<1x32xf32, #tpu.memory_space<vmem>>, %arg4: memref<32x32xf32, #tpu.memory_space<vmem>>, %arg5: memref<1x32xf32, #tpu.memory_space<vmem>>, %arg6: memref<32x32xf32, #tpu.memory_space<vmem>>, %arg7: memref<1x32xf32, #tpu.memory_space<vmem>>, %arg8: memref<4x8x32xf32, #tpu.memory_space<vmem>>, %arg9: memref<1x32xf32, #tpu.memory_space<vmem>>, %arg10: memref<2x8x32xf32, #tpu.memory_space<vmem>>, %arg11: memref<2x4x8x8xf32, #tpu.memory_space<vmem>>) attributes {dimension_semantics = [#tpu.dimension_semantics<parallel>], iteration_bounds = array<i64: 1>, scalar_prefetch = 0 : i64, scratch_operands = 0 : i64, tpu.core_type = #tpu.core_type<tc>, window_params = [{transform_indices = @transform_0, window_bounds = array<i64: 2, 8, 32>}, {pipeline_mode = #tpu.pipeline_mode<synchronous>, transform_indices = @transform_1, window_bounds = array<i64: 32, 32>}, {pipeline_mode = #tpu.pipeline_mode<synchronous>, transform_indices = @transform_2, window_bounds = array<i64: 1, 32>}, {pipeline_mode = #tpu.pipeline_mode<synchronous>, transform_indices = @transform_3, window_bounds = array<i64: 32, 32>}, {pipeline_mode = #tpu.pipeline_mode<synchronous>, transform_indices = @transform_4, window_bounds = array<i64: 1, 32>}, {pipeline_mode = #tpu.pipeline_mode<synchronous>, transform_indices = @transform_5, window_bounds = array<i64: 32, 32>}, {pipeline_mode = #tpu.pipeline_mode<synchronous>, transform_indices = @transform_6, window_bounds = array<i64: 1, 32>}, {pipeline_mode = #tpu.pipeline_mode<synchronous>, transform_indices = @transform_7, window_bounds = array<i64: 4, 8, 32>}, {pipeline_mode = #tpu.pipeline_mode<synchronous>, transform_indices = @transform_8, window_bounds = array<i64: 1, 32>}, {transform_indices = @transform_9, window_bounds = array<i64: 2, 8, 32>}, {transform_indices = @transform_10, window_bounds = array<i64: 2, 4, 8, 8>}]} {
    %c0 = arith.constant 0 : index
    %c0_0 = arith.constant 0 : index
    %c0_1 = arith.constant 0 : index
    %0 = vector.load %arg1[%c0, %c0_0, %c0_1] : memref<2x8x32xf32, #tpu.memory_space<vmem>>, vector<2x8x32xf32>
    %1 = vector.shape_cast %0 : vector<2x8x32xf32> to vector<16x32xf32>
    %c0_2 = arith.constant 0 : index
    %c0_3 = arith.constant 0 : index
    %2 = vector.load %arg2[%c0_2, %c0_3] : memref<32x32xf32, #tpu.memory_space<vmem>>, vector<32x32xf32>
    %cst = arith.constant dense<0.000000e+00> : vector<16x32xf32>
    %3 = tpu.matmul %1, %2, %cst {dimension_numbers = #tpu.dot_dimension_numbers<[1], [0], [0], [1], [0, 0, 1, 1], [], []>} : vector<16x32xf32>, vector<32x32xf32>, vector<16x32xf32> -> vector<16x32xf32>
    %c0_4 = arith.constant 0 : index
    %c0_5 = arith.constant 0 : index
    %4 = vector.load %arg3[%c0_4, %c0_5] : memref<1x32xf32, #tpu.memory_space<vmem>>, vector<1x32xf32>
    %5 = vector.broadcast %4 : vector<1x32xf32> to vector<16x32xf32>
    %6 = arith.addf %3, %5 : vector<16x32xf32>
    %7 = vector.shape_cast %6 : vector<16x32xf32> to vector<2x8x32xf32>
    %c0_6 = arith.constant 0 : index
    %c0_7 = arith.constant 0 : index
    %8 = vector.load %arg4[%c0_6, %c0_7] : memref<32x32xf32, #tpu.memory_space<vmem>>, vector<32x32xf32>
    %cst_8 = arith.constant dense<0.000000e+00> : vector<16x32xf32>
    %9 = tpu.matmul %1, %8, %cst_8 {dimension_numbers = #tpu.dot_dimension_numbers<[1], [0], [0], [1], [0, 0, 1, 1], [], []>} : vector<16x32xf32>, vector<32x32xf32>, vector<16x32xf32> -> vector<16x32xf32>
    %c0_9 = arith.constant 0 : index
    %c0_10 = arith.constant 0 : index
    %10 = vector.load %arg5[%c0_9, %c0_10] : memref<1x32xf32, #tpu.memory_space<vmem>>, vector<1x32xf32>
    %11 = vector.broadcast %10 : vector<1x32xf32> to vector<16x32xf32>
    %12 = arith.addf %9, %11 : vector<16x32xf32>
    %13 = vector.shape_cast %12 : vector<16x32xf32> to vector<2x8x32xf32>
    %c0_11 = arith.constant 0 : index
    %c0_12 = arith.constant 0 : index
    %14 = vector.load %arg6[%c0_11, %c0_12] : memref<32x32xf32, #tpu.memory_space<vmem>>, vector<32x32xf32>
    %cst_13 = arith.constant dense<0.000000e+00> : vector<16x32xf32>
    %15 = tpu.matmul %1, %14, %cst_13 {dimension_numbers = #tpu.dot_dimension_numbers<[1], [0], [0], [1], [0, 0, 1, 1], [], []>} : vector<16x32xf32>, vector<32x32xf32>, vector<16x32xf32> -> vector<16x32xf32>
    %c0_14 = arith.constant 0 : index
    %c0_15 = arith.constant 0 : index
    %16 = vector.load %arg7[%c0_14, %c0_15] : memref<1x32xf32, #tpu.memory_space<vmem>>, vector<1x32xf32>
    %17 = vector.broadcast %16 : vector<1x32xf32> to vector<16x32xf32>
    %18 = arith.addf %15, %17 : vector<16x32xf32>
    %19 = vector.shape_cast %18 : vector<16x32xf32> to vector<2x8x32xf32>
    %cst_16 = arith.constant 0.000000e+00 : f32
    %20 = vector.broadcast %cst_16 : f32 to vector<16x32xf32>
    %21 = vector.extract_strided_slice %7 {offsets = [0, 0, 0], sizes = [2, 8, 8], strides = [1, 1, 1]} : vector<2x8x32xf32> to vector<2x8x8xf32>
    %22 = vector.extract_strided_slice %13 {offsets = [0, 0, 0], sizes = [2, 8, 8], strides = [1, 1, 1]} : vector<2x8x32xf32> to vector<2x8x8xf32>
    %23 = vector.extract_strided_slice %19 {offsets = [0, 0, 0], sizes = [2, 8, 8], strides = [1, 1, 1]} : vector<2x8x32xf32> to vector<2x8x8xf32>
    "tpu.trace_start"() <{level = 10 : i32, message = "bqd,bkd->bqk"}> : () -> ()
    %cst_17 = arith.constant dense<0.000000e+00> : vector<2x8x8xf32>
    %24 = tpu.matmul %21, %22, %cst_17 {dimension_numbers = #tpu.dot_dimension_numbers<[2], [2], [1], [1], [0, 0, 0, 1, 1, 1], [0], [0]>} : vector<2x8x8xf32>, vector<2x8x8xf32>, vector<2x8x8xf32> -> vector<2x8x8xf32>
    "tpu.trace_stop"() : () -> ()
    %cst_18 = arith.constant dense<0xFF800000> : vector<2x8xf32>
    %25 = vector.multi_reduction <maximumf>, %24, %cst_18 [2] : vector<2x8x8xf32> to vector<2x8xf32>
    %26 = vector.shape_cast %25 : vector<2x8xf32> to vector<2x8x1xf32>
    %27 = vector.broadcast %26 : vector<2x8x1xf32> to vector<2x8x8xf32>
    %28 = arith.subf %24, %27 : vector<2x8x8xf32>
    %29 = math.exp %28 : vector<2x8x8xf32>
    %cst_19 = arith.constant dense<0.000000e+00> : vector<2x8xf32>
    %30 = vector.multi_reduction <add>, %29, %cst_19 [2] : vector<2x8x8xf32> to vector<2x8xf32>
    %31 = vector.shape_cast %30 : vector<2x8xf32> to vector<2x8x1xf32>
    %32 = tpu.reciprocal %31 : vector<2x8x1xf32> -> vector<2x8x1xf32>
    %33 = vector.broadcast %32 : vector<2x8x1xf32> to vector<2x8x8xf32>
    %34 = arith.mulf %29, %33 : vector<2x8x8xf32>
    %35 = vector.extract_strided_slice %34 {offsets = [0, 0, 0], sizes = [1, 8, 8], strides = [1, 1, 1]} : vector<2x8x8xf32> to vector<1x8x8xf32>
    %36 = vector.shape_cast %35 : vector<1x8x8xf32> to vector<8x8xf32>
    %c0_20 = arith.constant 0 : index
    %c0_21 = arith.constant 0 : index
    %c0_22 = arith.constant 0 : index
    %c0_23 = arith.constant 0 : index
    %37 = vector.load %arg11[%c0_20, %c0_21, %c0_22, %c0_23] : memref<2x4x8x8xf32, #tpu.memory_space<vmem>>, vector<1x1x8x8xf32>
    %38 = vector.shape_cast %37 : vector<1x1x8x8xf32> to vector<8x8xf32>
    %39 = vector.shape_cast %36 : vector<8x8xf32> to vector<1x1x8x8xf32>
    tpu.vector_store %arg11[%c0_20, %c0_21, %c0_22, %c0_23], %39 {strides = array<i32>} : memref<2x4x8x8xf32, #tpu.memory_space<vmem>>, vector<1x1x8x8xf32>,
    %40 = vector.extract_strided_slice %34 {offsets = [1, 0, 0], sizes = [1, 8, 8], strides = [1, 1, 1]} : vector<2x8x8xf32> to vector<1x8x8xf32>
    %41 = vector.shape_cast %40 : vector<1x8x8xf32> to vector<8x8xf32>
    %c1 = arith.constant 1 : index
    %c0_24 = arith.constant 0 : index
    %c0_25 = arith.constant 0 : index
    %c0_26 = arith.constant 0 : index
    %42 = vector.load %arg11[%c1, %c0_24, %c0_25, %c0_26] : memref<2x4x8x8xf32, #tpu.memory_space<vmem>>, vector<1x1x8x8xf32>
    %43 = vector.shape_cast %42 : vector<1x1x8x8xf32> to vector<8x8xf32>
    %44 = vector.shape_cast %41 : vector<8x8xf32> to vector<1x1x8x8xf32>
    tpu.vector_store %arg11[%c1, %c0_24, %c0_25, %c0_26], %44 {strides = array<i32>} : memref<2x4x8x8xf32, #tpu.memory_space<vmem>>, vector<1x1x8x8xf32>,
    "tpu.trace_start"() <{level = 10 : i32, message = "bqk,bkd->bqd"}> : () -> ()
    %cst_27 = arith.constant dense<0.000000e+00> : vector<2x8x8xf32>
    %45 = tpu.matmul %34, %23, %cst_27 {dimension_numbers = #tpu.dot_dimension_numbers<[2], [1], [1], [2], [0, 0, 0, 1, 1, 2], [0], [0]>} : vector<2x8x8xf32>, vector<2x8x8xf32>, vector<2x8x8xf32> -> vector<2x8x8xf32>
    "tpu.trace_stop"() : () -> ()
    %46 = vector.shape_cast %45 : vector<2x8x8xf32> to vector<16x8xf32>
    %c0_28 = arith.constant 0 : index
    %c0_29 = arith.constant 0 : index
    %c0_30 = arith.constant 0 : index
    %47 = vector.load %arg8[%c0_28, %c0_29, %c0_30] : memref<4x8x32xf32, #tpu.memory_space<vmem>>, vector<1x8x32xf32>
    %48 = vector.shape_cast %47 : vector<1x8x32xf32> to vector<8x32xf32>
    %cst_31 = arith.constant dense<0.000000e+00> : vector<16x32xf32>
    %49 = tpu.matmul %46, %48, %cst_31 {dimension_numbers = #tpu.dot_dimension_numbers<[1], [0], [0], [1], [0, 0, 1, 1], [], []>} : vector<16x8xf32>, vector<8x32xf32>, vector<16x32xf32> -> vector<16x32xf32>
    %50 = arith.addf %20, %49 : vector<16x32xf32>
    %51 = vector.extract_strided_slice %7 {offsets = [0, 0, 8], sizes = [2, 8, 8], strides = [1, 1, 1]} : vector<2x8x32xf32> to vector<2x8x8xf32>
    %52 = vector.extract_strided_slice %13 {offsets = [0, 0, 8], sizes = [2, 8, 8], strides = [1, 1, 1]} : vector<2x8x32xf32> to vector<2x8x8xf32>
    %53 = vector.extract_strided_slice %19 {offsets = [0, 0, 8], sizes = [2, 8, 8], strides = [1, 1, 1]} : vector<2x8x32xf32> to vector<2x8x8xf32>
    "tpu.trace_start"() <{level = 10 : i32, message = "bqd,bkd->bqk"}> : () -> ()
    %cst_32 = arith.constant dense<0.000000e+00> : vector<2x8x8xf32>
    %54 = tpu.matmul %51, %52, %cst_32 {dimension_numbers = #tpu.dot_dimension_numbers<[2], [2], [1], [1], [0, 0, 0, 1, 1, 1], [0], [0]>} : vector<2x8x8xf32>, vector<2x8x8xf32>, vector<2x8x8xf32> -> vector<2x8x8xf32>
    "tpu.trace_stop"() : () -> ()
    %cst_33 = arith.constant dense<0xFF800000> : vector<2x8xf32>
    %55 = vector.multi_reduction <maximumf>, %54, %cst_33 [2] : vector<2x8x8xf32> to vector<2x8xf32>
    %56 = vector.shape_cast %55 : vector<2x8xf32> to vector<2x8x1xf32>
    %57 = vector.broadcast %56 : vector<2x8x1xf32> to vector<2x8x8xf32>
    %58 = arith.subf %54, %57 : vector<2x8x8xf32>
    %59 = math.exp %58 : vector<2x8x8xf32>
    %cst_34 = arith.constant dense<0.000000e+00> : vector<2x8xf32>
    %60 = vector.multi_reduction <add>, %59, %cst_34 [2] : vector<2x8x8xf32> to vector<2x8xf32>
    %61 = vector.shape_cast %60 : vector<2x8xf32> to vector<2x8x1xf32>
    %62 = tpu.reciprocal %61 : vector<2x8x1xf32> -> vector<2x8x1xf32>
    %63 = vector.broadcast %62 : vector<2x8x1xf32> to vector<2x8x8xf32>
    %64 = arith.mulf %59, %63 : vector<2x8x8xf32>
    %65 = vector.extract_strided_slice %64 {offsets = [0, 0, 0], sizes = [1, 8, 8], strides = [1, 1, 1]} : vector<2x8x8xf32> to vector<1x8x8xf32>
    %66 = vector.shape_cast %65 : vector<1x8x8xf32> to vector<8x8xf32>
    %c0_35 = arith.constant 0 : index
    %c1_36 = arith.constant 1 : index
    %c0_37 = arith.constant 0 : index
    %c0_38 = arith.constant 0 : index
    %67 = vector.load %arg11[%c0_35, %c1_36, %c0_37, %c0_38] : memref<2x4x8x8xf32, #tpu.memory_space<vmem>>, vector<1x1x8x8xf32>
    %68 = vector.shape_cast %67 : vector<1x1x8x8xf32> to vector<8x8xf32>
    %69 = vector.shape_cast %66 : vector<8x8xf32> to vector<1x1x8x8xf32>
    tpu.vector_store %arg11[%c0_35, %c1_36, %c0_37, %c0_38], %69 {strides = array<i32>} : memref<2x4x8x8xf32, #tpu.memory_space<vmem>>, vector<1x1x8x8xf32>,
    %70 = vector.extract_strided_slice %64 {offsets = [1, 0, 0], sizes = [1, 8, 8], strides = [1, 1, 1]} : vector<2x8x8xf32> to vector<1x8x8xf32>
    %71 = vector.shape_cast %70 : vector<1x8x8xf32> to vector<8x8xf32>
    %c1_39 = arith.constant 1 : index
    %c1_40 = arith.constant 1 : index
    %c0_41 = arith.constant 0 : index
    %c0_42 = arith.constant 0 : index
    %72 = vector.load %arg11[%c1_39, %c1_40, %c0_41, %c0_42] : memref<2x4x8x8xf32, #tpu.memory_space<vmem>>, vector<1x1x8x8xf32>
    %73 = vector.shape_cast %72 : vector<1x1x8x8xf32> to vector<8x8xf32>
    %74 = vector.shape_cast %71 : vector<8x8xf32> to vector<1x1x8x8xf32>
    tpu.vector_store %arg11[%c1_39, %c1_40, %c0_41, %c0_42], %74 {strides = array<i32>} : memref<2x4x8x8xf32, #tpu.memory_space<vmem>>, vector<1x1x8x8xf32>,
    "tpu.trace_start"() <{level = 10 : i32, message = "bqk,bkd->bqd"}> : () -> ()
    %cst_43 = arith.constant dense<0.000000e+00> : vector<2x8x8xf32>
    %75 = tpu.matmul %64, %53, %cst_43 {dimension_numbers = #tpu.dot_dimension_numbers<[2], [1], [1], [2], [0, 0, 0, 1, 1, 2], [0], [0]>} : vector<2x8x8xf32>, vector<2x8x8xf32>, vector<2x8x8xf32> -> vector<2x8x8xf32>
    "tpu.trace_stop"() : () -> ()
    %76 = vector.shape_cast %75 : vector<2x8x8xf32> to vector<16x8xf32>
    %c1_44 = arith.constant 1 : index
    %c0_45 = arith.constant 0 : index
    %c0_46 = arith.constant 0 : index
    %77 = vector.load %arg8[%c1_44, %c0_45, %c0_46] : memref<4x8x32xf32, #tpu.memory_space<vmem>>, vector<1x8x32xf32>
    %78 = vector.shape_cast %77 : vector<1x8x32xf32> to vector<8x32xf32>
    %cst_47 = arith.constant dense<0.000000e+00> : vector<16x32xf32>
    %79 = tpu.matmul %76, %78, %cst_47 {dimension_numbers = #tpu.dot_dimension_numbers<[1], [0], [0], [1], [0, 0, 1, 1], [], []>} : vector<16x8xf32>, vector<8x32xf32>, vector<16x32xf32> -> vector<16x32xf32>
    %80 = arith.addf %50, %79 : vector<16x32xf32>
    %81 = vector.extract_strided_slice %7 {offsets = [0, 0, 16], sizes = [2, 8, 8], strides = [1, 1, 1]} : vector<2x8x32xf32> to vector<2x8x8xf32>
    %82 = vector.extract_strided_slice %13 {offsets = [0, 0, 16], sizes = [2, 8, 8], strides = [1, 1, 1]} : vector<2x8x32xf32> to vector<2x8x8xf32>
    %83 = vector.extract_strided_slice %19 {offsets = [0, 0, 16], sizes = [2, 8, 8], strides = [1, 1, 1]} : vector<2x8x32xf32> to vector<2x8x8xf32>
    "tpu.trace_start"() <{level = 10 : i32, message = "bqd,bkd->bqk"}> : () -> ()
    %cst_48 = arith.constant dense<0.000000e+00> : vector<2x8x8xf32>
    %84 = tpu.matmul %81, %82, %cst_48 {dimension_numbers = #tpu.dot_dimension_numbers<[2], [2], [1], [1], [0, 0, 0, 1, 1, 1], [0], [0]>} : vector<2x8x8xf32>, vector<2x8x8xf32>, vector<2x8x8xf32> -> vector<2x8x8xf32>
    "tpu.trace_stop"() : () -> ()
    %cst_49 = arith.constant dense<0xFF800000> : vector<2x8xf32>
    %85 = vector.multi_reduction <maximumf>, %84, %cst_49 [2] : vector<2x8x8xf32> to vector<2x8xf32>
    %86 = vector.shape_cast %85 : vector<2x8xf32> to vector<2x8x1xf32>
    %87 = vector.broadcast %86 : vector<2x8x1xf32> to vector<2x8x8xf32>
    %88 = arith.subf %84, %87 : vector<2x8x8xf32>
    %89 = math.exp %88 : vector<2x8x8xf32>
    %cst_50 = arith.constant dense<0.000000e+00> : vector<2x8xf32>
    %90 = vector.multi_reduction <add>, %89, %cst_50 [2] : vector<2x8x8xf32> to vector<2x8xf32>
    %91 = vector.shape_cast %90 : vector<2x8xf32> to vector<2x8x1xf32>
    %92 = tpu.reciprocal %91 : vector<2x8x1xf32> -> vector<2x8x1xf32>
    %93 = vector.broadcast %92 : vector<2x8x1xf32> to vector<2x8x8xf32>
    %94 = arith.mulf %89, %93 : vector<2x8x8xf32>
    %95 = vector.extract_strided_slice %94 {offsets = [0, 0, 0], sizes = [1, 8, 8], strides = [1, 1, 1]} : vector<2x8x8xf32> to vector<1x8x8xf32>
    %96 = vector.shape_cast %95 : vector<1x8x8xf32> to vector<8x8xf32>
    %c0_51 = arith.constant 0 : index
    %c2 = arith.constant 2 : index
    %c0_52 = arith.constant 0 : index
    %c0_53 = arith.constant 0 : index
    %97 = vector.load %arg11[%c0_51, %c2, %c0_52, %c0_53] : memref<2x4x8x8xf32, #tpu.memory_space<vmem>>, vector<1x1x8x8xf32>
    %98 = vector.shape_cast %97 : vector<1x1x8x8xf32> to vector<8x8xf32>
    %99 = vector.shape_cast %96 : vector<8x8xf32> to vector<1x1x8x8xf32>
    tpu.vector_store %arg11[%c0_51, %c2, %c0_52, %c0_53], %99 {strides = array<i32>} : memref<2x4x8x8xf32, #tpu.memory_space<vmem>>, vector<1x1x8x8xf32>,
    %100 = vector.extract_strided_slice %94 {offsets = [1, 0, 0], sizes = [1, 8, 8], strides = [1, 1, 1]} : vector<2x8x8xf32> to vector<1x8x8xf32>
    %101 = vector.shape_cast %100 : vector<1x8x8xf32> to vector<8x8xf32>
    %c1_54 = arith.constant 1 : index
    %c2_55 = arith.constant 2 : index
    %c0_56 = arith.constant 0 : index
    %c0_57 = arith.constant 0 : index
    %102 = vector.load %arg11[%c1_54, %c2_55, %c0_56, %c0_57] : memref<2x4x8x8xf32, #tpu.memory_space<vmem>>, vector<1x1x8x8xf32>
    %103 = vector.shape_cast %102 : vector<1x1x8x8xf32> to vector<8x8xf32>
    %104 = vector.shape_cast %101 : vector<8x8xf32> to vector<1x1x8x8xf32>
    tpu.vector_store %arg11[%c1_54, %c2_55, %c0_56, %c0_57], %104 {strides = array<i32>} : memref<2x4x8x8xf32, #tpu.memory_space<vmem>>, vector<1x1x8x8xf32>,
    "tpu.trace_start"() <{level = 10 : i32, message = "bqk,bkd->bqd"}> : () -> ()
    %cst_58 = arith.constant dense<0.000000e+00> : vector<2x8x8xf32>
    %105 = tpu.matmul %94, %83, %cst_58 {dimension_numbers = #tpu.dot_dimension_numbers<[2], [1], [1], [2], [0, 0, 0, 1, 1, 2], [0], [0]>} : vector<2x8x8xf32>, vector<2x8x8xf32>, vector<2x8x8xf32> -> vector<2x8x8xf32>
    "tpu.trace_stop"() : () -> ()
    %106 = vector.shape_cast %105 : vector<2x8x8xf32> to vector<16x8xf32>
    %c2_59 = arith.constant 2 : index
    %c0_60 = arith.constant 0 : index
    %c0_61 = arith.constant 0 : index
    %107 = vector.load %arg8[%c2_59, %c0_60, %c0_61] : memref<4x8x32xf32, #tpu.memory_space<vmem>>, vector<1x8x32xf32>
    %108 = vector.shape_cast %107 : vector<1x8x32xf32> to vector<8x32xf32>
    %cst_62 = arith.constant dense<0.000000e+00> : vector<16x32xf32>
    %109 = tpu.matmul %106, %108, %cst_62 {dimension_numbers = #tpu.dot_dimension_numbers<[1], [0], [0], [1], [0, 0, 1, 1], [], []>} : vector<16x8xf32>, vector<8x32xf32>, vector<16x32xf32> -> vector<16x32xf32>
    %110 = arith.addf %80, %109 : vector<16x32xf32>
    %111 = vector.extract_strided_slice %7 {offsets = [0, 0, 24], sizes = [2, 8, 8], strides = [1, 1, 1]} : vector<2x8x32xf32> to vector<2x8x8xf32>
    %112 = vector.extract_strided_slice %13 {offsets = [0, 0, 24], sizes = [2, 8, 8], strides = [1, 1, 1]} : vector<2x8x32xf32> to vector<2x8x8xf32>
    %113 = vector.extract_strided_slice %19 {offsets = [0, 0, 24], sizes = [2, 8, 8], strides = [1, 1, 1]} : vector<2x8x32xf32> to vector<2x8x8xf32>
    "tpu.trace_start"() <{level = 10 : i32, message = "bqd,bkd->bqk"}> : () -> ()
    %cst_63 = arith.constant dense<0.000000e+00> : vector<2x8x8xf32>
    %114 = tpu.matmul %111, %112, %cst_63 {dimension_numbers = #tpu.dot_dimension_numbers<[2], [2], [1], [1], [0, 0, 0, 1, 1, 1], [0], [0]>} : vector<2x8x8xf32>, vector<2x8x8xf32>, vector<2x8x8xf32> -> vector<2x8x8xf32>
    "tpu.trace_stop"() : () -> ()
    %cst_64 = arith.constant dense<0xFF800000> : vector<2x8xf32>
    %115 = vector.multi_reduction <maximumf>, %114, %cst_64 [2] : vector<2x8x8xf32> to vector<2x8xf32>
    %116 = vector.shape_cast %115 : vector<2x8xf32> to vector<2x8x1xf32>
    %117 = vector.broadcast %116 : vector<2x8x1xf32> to vector<2x8x8xf32>
    %118 = arith.subf %114, %117 : vector<2x8x8xf32>
    %119 = math.exp %118 : vector<2x8x8xf32>
    %cst_65 = arith.constant dense<0.000000e+00> : vector<2x8xf32>
    %120 = vector.multi_reduction <add>, %119, %cst_65 [2] : vector<2x8x8xf32> to vector<2x8xf32>
    %121 = vector.shape_cast %120 : vector<2x8xf32> to vector<2x8x1xf32>
    %122 = tpu.reciprocal %121 : vector<2x8x1xf32> -> vector<2x8x1xf32>
    %123 = vector.broadcast %122 : vector<2x8x1xf32> to vector<2x8x8xf32>
    %124 = arith.mulf %119, %123 : vector<2x8x8xf32>
    %125 = vector.extract_strided_slice %124 {offsets = [0, 0, 0], sizes = [1, 8, 8], strides = [1, 1, 1]} : vector<2x8x8xf32> to vector<1x8x8xf32>
    %126 = vector.shape_cast %125 : vector<1x8x8xf32> to vector<8x8xf32>
    %c0_66 = arith.constant 0 : index
    %c3 = arith.constant 3 : index
    %c0_67 = arith.constant 0 : index
    %c0_68 = arith.constant 0 : index
    %127 = vector.load %arg11[%c0_66, %c3, %c0_67, %c0_68] : memref<2x4x8x8xf32, #tpu.memory_space<vmem>>, vector<1x1x8x8xf32>
    %128 = vector.shape_cast %127 : vector<1x1x8x8xf32> to vector<8x8xf32>
    %129 = vector.shape_cast %126 : vector<8x8xf32> to vector<1x1x8x8xf32>
    tpu.vector_store %arg11[%c0_66, %c3, %c0_67, %c0_68], %129 {strides = array<i32>} : memref<2x4x8x8xf32, #tpu.memory_space<vmem>>, vector<1x1x8x8xf32>,
    %130 = vector.extract_strided_slice %124 {offsets = [1, 0, 0], sizes = [1, 8, 8], strides = [1, 1, 1]} : vector<2x8x8xf32> to vector<1x8x8xf32>
    %131 = vector.shape_cast %130 : vector<1x8x8xf32> to vector<8x8xf32>
    %c1_69 = arith.constant 1 : index
    %c3_70 = arith.constant 3 : index
    %c0_71 = arith.constant 0 : index
    %c0_72 = arith.constant 0 : index
    %132 = vector.load %arg11[%c1_69, %c3_70, %c0_71, %c0_72] : memref<2x4x8x8xf32, #tpu.memory_space<vmem>>, vector<1x1x8x8xf32>
    %133 = vector.shape_cast %132 : vector<1x1x8x8xf32> to vector<8x8xf32>
    %134 = vector.shape_cast %131 : vector<8x8xf32> to vector<1x1x8x8xf32>
    tpu.vector_store %arg11[%c1_69, %c3_70, %c0_71, %c0_72], %134 {strides = array<i32>} : memref<2x4x8x8xf32, #tpu.memory_space<vmem>>, vector<1x1x8x8xf32>,
    "tpu.trace_start"() <{level = 10 : i32, message = "bqk,bkd->bqd"}> : () -> ()
    %cst_73 = arith.constant dense<0.000000e+00> : vector<2x8x8xf32>
    %135 = tpu.matmul %124, %113, %cst_73 {dimension_numbers = #tpu.dot_dimension_numbers<[2], [1], [1], [2], [0, 0, 0, 1, 1, 2], [0], [0]>} : vector<2x8x8xf32>, vector<2x8x8xf32>, vector<2x8x8xf32> -> vector<2x8x8xf32>
    "tpu.trace_stop"() : () -> ()
    %136 = vector.shape_cast %135 : vector<2x8x8xf32> to vector<16x8xf32>
    %c3_74 = arith.constant 3 : index
    %c0_75 = arith.constant 0 : index
    %c0_76 = arith.constant 0 : index
    %137 = vector.load %arg8[%c3_74, %c0_75, %c0_76] : memref<4x8x32xf32, #tpu.memory_space<vmem>>, vector<1x8x32xf32>
    %138 = vector.shape_cast %137 : vector<1x8x32xf32> to vector<8x32xf32>
    %cst_77 = arith.constant dense<0.000000e+00> : vector<16x32xf32>
    %139 = tpu.matmul %136, %138, %cst_77 {dimension_numbers = #tpu.dot_dimension_numbers<[1], [0], [0], [1], [0, 0, 1, 1], [], []>} : vector<16x8xf32>, vector<8x32xf32>, vector<16x32xf32> -> vector<16x32xf32>
    %140 = arith.addf %110, %139 : vector<16x32xf32>
    %c0_78 = arith.constant 0 : index
    %c0_79 = arith.constant 0 : index
    %141 = vector.load %arg9[%c0_78, %c0_79] : memref<1x32xf32, #tpu.memory_space<vmem>>, vector<1x32xf32>
    %142 = vector.broadcast %141 : vector<1x32xf32> to vector<16x32xf32>
    %143 = arith.addf %140, %142 : vector<16x32xf32>
    %144 = vector.shape_cast %143 : vector<16x32xf32> to vector<2x8x32xf32>
    %c0_80 = arith.constant 0 : index
    %c0_81 = arith.constant 0 : index
    %c0_82 = arith.constant 0 : index
    %145 = vector.load %arg10[%c0_80, %c0_81, %c0_82] : memref<2x8x32xf32, #tpu.memory_space<vmem>>, vector<2x8x32xf32>
    tpu.vector_store %arg10[%c0_80, %c0_81, %c0_82], %144 {strides = array<i32>} : memref<2x8x32xf32, #tpu.memory_space<vmem>>, vector<2x8x32xf32>,
    return
  }
  func.func @transform_0(%arg0: i32) -> (i32, i32, i32) {
    %c0_i32 = arith.constant 0 : i32
    %c0_i32_0 = arith.constant 0 : i32
    %c0_i32_1 = arith.constant 0 : i32
    return %arg0, %c0_i32, %c0_i32_0 : i32, i32, i32
  }
  func.func @transform_1(%arg0: i32) -> (i32, i32) {
    %c0_i32 = arith.constant 0 : i32
    %c0_i32_0 = arith.constant 0 : i32
    %c0_i32_1 = arith.constant 0 : i32
    return %c0_i32, %c0_i32_0 : i32, i32
  }
  func.func @transform_2(%arg0: i32) -> (i32, i32) {
    %c0_i32 = arith.constant 0 : i32
    %c0_i32_0 = arith.constant 0 : i32
    %c0_i32_1 = arith.constant 0 : i32
    return %c0_i32, %c0_i32_0 : i32, i32
  }
  func.func @transform_3(%arg0: i32) -> (i32, i32) {
    %c0_i32 = arith.constant 0 : i32
    %c0_i32_0 = arith.constant 0 : i32
    %c0_i32_1 = arith.constant 0 : i32
    return %c0_i32, %c0_i32_0 : i32, i32
  }
  func.func @transform_4(%arg0: i32) -> (i32, i32) {
    %c0_i32 = arith.constant 0 : i32
    %c0_i32_0 = arith.constant 0 : i32
    %c0_i32_1 = arith.constant 0 : i32
    return %c0_i32, %c0_i32_0 : i32, i32
  }
  func.func @transform_5(%arg0: i32) -> (i32, i32) {
    %c0_i32 = arith.constant 0 : i32
    %c0_i32_0 = arith.constant 0 : i32
    %c0_i32_1 = arith.constant 0 : i32
    return %c0_i32, %c0_i32_0 : i32, i32
  }
  func.func @transform_6(%arg0: i32) -> (i32, i32) {
    %c0_i32 = arith.constant 0 : i32
    %c0_i32_0 = arith.constant 0 : i32
    %c0_i32_1 = arith.constant 0 : i32
    return %c0_i32, %c0_i32_0 : i32, i32
  }
  func.func @transform_7(%arg0: i32) -> (i32, i32, i32) {
    %c0_i32 = arith.constant 0 : i32
    %c0_i32_0 = arith.constant 0 : i32
    %c0_i32_1 = arith.constant 0 : i32
    %c0_i32_2 = arith.constant 0 : i32
    return %c0_i32, %c0_i32_0, %c0_i32_1 : i32, i32, i32
  }
  func.func @transform_8(%arg0: i32) -> (i32, i32) {
    %c0_i32 = arith.constant 0 : i32
    %c0_i32_0 = arith.constant 0 : i32
    %c0_i32_1 = arith.constant 0 : i32
    return %c0_i32, %c0_i32_0 : i32, i32
  }
  func.func @transform_9(%arg0: i32) -> (i32, i32, i32) {
    %c0_i32 = arith.constant 0 : i32
    %c0_i32_0 = arith.constant 0 : i32
    %c0_i32_1 = arith.constant 0 : i32
    return %arg0, %c0_i32, %c0_i32_0 : i32, i32, i32
  }
  func.func @transform_10(%arg0: i32) -> (i32, i32, i32, i32) {
    %c0_i32 = arith.constant 0 : i32
    %c0_i32_0 = arith.constant 0 : i32
    %c0_i32_1 = arith.constant 0 : i32
    %c0_i32_2 = arith.constant 0 : i32
    return %arg0, %c0_i32, %c0_i32_0, %c0_i32_1 : i32, i32, i32, i32
  }
}

</mosaic_0001>

<llo_original>
// kernel: tpu_custom_call.1
$region0: #{tpu_custom_call.1}
  #allocation0 [shape = 'u32[]', space=smem, size = 0x4, offset = 0x4, fixed_abs, tag = 'smem constant byte address 0x4 - core index']
  #allocation1 [shape = 'u32[72,128]{1,0:T(1,128)}', space=vmem, size = 0x9000, scoped, tag = 'internal scratch']
  %s0 = inlined_call_operand.hbm [shape: f32[2,8,32], index: 0, kind: input, shape index: {}]
  %s1 = inlined_call_operand.hbm [shape: f32[32,32], index: 1, kind: input, shape index: {}]
  %s2 = inlined_call_operand.vmem [shape: f32[1,32], index: 2, kind: input, shape index: {}]
  %s3 = inlined_call_operand.hbm [shape: f32[32,32], index: 3, kind: input, shape index: {}]
  %s4 = inlined_call_operand.vmem [shape: f32[1,32], index: 4, kind: input, shape index: {}]
  %s5 = inlined_call_operand.hbm [shape: f32[32,32], index: 5, kind: input, shape index: {}]
  %s6 = inlined_call_operand.vmem [shape: f32[1,32], index: 6, kind: input, shape index: {}]
  %s7 = inlined_call_operand.hbm [shape: f32[4,8,32], index: 7, kind: input, shape index: {}]
  %s8 = inlined_call_operand.vmem [shape: f32[1,32], index: 8, kind: input, shape index: {}]
  %s9 = inlined_call_operand.hbm [shape: f32[2,8,32], index: 9, kind: output, shape index: {0}]
  %s10 = inlined_call_operand.hbm [shape: f32[2,4,8,8], index: 10, kind: output, shape index: {1}]
  %11 = xla_tuple %s9, %s10
  %s12 = sld [smem:[#allocation0]]
  $region74: #{tpu_custom_call.1} parent=0
    _
  %s14 = ssub.s32 1, %s12
  %s15 = scalar_select 0, %s14, %s12
  $region1: #{tpu_custom_call.1} parent=0
    #allocation2 [shape = 'u8[8192]{0}', space=vmem, size = 0x2000, scoped, tag = 'input window, operand 0, single buffered']
    #allocation3 [shape = 's32[1]{0}', space=sflag, size = 0x4, scoped, tag = 'scoped memory for tpu_custom_call.1']
    #allocation4 [shape = 's32[1]{0}', space=sflag, size = 0x4, scoped, tag = 'scoped memory for tpu_custom_call.1']
    #allocation5 [shape = 'u8[16384]{0}', space=vmem, size = 0x4000, scoped, tag = 'input window, operand 1, single buffered']
    #allocation6 [shape = 's32[1]{0}', space=sflag, size = 0x4, scoped, tag = 'scoped memory for tpu_custom_call.1']
    #allocation7 [shape = 'u8[16384]{0}', space=vmem, size = 0x4000, scoped, tag = 'input window, operand 3, single buffered']
    #allocation8 [shape = 'u8[16384]{0}', space=vmem, size = 0x4000, scoped, tag = 'input window, operand 5, single buffered']
    #allocation9 [shape = 's32[1]{0}', space=sflag, size = 0x4, scoped, tag = 'scoped memory for tpu_custom_call.1']
    #allocation10 [shape = 'u8[16384]{0}', space=vmem, size = 0x4000, scoped, tag = 'input window, operand 7, single buffered']
    #allocation11 [shape = 'u8[8192]{0}', space=vmem, size = 0x2000, scoped, tag = 'output window, operand 0, single buffered']
    #allocation12 [shape = 'u8[32768]{0}', space=vmem, size = 0x8000, scoped, tag = 'output window, operand 1, single buffered']
    #allocation13 [shape = 's32[1]{0}', space=sflag, size = 0x4, scoped, tag = 'scoped memory for tpu_custom_call.1']
    %16 = vsyncpa [#allocation3], 0
    %17 = vsyncpa [#allocation6], 0
    %18 = vsyncpa [#allocation9], 0
    %19 = vsyncpa [#allocation4], 0
    %20 = vsyncpa [#allocation13], 0
    // Predicated region
    $region2: #{tpu_custom_call.1} parent=1 // pred_check
      _
    $region3: #{tpu_custom_call.1} parent=1 // pred_check_branch
      %22 = sbr.rel (0) target = $region5
    $region4: #{tpu_custom_call.1} parent=1 // pred_region
      %24 = vsyncadd [#allocation3], 0
      %s25 = sshll.u32 %s0, 4
      %s26 = int_to_ptr.hbm [resolvable:$true] %s25
      %s27 = sshll.u32 [#allocation2], 4
      %s28 = int_to_ptr.vmem [resolvable:$true] %s27
      %33 = dma.hbm_to_vmem [thread:$0]  %s26, 256, %s28, [#allocation3], 128, 128, 8
    $region5: #{tpu_custom_call.1} parent=1 // pred_fallthru
      _
    // Predicated region
    $region6: #{tpu_custom_call.1} parent=1 // pred_check
      _
    $region7: #{tpu_custom_call.1} parent=1 // pred_check_branch
      %35 = sbr.rel (0) target = $region9
    $region8: #{tpu_custom_call.1} parent=1 // pred_region
      %37 = vsyncadd [#allocation6], 0
      %s38 = sshll.u32 %s1, 4
      %s39 = int_to_ptr.hbm [resolvable:$true] %s38
      %s40 = sshll.u32 [#allocation5], 4
      %s41 = int_to_ptr.vmem [resolvable:$true] %s40
      %46 = dma.hbm_to_vmem [thread:$0]  %s39, 512, %s41, [#allocation6], 128, 128, 8
    $region9: #{tpu_custom_call.1} parent=1 // pred_fallthru
      _
    // Predicated region
    $region10: #{tpu_custom_call.1} parent=1 // pred_check
      _
    $region11: #{tpu_custom_call.1} parent=1 // pred_check_branch
      %48 = sbr.rel (0) target = $region13
    $region12: #{tpu_custom_call.1} parent=1 // pred_region
      _
    $region13: #{tpu_custom_call.1} parent=1 // pred_fallthru
      _
    // Predicated region
    $region14: #{tpu_custom_call.1} parent=1 // pred_check
      _
    $region15: #{tpu_custom_call.1} parent=1 // pred_check_branch
      %50 = sbr.rel (0) target = $region17
    $region16: #{tpu_custom_call.1} parent=1 // pred_region
      %52 = vsyncadd [#allocation6], 0
      %s53 = sshll.u32 %s3, 4
      %s54 = int_to_ptr.hbm [resolvable:$true] %s53
      %s55 = sshll.u32 [#allocation7], 4
      %s56 = int_to_ptr.vmem [resolvable:$true] %s55
      %61 = dma.hbm_to_vmem [thread:$0]  %s54, 512, %s56, [#allocation6], 128, 128, 8
    $region17: #{tpu_custom_call.1} parent=1 // pred_fallthru
      _
    // Predicated region
    $region18: #{tpu_custom_call.1} parent=1 // pred_check
      _
    $region19: #{tpu_custom_call.1} parent=1 // pred_check_branch
      %63 = sbr.rel (0) target = $region21
    $region20: #{tpu_custom_call.1} parent=1 // pred_region
      _
    $region21: #{tpu_custom_call.1} parent=1 // pred_fallthru
      _
    // Predicated region
    $region22: #{tpu_custom_call.1} parent=1 // pred_check
      _
    $region23: #{tpu_custom_call.1} parent=1 // pred_check_branch
      %65 = sbr.rel (0) target = $region25
    $region24: #{tpu_custom_call.1} parent=1 // pred_region
      %67 = vsyncadd [#allocation9], 0
      %s68 = sshll.u32 %s5, 4
      %s69 = int_to_ptr.hbm [resolvable:$true] %s68
      %s70 = sshll.u32 [#allocation8], 4
      %s71 = int_to_ptr.vmem [resolvable:$true] %s70
      %76 = dma.hbm_to_vmem [thread:$0]  %s69, 512, %s71, [#allocation9], 128, 128, 8
    $region25: #{tpu_custom_call.1} parent=1 // pred_fallthru
      _
    // Predicated region
    $region26: #{tpu_custom_call.1} parent=1 // pred_check
      _
    $region27: #{tpu_custom_call.1} parent=1 // pred_check_branch
      %78 = sbr.rel (0) target = $region29
    $region28: #{tpu_custom_call.1} parent=1 // pred_region
      _
    $region29: #{tpu_custom_call.1} parent=1 // pred_fallthru
      _
    // Predicated region
    $region30: #{tpu_custom_call.1} parent=1 // pred_check
      _
    $region31: #{tpu_custom_call.1} parent=1 // pred_check_branch
      %80 = sbr.rel (0) target = $region33
    $region32: #{tpu_custom_call.1} parent=1 // pred_region
      %82 = vsyncadd [#allocation9], 0
      %s83 = sshll.u32 %s7, 4
      %s84 = int_to_ptr.hbm [resolvable:$true] %s83
      %s85 = sshll.u32 [#allocation10], 4
      %s86 = int_to_ptr.vmem [resolvable:$true] %s85
      %91 = dma.hbm_to_vmem [thread:$0]  %s84, 512, %s86, [#allocation9], 128, 128, 8
    $region33: #{tpu_custom_call.1} parent=1 // pred_fallthru
      _
    // Predicated region
    $region34: #{tpu_custom_call.1} parent=1 // pred_check
      _
    $region35: #{tpu_custom_call.1} parent=1 // pred_check_branch
      %93 = sbr.rel (0) target = $region37
    $region36: #{tpu_custom_call.1} parent=1 // pred_region
      _
    $region37: #{tpu_custom_call.1} parent=1 // pred_fallthru
      _
    // Predicated region
    $region38: #{tpu_custom_call.1} parent=1 // pred_check
      _
    $region39: #{tpu_custom_call.1} parent=1 // pred_check_branch
      %95 = sbr.rel (0) target = $region41
    $region40: #{tpu_custom_call.1} parent=1 // pred_region
      %97 = dma.done [#allocation3], 256
    $region41: #{tpu_custom_call.1} parent=1 // pred_fallthru
      _
    // Predicated region
    $region42: #{tpu_custom_call.1} parent=1 // pred_check
      _
    $region43: #{tpu_custom_call.1} parent=1 // pred_check_branch
      %99 = sbr.rel (0) target = $region45
    $region44: #{tpu_custom_call.1} parent=1 // pred_region
      %101 = dma.done [#allocation6], 512
    $region45: #{tpu_custom_call.1} parent=1 // pred_fallthru
      _
    // Predicated region
    $region46: #{tpu_custom_call.1} parent=1 // pred_check
      _
    $region47: #{tpu_custom_call.1} parent=1 // pred_check_branch
      %103 = sbr.rel (0) target = $region49
    $region48: #{tpu_custom_call.1} parent=1 // pred_region
      %105 = dma.done [#allocation6], 512
    $region49: #{tpu_custom_call.1} parent=1 // pred_fallthru
      _
    // Predicated region
    $region50: #{tpu_custom_call.1} parent=1 // pred_check
      _
    $region51: #{tpu_custom_call.1} parent=1 // pred_check_branch
      %107 = sbr.rel (0) target = $region53
    $region52: #{tpu_custom_call.1} parent=1 // pred_region
      %109 = dma.done [#allocation9], 512
    $region53: #{tpu_custom_call.1} parent=1 // pred_fallthru
      _
    // Predicated region
    $region54: #{tpu_custom_call.1} parent=1 // pred_check
      _
    $region55: #{tpu_custom_call.1} parent=1 // pred_check_branch
      %111 = sbr.rel (0) target = $region57
    $region56: #{tpu_custom_call.1} parent=1 // pred_region
      %113 = dma.done [#allocation9], 512
    $region57: #{tpu_custom_call.1} parent=1 // pred_fallthru
      _
    %v114 = vld [vmem:[#allocation2] sm:$0xff]
    %v115 = vld [vmem:[#allocation2 + $0x8] sm:$0xff]
    %v116 = vld [vmem:[#allocation5] sm:$0xff]
    %v117 = vld [vmem:[#allocation5 + $0x8] sm:$0xff]
    %v118 = vld [vmem:[#allocation5 + $0x10] sm:$0xff]
    %v119 = vld [vmem:[#allocation5 + $0x18] sm:$0xff]
    %v120 = vld [vmem:[%s2] sm:$0x1]
    %v122 = vperm.slane %v120, 0
    %vm124 = vcmask 261120
    %v126 = vsel %vm124, %v114, 0
    %v129 = vsel %vm124, %v115, 0
    %131 = vmatpush.msra.mxu0 0.0
    %132 = vmatpush.msra.mxu0 0.0
    %133 = vmatpush.msra.mxu0 0.0
    %134 = vmatpush.msra.mxu0 0.0
    %135 = vmatpush.msra.mxu0 0.0
    %136 = vmatpush.msra.mxu0 0.0
    %137 = vmatpush.msra.mxu0 0.0
    %138 = vmatpush.msra.mxu0 0.0
    %139 = vmatpush.msra.mxu0 0.0
    %140 = vmatpush.msra.mxu0 0.0
    %141 = vmatpush.msra.mxu0 0.0
    %142 = vmatpush.msra.mxu0 0.0
    %143 = vmatpush.msra.mxu0 %v119
    %144 = vmatpush.msra.mxu0 %v118
    %145 = vmatpush.msra.mxu0 %v117
    %146 = vmatpush.msra.mxu0 %v116
    %147 = vmatmul.f32.gmra.mxu0 %v126
    %v148 = vpop.f32.mrf.mxu0
    %v149 = vadd.f32 %v122, %v148
    %150 = vmatmul.f32.gmra.mxu0 %v129
    %v151 = vpop.f32.mrf.mxu0
    %v152 = vadd.f32 %v122, %v151
    %153 = vdwg.mxu0
    %v154 = vld [vmem:[#allocation7] sm:$0xff]
    %v155 = vld [vmem:[#allocation7 + $0x8] sm:$0xff]
    %v156 = vld [vmem:[#allocation7 + $0x10] sm:$0xff]
    %v157 = vld [vmem:[#allocation7 + $0x18] sm:$0xff]
    %v158 = vld [vmem:[%s4] sm:$0x1]
    %v160 = vperm.slane %v158, 0
    %162 = vmatpush.msra.mxu0 0.0
    %163 = vmatpush.msra.mxu0 0.0
    %164 = vmatpush.msra.mxu0 0.0
    %165 = vmatpush.msra.mxu0 0.0
    %166 = vmatpush.msra.mxu0 0.0
    %167 = vmatpush.msra.mxu0 0.0
    %168 = vmatpush.msra.mxu0 0.0
    %169 = vmatpush.msra.mxu0 0.0
    %170 = vmatpush.msra.mxu0 0.0
    %171 = vmatpush.msra.mxu0 0.0
    %172 = vmatpush.msra.mxu0 0.0
    %173 = vmatpush.msra.mxu0 0.0
    %174 = vmatpush.msra.mxu0 %v157
    %175 = vmatpush.msra.mxu0 %v156
    %176 = vmatpush.msra.mxu0 %v155
    %177 = vmatpush.msra.mxu0 %v154
    %178 = vmatmul.f32.gmra.mxu0 %v126
    %v179 = vpop.f32.mrf.mxu0
    %v180 = vadd.f32 %v160, %v179
    %181 = vmatmul.f32.gmra.mxu0 %v129
    %v182 = vpop.f32.mrf.mxu0
    %v183 = vadd.f32 %v160, %v182
    %184 = vdwg.mxu0
    %v185 = vld [vmem:[#allocation8] sm:$0xff]
    %v186 = vld [vmem:[#allocation8 + $0x8] sm:$0xff]
    %v187 = vld [vmem:[#allocation8 + $0x10] sm:$0xff]
    %v188 = vld [vmem:[#allocation8 + $0x18] sm:$0xff]
    %v189 = vld [vmem:[%s6] sm:$0x1]
    %v191 = vperm.slane %v189, 0
    %193 = vmatpush.msra.mxu0 0.0
    %194 = vmatpush.msra.mxu0 0.0
    %195 = vmatpush.msra.mxu0 0.0
    %196 = vmatpush.msra.mxu0 0.0
    %197 = vmatpush.msra.mxu0 0.0
    %198 = vmatpush.msra.mxu0 0.0
    %199 = vmatpush.msra.mxu0 0.0
    %200 = vmatpush.msra.mxu0 0.0
    %201 = vmatpush.msra.mxu0 0.0
    %202 = vmatpush.msra.mxu0 0.0
    %203 = vmatpush.msra.mxu0 0.0
    %204 = vmatpush.msra.mxu0 0.0
    %205 = vmatpush.msra.mxu0 %v188
    %206 = vmatpush.msra.mxu0 %v187
    %207 = vmatpush.msra.mxu0 %v186
    %208 = vmatpush.msra.mxu0 %v185
    %209 = vmatmul.f32.gmra.mxu0 %v126
    %v210 = vpop.f32.mrf.mxu0
    %v211 = vadd.f32 %v191, %v210
    %212 = vmatmul.f32.gmra.mxu0 %v129
    %v213 = vpop.f32.mrf.mxu0
    %v214 = vadd.f32 %v191, %v213
    %215 = vdwg.mxu0
    %vm216 = vcmask 64512
    %v218 = vsel %vm216, %v149, 0
    %v221 = vsel %vm216, %v180, 0
    %223 = vmatpush.xpose.msra.mxu0 0.0
    %224 = vmatpush.xpose.msra.mxu0 0.0
    %225 = vmatpush.xpose.msra.mxu0 0.0
    %226 = vmatpush.xpose.msra.mxu0 0.0
    %227 = vmatpush.xpose.msra.mxu0 0.0
    %228 = vmatpush.xpose.msra.mxu0 0.0
    %229 = vmatpush.xpose.msra.mxu0 0.0
    %230 = vmatpush.xpose.msra.mxu0 0.0
    %231 = vmatpush.xpose.msra.mxu0 0.0
    %232 = vmatpush.xpose.msra.mxu0 0.0
    %233 = vmatpush.xpose.msra.mxu0 0.0
    %234 = vmatpush.xpose.msra.mxu0 0.0
    %235 = vmatpush.xpose.msra.mxu0 0.0
    %236 = vmatpush.xpose.msra.mxu0 0.0
    %237 = vmatpush.xpose.msra.mxu0 0.0
    %238 = vmatpush.xpose.msra.mxu0 %v221
    %239 = vmatmul.f32.gmra.mxu0 %v218
    %v240 = vpop.f32.mrf.mxu0
    %v241 = vadd.f32 0.0, %v240
    %242 = vdwg.mxu0
    %v244 = vsel %vm216, %v152, 0
    %v247 = vsel %vm216, %v183, 0
    %249 = vmatpush.xpose.msra.mxu0 0.0
    %250 = vmatpush.xpose.msra.mxu0 0.0
    %251 = vmatpush.xpose.msra.mxu0 0.0
    %252 = vmatpush.xpose.msra.mxu0 0.0
    %253 = vmatpush.xpose.msra.mxu0 0.0
    %254 = vmatpush.xpose.msra.mxu0 0.0
    %255 = vmatpush.xpose.msra.mxu0 0.0
    %256 = vmatpush.xpose.msra.mxu0 0.0
    %257 = vmatpush.xpose.msra.mxu0 0.0
    %258 = vmatpush.xpose.msra.mxu0 0.0
    %259 = vmatpush.xpose.msra.mxu0 0.0
    %260 = vmatpush.xpose.msra.mxu0 0.0
    %261 = vmatpush.xpose.msra.mxu0 0.0
    %262 = vmatpush.xpose.msra.mxu0 0.0
    %263 = vmatpush.xpose.msra.mxu0 0.0
    %264 = vmatpush.xpose.msra.mxu0 %v247
    %265 = vmatmul.f32.gmra.mxu0 %v244
    %v266 = vpop.f32.mrf.mxu0
    %v267 = vadd.f32 0.0, %v266
    %268 = vdwg.mxu0
    %v269 = vsel %vm216, %v241, -inf
    %270 = vmax.xlane.f32.xlu0 %v269
    %v271 = vpop.xlane.xlu0 %270
    %v272 = vsel %vm216, %v267, -inf
    %273 = vmax.xlane.f32.xlu0 %v272
    %v274 = vpop.xlane.xlu0 %273
    %v275 = vsub.f32 %v241, %v271
    %v276 = vsub.f32 %v267, %v274
    %v277 = vmul.f32 %v275, 1.442695
    %v278 = vpow.pop %v277
    %v279 = vmul.f32 %v276, 1.442695
    %v280 = vpow.pop %v279
    %v281 = vsel %vm216, %v278, 0.0
    %282 = vadd.xlane.f32.xlu0 %v281
    %v283 = vpop.xlane.xlu0 %282
    %v284 = vsel %vm216, %v280, 0.0
    %285 = vadd.xlane.f32.xlu0 %v284
    %v286 = vpop.xlane.xlu0 %285
    %v287 = vrcp.pop %v283
    %v288 = vmul.f32 %v283, %v287
    %v289 = vsub.f32 1.0, %v288
    %v290 = vmul.f32 %v287, %v289
    %v291 = vadd.f32 %v287, %v290
    %vm292 = vweird.f32 %v283
    %vm293 = vweird.f32 %v287
    %vm294 = vmor %vm292, %vm293
    %v295 = vsel %vm294, %v287, %v291
    %v296 = vand.u32 2147483647, %v283
    %vm297 = vcmp.eq.f32.partialorder %v296, 8.507059e+37
    %v298 = vand.u32 %v283, 2147483648
    %v299 = vor.u32 1.1754944e-38, %v298
    %v300 = vsel %vm297, %v299, %v295
    %v301 = vrcp.pop %v286
    %v302 = vmul.f32 %v286, %v301
    %v303 = vsub.f32 1.0, %v302
    %v304 = vmul.f32 %v301, %v303
    %v305 = vadd.f32 %v301, %v304
    %vm306 = vweird.f32 %v286
    %vm307 = vweird.f32 %v301
    %vm308 = vmor %vm306, %vm307
    %v309 = vsel %vm308, %v301, %v305
    %v310 = vand.u32 2147483647, %v286
    %vm311 = vcmp.eq.f32.partialorder %v310, 8.507059e+37
    %v312 = vand.u32 %v286, 2147483648
    %v313 = vor.u32 1.1754944e-38, %v312
    %v314 = vsel %vm311, %v313, %v309
    %v315 = vmul.f32 %v278, %v300
    %v316 = vmul.f32 %v280, %v314
    %317 = vst.msk [vmem:[#allocation12] sm:$0xff] %vm216, %v315
    %s318 = scalar_lea.vmem [#allocation12], 32
    %319 = vst.msk [vmem:[%s318] sm:$0xff] %vm216, %v316
    %v321 = vsel %vm216, %v315, 0
    %323 = vmatpush.msra.mxu0 0.0
    %324 = vmatpush.msra.mxu0 0.0
    %325 = vmatpush.msra.mxu0 0.0
    %326 = vmatpush.msra.mxu0 0.0
    %327 = vmatpush.msra.mxu0 0.0
    %328 = vmatpush.msra.mxu0 0.0
    %329 = vmatpush.msra.mxu0 0.0
    %330 = vmatpush.msra.mxu0 0.0
    %331 = vmatpush.msra.mxu0 0.0
    %332 = vmatpush.msra.mxu0 0.0
    %333 = vmatpush.msra.mxu0 0.0
    %334 = vmatpush.msra.mxu0 0.0
    %335 = vmatpush.msra.mxu0 0.0
    %336 = vmatpush.msra.mxu0 0.0
    %337 = vmatpush.msra.mxu0 0.0
    %338 = vmatpush.msra.mxu0 %v211
    %339 = vmatmul.f32.gmra.mxu0 %v321
    %v340 = vpop.f32.mrf.mxu0
    %v341 = vadd.f32 0.0, %v340
    %342 = vdwg.mxu0
    %v344 = vsel %vm216, %v316, 0
    %346 = vmatpush.msra.mxu0 0.0
    %347 = vmatpush.msra.mxu0 0.0
    %348 = vmatpush.msra.mxu0 0.0
    %349 = vmatpush.msra.mxu0 0.0
    %350 = vmatpush.msra.mxu0 0.0
    %351 = vmatpush.msra.mxu0 0.0
    %352 = vmatpush.msra.mxu0 0.0
    %353 = vmatpush.msra.mxu0 0.0
    %354 = vmatpush.msra.mxu0 0.0
    %355 = vmatpush.msra.mxu0 0.0
    %356 = vmatpush.msra.mxu0 0.0
    %357 = vmatpush.msra.mxu0 0.0
    %358 = vmatpush.msra.mxu0 0.0
    %359 = vmatpush.msra.mxu0 0.0
    %360 = vmatpush.msra.mxu0 0.0
    %361 = vmatpush.msra.mxu0 %v214
    %362 = vmatmul.f32.gmra.mxu0 %v344
    %v363 = vpop.f32.mrf.mxu0
    %v364 = vadd.f32 0.0, %v363
    %365 = vdwg.mxu0
    %v366 = vld [vmem:[#allocation10] sm:$0xff]
    %367 = vrot.lane.b32.xlu0 %v149, 120
    %v368 = vpop.permute.xlu0 %367
    %369 = vrot.lane.b32.xlu0 %v180, 120
    %v370 = vpop.permute.xlu0 %369
    %v371 = vsel %vm216, %v368, 0
    %v373 = vsel %vm216, %v370, 0
    %375 = vmatpush.xpose.msra.mxu0 0.0
    %376 = vmatpush.xpose.msra.mxu0 0.0
    %377 = vmatpush.xpose.msra.mxu0 0.0
    %378 = vmatpush.xpose.msra.mxu0 0.0
    %379 = vmatpush.xpose.msra.mxu0 0.0
    %380 = vmatpush.xpose.msra.mxu0 0.0
    %381 = vmatpush.xpose.msra.mxu0 0.0
    %382 = vmatpush.xpose.msra.mxu0 0.0
    %383 = vmatpush.xpose.msra.mxu0 0.0
    %384 = vmatpush.xpose.msra.mxu0 0.0
    %385 = vmatpush.xpose.msra.mxu0 0.0
    %386 = vmatpush.xpose.msra.mxu0 0.0
    %387 = vmatpush.xpose.msra.mxu0 0.0
    %388 = vmatpush.xpose.msra.mxu0 0.0
    %389 = vmatpush.xpose.msra.mxu0 0.0
    %390 = vmatpush.xpose.msra.mxu0 %v373
    %391 = vmatmul.f32.gmra.mxu0 %v371
    %v392 = vpop.f32.mrf.mxu0
    %v393 = vadd.f32 0.0, %v392
    %394 = vdwg.mxu0
    %395 = vrot.lane.b32.xlu0 %v152, 120
    %v396 = vpop.permute.xlu0 %395
    %397 = vrot.lane.b32.xlu0 %v183, 120
    %v398 = vpop.permute.xlu0 %397
    %v399 = vsel %vm216, %v396, 0
    %v401 = vsel %vm216, %v398, 0
    %403 = vmatpush.xpose.msra.mxu0 0.0
    %404 = vmatpush.xpose.msra.mxu0 0.0
    %405 = vmatpush.xpose.msra.mxu0 0.0
    %406 = vmatpush.xpose.msra.mxu0 0.0
    %407 = vmatpush.xpose.msra.mxu0 0.0
    %408 = vmatpush.xpose.msra.mxu0 0.0
    %409 = vmatpush.xpose.msra.mxu0 0.0
    %410 = vmatpush.xpose.msra.mxu0 0.0
    %411 = vmatpush.xpose.msra.mxu0 0.0
    %412 = vmatpush.xpose.msra.mxu0 0.0
    %413 = vmatpush.xpose.msra.mxu0 0.0
    %414 = vmatpush.xpose.msra.mxu0 0.0
    %415 = vmatpush.xpose.msra.mxu0 0.0
    %416 = vmatpush.xpose.msra.mxu0 0.0
    %417 = vmatpush.xpose.msra.mxu0 0.0
    %418 = vmatpush.xpose.msra.mxu0 %v401
    %419 = vmatmul.f32.gmra.mxu0 %v399
    %v420 = vpop.f32.mrf.mxu0
    %v421 = vadd.f32 0.0, %v420
    %422 = vdwg.mxu0
    %v423 = vsel %vm216, %v393, -inf
    %424 = vmax.xlane.f32.xlu0 %v423
    %v425 = vpop.xlane.xlu0 %424
    %v426 = vsel %vm216, %v421, -inf
    %427 = vmax.xlane.f32.xlu0 %v426
    %v428 = vpop.xlane.xlu0 %427
    %v429 = vsub.f32 %v393, %v425
    %v430 = vsub.f32 %v421, %v428
    %v431 = vmul.f32 %v429, 1.442695
    %v432 = vpow.pop %v431
    %v433 = vmul.f32 %v430, 1.442695
    %v434 = vpow.pop %v433
    %v435 = vsel %vm216, %v432, 0.0
    %436 = vadd.xlane.f32.xlu0 %v435
    %v437 = vpop.xlane.xlu0 %436
    %v438 = vsel %vm216, %v434, 0.0
    %439 = vadd.xlane.f32.xlu0 %v438
    %v440 = vpop.xlane.xlu0 %439
    %v441 = vrcp.pop %v437
    %v442 = vmul.f32 %v437, %v441
    %v443 = vsub.f32 1.0, %v442
    %v444 = vmul.f32 %v441, %v443
    %v445 = vadd.f32 %v441, %v444
    %vm446 = vweird.f32 %v437
    %vm447 = vweird.f32 %v441
    %vm448 = vmor %vm446, %vm447
    %v449 = vsel %vm448, %v441, %v445
    %v450 = vand.u32 2147483647, %v437
    %vm451 = vcmp.eq.f32.partialorder %v450, 8.507059e+37
    %v452 = vand.u32 %v437, 2147483648
    %v453 = vor.u32 1.1754944e-38, %v452
    %v454 = vsel %vm451, %v453, %v449
    %v455 = vrcp.pop %v440
    %v456 = vmul.f32 %v440, %v455
    %v457 = vsub.f32 1.0, %v456
    %v458 = vmul.f32 %v455, %v457
    %v459 = vadd.f32 %v455, %v458
    %vm460 = vweird.f32 %v440
    %vm461 = vweird.f32 %v455
    %vm462 = vmor %vm460, %vm461
    %v463 = vsel %vm462, %v455, %v459
    %v464 = vand.u32 2147483647, %v440
    %vm465 = vcmp.eq.f32.partialorder %v464, 8.507059e+37
    %v466 = vand.u32 %v440, 2147483648
    %v467 = vor.u32 1.1754944e-38, %v466
    %v468 = vsel %vm465, %v467, %v463
    %v469 = vmul.f32 %v432, %v454
    %v470 = vmul.f32 %v434, %v468
    %s471 = scalar_lea.vmem [#allocation12], 8
    %472 = vst.msk [vmem:[%s471] sm:$0xff] %vm216, %v469
    %s473 = scalar_lea.vmem [#allocation12], 40
    %474 = vst.msk [vmem:[%s473] sm:$0xff] %vm216, %v470
    %476 = vrot.lane.b32.xlu0 %v211, 120
    %v477 = vpop.permute.xlu0 %476
    %v480 = vsel %vm216, %v469, 0
    %482 = vmatpush.msra.mxu0 0.0
    %483 = vmatpush.msra.mxu0 0.0
    %484 = vmatpush.msra.mxu0 0.0
    %485 = vmatpush.msra.mxu0 0.0
    %486 = vmatpush.msra.mxu0 0.0
    %487 = vmatpush.msra.mxu0 0.0
    %488 = vmatpush.msra.mxu0 0.0
    %489 = vmatpush.msra.mxu0 0.0
    %490 = vmatpush.msra.mxu0 0.0
    %491 = vmatpush.msra.mxu0 0.0
    %492 = vmatpush.msra.mxu0 0.0
    %493 = vmatpush.msra.mxu0 0.0
    %494 = vmatpush.msra.mxu0 0.0
    %495 = vmatpush.msra.mxu0 0.0
    %496 = vmatpush.msra.mxu0 0.0
    %497 = vmatpush.msra.mxu0 %v477
    %498 = vmatmul.f32.gmra.mxu0 %v480
    %v499 = vpop.f32.mrf.mxu0
    %v500 = vadd.f32 0.0, %v499
    %501 = vdwg.mxu0
    %503 = vrot.lane.b32.xlu0 %v214, 120
    %v504 = vpop.permute.xlu0 %503
    %v507 = vsel %vm216, %v470, 0
    %509 = vmatpush.msra.mxu0 0.0
    %510 = vmatpush.msra.mxu0 0.0
    %511 = vmatpush.msra.mxu0 0.0
    %512 = vmatpush.msra.mxu0 0.0
    %513 = vmatpush.msra.mxu0 0.0
    %514 = vmatpush.msra.mxu0 0.0
    %515 = vmatpush.msra.mxu0 0.0
    %516 = vmatpush.msra.mxu0 0.0
    %517 = vmatpush.msra.mxu0 0.0
    %518 = vmatpush.msra.mxu0 0.0
    %519 = vmatpush.msra.mxu0 0.0
    %520 = vmatpush.msra.mxu0 0.0
    %521 = vmatpush.msra.mxu0 0.0
    %522 = vmatpush.msra.mxu0 0.0
    %523 = vmatpush.msra.mxu0 0.0
    %524 = vmatpush.msra.mxu0 %v504
    %525 = vmatmul.f32.gmra.mxu0 %v507
    %v526 = vpop.f32.mrf.mxu0
    %v527 = vadd.f32 0.0, %v526
    %528 = vdwg.mxu0
    %s529 = scalar_lea.vmem [#allocation10], 8
    %v530 = vld [vmem:[%s529] sm:$0xff]
    %v532 = vsel %vm216, %v500, 0
    %v535 = vsel %vm216, %v527, 0
    %537 = vmatpush.msra.mxu0 0.0
    %538 = vmatpush.msra.mxu0 0.0
    %539 = vmatpush.msra.mxu0 0.0
    %540 = vmatpush.msra.mxu0 0.0
    %541 = vmatpush.msra.mxu0 0.0
    %542 = vmatpush.msra.mxu0 0.0
    %543 = vmatpush.msra.mxu0 0.0
    %544 = vmatpush.msra.mxu0 0.0
    %545 = vmatpush.msra.mxu0 0.0
    %546 = vmatpush.msra.mxu0 0.0
    %547 = vmatpush.msra.mxu0 0.0
    %548 = vmatpush.msra.mxu0 0.0
    %549 = vmatpush.msra.mxu0 0.0
    %550 = vmatpush.msra.mxu0 0.0
    %551 = vmatpush.msra.mxu0 0.0
    %552 = vmatpush.msra.mxu0 %v530
    %553 = vmatmul.f32.gmra.mxu0 %v532
    %v554 = vpop.f32.mrf.mxu0
    %v555 = vadd.f32 0.0, %v554
    %556 = vmatmul.f32.gmra.mxu0 %v535
    %v557 = vpop.f32.mrf.mxu0
    %v558 = vadd.f32 0.0, %v557
    %559 = vdwg.mxu0
    %v561 = vsel %vm216, %v341, 0
    %v564 = vsel %vm216, %v364, 0
    %566 = vmatpush.msra.mxu0 0.0
    %567 = vmatpush.msra.mxu0 0.0
    %568 = vmatpush.msra.mxu0 0.0
    %569 = vmatpush.msra.mxu0 0.0
    %570 = vmatpush.msra.mxu0 0.0
    %571 = vmatpush.msra.mxu0 0.0
    %572 = vmatpush.msra.mxu0 0.0
    %573 = vmatpush.msra.mxu0 0.0
    %574 = vmatpush.msra.mxu0 0.0
    %575 = vmatpush.msra.mxu0 0.0
    %576 = vmatpush.msra.mxu0 0.0
    %577 = vmatpush.msra.mxu0 0.0
    %578 = vmatpush.msra.mxu0 0.0
    %579 = vmatpush.msra.mxu0 0.0
    %580 = vmatpush.msra.mxu0 0.0
    %581 = vmatpush.msra.mxu0 %v366
    %582 = vmatmul.f32.gmra.mxu0 %v561
    %v583 = vpop.f32.mrf.mxu0
    %v584 = vadd.f32 %v555, %v583
    %585 = vmatmul.f32.gmra.mxu0 %v564
    %v586 = vpop.f32.mrf.mxu0
    %v587 = vadd.f32 %v558, %v586
    %588 = vdwg.mxu0
    %589 = vrot.lane.b32.xlu0 %v149, 112
    %v590 = vpop.permute.xlu0 %589
    %591 = vrot.lane.b32.xlu0 %v180, 112
    %v592 = vpop.permute.xlu0 %591
    %v593 = vsel %vm216, %v590, 0
    %v595 = vsel %vm216, %v592, 0
    %597 = vmatpush.xpose.msra.mxu0 0.0
    %598 = vmatpush.xpose.msra.mxu0 0.0
    %599 = vmatpush.xpose.msra.mxu0 0.0
    %600 = vmatpush.xpose.msra.mxu0 0.0
    %601 = vmatpush.xpose.msra.mxu0 0.0
    %602 = vmatpush.xpose.msra.mxu0 0.0
    %603 = vmatpush.xpose.msra.mxu0 0.0
    %604 = vmatpush.xpose.msra.mxu0 0.0
    %605 = vmatpush.xpose.msra.mxu0 0.0
    %606 = vmatpush.xpose.msra.mxu0 0.0
    %607 = vmatpush.xpose.msra.mxu0 0.0
    %608 = vmatpush.xpose.msra.mxu0 0.0
    %609 = vmatpush.xpose.msra.mxu0 0.0
    %610 = vmatpush.xpose.msra.mxu0 0.0
    %611 = vmatpush.xpose.msra.mxu0 0.0
    %612 = vmatpush.xpose.msra.mxu0 %v595
    %613 = vmatmul.f32.gmra.mxu0 %v593
    %v614 = vpop.f32.mrf.mxu0
    %v615 = vadd.f32 0.0, %v614
    %616 = vdwg.mxu0
    %617 = vrot.lane.b32.xlu0 %v152, 112
    %v618 = vpop.permute.xlu0 %617
    %619 = vrot.lane.b32.xlu0 %v183, 112
    %v620 = vpop.permute.xlu0 %619
    %v621 = vsel %vm216, %v618, 0
    %v623 = vsel %vm216, %v620, 0
    %625 = vmatpush.xpose.msra.mxu0 0.0
    %626 = vmatpush.xpose.msra.mxu0 0.0
    %627 = vmatpush.xpose.msra.mxu0 0.0
    %628 = vmatpush.xpose.msra.mxu0 0.0
    %629 = vmatpush.xpose.msra.mxu0 0.0
    %630 = vmatpush.xpose.msra.mxu0 0.0
    %631 = vmatpush.xpose.msra.mxu0 0.0
    %632 = vmatpush.xpose.msra.mxu0 0.0
    %633 = vmatpush.xpose.msra.mxu0 0.0
    %634 = vmatpush.xpose.msra.mxu0 0.0
    %635 = vmatpush.xpose.msra.mxu0 0.0
    %636 = vmatpush.xpose.msra.mxu0 0.0
    %637 = vmatpush.xpose.msra.mxu0 0.0
    %638 = vmatpush.xpose.msra.mxu0 0.0
    %639 = vmatpush.xpose.msra.mxu0 0.0
    %640 = vmatpush.xpose.msra.mxu0 %v623
    %641 = vmatmul.f32.gmra.mxu0 %v621
    %v642 = vpop.f32.mrf.mxu0
    %v643 = vadd.f32 0.0, %v642
    %644 = vdwg.mxu0
    %v645 = vsel %vm216, %v615, -inf
    %646 = vmax.xlane.f32.xlu0 %v645
    %v647 = vpop.xlane.xlu0 %646
    %v648 = vsel %vm216, %v643, -inf
    %649 = vmax.xlane.f32.xlu0 %v648
    %v650 = vpop.xlane.xlu0 %649
    %v651 = vsub.f32 %v615, %v647
    %v652 = vsub.f32 %v643, %v650
    %v653 = vmul.f32 %v651, 1.442695
    %v654 = vpow.pop %v653
    %v655 = vmul.f32 %v652, 1.442695
    %v656 = vpow.pop %v655
    %v657 = vsel %vm216, %v654, 0.0
    %658 = vadd.xlane.f32.xlu0 %v657
    %v659 = vpop.xlane.xlu0 %658
    %v660 = vsel %vm216, %v656, 0.0
    %661 = vadd.xlane.f32.xlu0 %v660
    %v662 = vpop.xlane.xlu0 %661
    %v663 = vrcp.pop %v659
    %v664 = vmul.f32 %v659, %v663
    %v665 = vsub.f32 1.0, %v664
    %v666 = vmul.f32 %v663, %v665
    %v667 = vadd.f32 %v663, %v666
    %vm668 = vweird.f32 %v659
    %vm669 = vweird.f32 %v663
    %vm670 = vmor %vm668, %vm669
    %v671 = vsel %vm670, %v663, %v667
    %v672 = vand.u32 2147483647, %v659
    %vm673 = vcmp.eq.f32.partialorder %v672, 8.507059e+37
    %v674 = vand.u32 %v659, 2147483648
    %v675 = vor.u32 1.1754944e-38, %v674
    %v676 = vsel %vm673, %v675, %v671
    %v677 = vrcp.pop %v662
    %v678 = vmul.f32 %v662, %v677
    %v679 = vsub.f32 1.0, %v678
    %v680 = vmul.f32 %v677, %v679
    %v681 = vadd.f32 %v677, %v680
    %vm682 = vweird.f32 %v662
    %vm683 = vweird.f32 %v677
    %vm684 = vmor %vm682, %vm683
    %v685 = vsel %vm684, %v677, %v681
    %v686 = vand.u32 2147483647, %v662
    %vm687 = vcmp.eq.f32.partialorder %v686, 8.507059e+37
    %v688 = vand.u32 %v662, 2147483648
    %v689 = vor.u32 1.1754944e-38, %v688
    %v690 = vsel %vm687, %v689, %v685
    %v691 = vmul.f32 %v654, %v676
    %v692 = vmul.f32 %v656, %v690
    %s693 = scalar_lea.vmem [#allocation12], 16
    %694 = vst.msk [vmem:[%s693] sm:$0xff] %vm216, %v691
    %s695 = scalar_lea.vmem [#allocation12], 48
    %696 = vst.msk [vmem:[%s695] sm:$0xff] %vm216, %v692
    %697 = vrot.lane.b32.xlu0 %v211, 112
    %v698 = vpop.permute.xlu0 %697
    %v701 = vsel %vm216, %v691, 0
    %703 = vmatpush.msra.mxu0 0.0
    %704 = vmatpush.msra.mxu0 0.0
    %705 = vmatpush.msra.mxu0 0.0
    %706 = vmatpush.msra.mxu0 0.0
    %707 = vmatpush.msra.mxu0 0.0
    %708 = vmatpush.msra.mxu0 0.0
    %709 = vmatpush.msra.mxu0 0.0
    %710 = vmatpush.msra.mxu0 0.0
    %711 = vmatpush.msra.mxu0 0.0
    %712 = vmatpush.msra.mxu0 0.0
    %713 = vmatpush.msra.mxu0 0.0
    %714 = vmatpush.msra.mxu0 0.0
    %715 = vmatpush.msra.mxu0 0.0
    %716 = vmatpush.msra.mxu0 0.0
    %717 = vmatpush.msra.mxu0 0.0
    %718 = vmatpush.msra.mxu0 %v698
    %719 = vmatmul.f32.gmra.mxu0 %v701
    %v720 = vpop.f32.mrf.mxu0
    %v721 = vadd.f32 0.0, %v720
    %722 = vdwg.mxu0
    %723 = vrot.lane.b32.xlu0 %v214, 112
    %v724 = vpop.permute.xlu0 %723
    %v727 = vsel %vm216, %v692, 0
    %729 = vmatpush.msra.mxu0 0.0
    %730 = vmatpush.msra.mxu0 0.0
    %731 = vmatpush.msra.mxu0 0.0
    %732 = vmatpush.msra.mxu0 0.0
    %733 = vmatpush.msra.mxu0 0.0
    %734 = vmatpush.msra.mxu0 0.0
    %735 = vmatpush.msra.mxu0 0.0
    %736 = vmatpush.msra.mxu0 0.0
    %737 = vmatpush.msra.mxu0 0.0
    %738 = vmatpush.msra.mxu0 0.0
    %739 = vmatpush.msra.mxu0 0.0
    %740 = vmatpush.msra.mxu0 0.0
    %741 = vmatpush.msra.mxu0 0.0
    %742 = vmatpush.msra.mxu0 0.0
    %743 = vmatpush.msra.mxu0 0.0
    %744 = vmatpush.msra.mxu0 %v724
    %745 = vmatmul.f32.gmra.mxu0 %v727
    %v746 = vpop.f32.mrf.mxu0
    %v747 = vadd.f32 0.0, %v746
    %748 = vdwg.mxu0
    %s749 = scalar_lea.vmem [#allocation10], 16
    %v750 = vld [vmem:[%s749] sm:$0xff]
    %v752 = vsel %vm216, %v721, 0
    %v755 = vsel %vm216, %v747, 0
    %757 = vmatpush.msra.mxu0 0.0
    %758 = vmatpush.msra.mxu0 0.0
    %759 = vmatpush.msra.mxu0 0.0
    %760 = vmatpush.msra.mxu0 0.0
    %761 = vmatpush.msra.mxu0 0.0
    %762 = vmatpush.msra.mxu0 0.0
    %763 = vmatpush.msra.mxu0 0.0
    %764 = vmatpush.msra.mxu0 0.0
    %765 = vmatpush.msra.mxu0 0.0
    %766 = vmatpush.msra.mxu0 0.0
    %767 = vmatpush.msra.mxu0 0.0
    %768 = vmatpush.msra.mxu0 0.0
    %769 = vmatpush.msra.mxu0 0.0
    %770 = vmatpush.msra.mxu0 0.0
    %771 = vmatpush.msra.mxu0 0.0
    %772 = vmatpush.msra.mxu0 %v750
    %773 = vmatmul.f32.gmra.mxu0 %v752
    %v774 = vpop.f32.mrf.mxu0
    %v775 = vadd.f32 0.0, %v774
    %776 = vmatmul.f32.gmra.mxu0 %v755
    %v777 = vpop.f32.mrf.mxu0
    %v778 = vadd.f32 0.0, %v777
    %779 = vdwg.mxu0
    %v780 = vadd.f32 %v584, %v775
    %v781 = vadd.f32 %v587, %v778
    %782 = vrot.lane.b32.xlu0 %v149, 104
    %v783 = vpop.permute.xlu0 %782
    %784 = vrot.lane.b32.xlu0 %v180, 104
    %v785 = vpop.permute.xlu0 %784
    %v786 = vsel %vm216, %v783, 0
    %v788 = vsel %vm216, %v785, 0
    %790 = vmatpush.xpose.msra.mxu0 0.0
    %791 = vmatpush.xpose.msra.mxu0 0.0
    %792 = vmatpush.xpose.msra.mxu0 0.0
    %793 = vmatpush.xpose.msra.mxu0 0.0
    %794 = vmatpush.xpose.msra.mxu0 0.0
    %795 = vmatpush.xpose.msra.mxu0 0.0
    %796 = vmatpush.xpose.msra.mxu0 0.0
    %797 = vmatpush.xpose.msra.mxu0 0.0
    %798 = vmatpush.xpose.msra.mxu0 0.0
    %799 = vmatpush.xpose.msra.mxu0 0.0
    %800 = vmatpush.xpose.msra.mxu0 0.0
    %801 = vmatpush.xpose.msra.mxu0 0.0
    %802 = vmatpush.xpose.msra.mxu0 0.0
    %803 = vmatpush.xpose.msra.mxu0 0.0
    %804 = vmatpush.xpose.msra.mxu0 0.0
    %805 = vmatpush.xpose.msra.mxu0 %v788
    %806 = vmatmul.f32.gmra.mxu0 %v786
    %v807 = vpop.f32.mrf.mxu0
    %v808 = vadd.f32 0.0, %v807
    %809 = vdwg.mxu0
    %810 = vrot.lane.b32.xlu0 %v152, 104
    %v811 = vpop.permute.xlu0 %810
    %812 = vrot.lane.b32.xlu0 %v183, 104
    %v813 = vpop.permute.xlu0 %812
    %v814 = vsel %vm216, %v811, 0
    %v816 = vsel %vm216, %v813, 0
    %818 = vmatpush.xpose.msra.mxu0 0.0
    %819 = vmatpush.xpose.msra.mxu0 0.0
    %820 = vmatpush.xpose.msra.mxu0 0.0
    %821 = vmatpush.xpose.msra.mxu0 0.0
    %822 = vmatpush.xpose.msra.mxu0 0.0
    %823 = vmatpush.xpose.msra.mxu0 0.0
    %824 = vmatpush.xpose.msra.mxu0 0.0
    %825 = vmatpush.xpose.msra.mxu0 0.0
    %826 = vmatpush.xpose.msra.mxu0 0.0
    %827 = vmatpush.xpose.msra.mxu0 0.0
    %828 = vmatpush.xpose.msra.mxu0 0.0
    %829 = vmatpush.xpose.msra.mxu0 0.0
    %830 = vmatpush.xpose.msra.mxu0 0.0
    %831 = vmatpush.xpose.msra.mxu0 0.0
    %832 = vmatpush.xpose.msra.mxu0 0.0
    %833 = vmatpush.xpose.msra.mxu0 %v816
    %834 = vmatmul.f32.gmra.mxu0 %v814
    %v835 = vpop.f32.mrf.mxu0
    %v836 = vadd.f32 0.0, %v835
    %837 = vdwg.mxu0
    %v838 = vsel %vm216, %v808, -inf
    %839 = vmax.xlane.f32.xlu0 %v838
    %v840 = vpop.xlane.xlu0 %839
    %v841 = vsel %vm216, %v836, -inf
    %842 = vmax.xlane.f32.xlu0 %v841
    %v843 = vpop.xlane.xlu0 %842
    %v844 = vsub.f32 %v808, %v840
    %v845 = vsub.f32 %v836, %v843
    %v846 = vmul.f32 %v844, 1.442695
    %v847 = vpow.pop %v846
    %v848 = vmul.f32 %v845, 1.442695
    %v849 = vpow.pop %v848
    %v850 = vsel %vm216, %v847, 0.0
    %851 = vadd.xlane.f32.xlu0 %v850
    %v852 = vpop.xlane.xlu0 %851
    %v853 = vsel %vm216, %v849, 0.0
    %854 = vadd.xlane.f32.xlu0 %v853
    %v855 = vpop.xlane.xlu0 %854
    %v856 = vrcp.pop %v852
    %v857 = vmul.f32 %v852, %v856
    %v858 = vsub.f32 1.0, %v857
    %v859 = vmul.f32 %v856, %v858
    %v860 = vadd.f32 %v856, %v859
    %vm861 = vweird.f32 %v852
    %vm862 = vweird.f32 %v856
    %vm863 = vmor %vm861, %vm862
    %v864 = vsel %vm863, %v856, %v860
    %v865 = vand.u32 2147483647, %v852
    %vm866 = vcmp.eq.f32.partialorder %v865, 8.507059e+37
    %v867 = vand.u32 %v852, 2147483648
    %v868 = vor.u32 1.1754944e-38, %v867
    %v869 = vsel %vm866, %v868, %v864
    %v870 = vrcp.pop %v855
    %v871 = vmul.f32 %v855, %v870
    %v872 = vsub.f32 1.0, %v871
    %v873 = vmul.f32 %v870, %v872
    %v874 = vadd.f32 %v870, %v873
    %vm875 = vweird.f32 %v855
    %vm876 = vweird.f32 %v870
    %vm877 = vmor %vm875, %vm876
    %v878 = vsel %vm877, %v870, %v874
    %v879 = vand.u32 2147483647, %v855
    %vm880 = vcmp.eq.f32.partialorder %v879, 8.507059e+37
    %v881 = vand.u32 %v855, 2147483648
    %v882 = vor.u32 1.1754944e-38, %v881
    %v883 = vsel %vm880, %v882, %v878
    %v884 = vmul.f32 %v847, %v869
    %v885 = vmul.f32 %v849, %v883
    %s886 = scalar_lea.vmem [#allocation12], 24
    %887 = vst.msk [vmem:[%s886] sm:$0xff] %vm216, %v884
    %s888 = scalar_lea.vmem [#allocation12], 56
    %889 = vst.msk [vmem:[%s888] sm:$0xff] %vm216, %v885
    %890 = vrot.lane.b32.xlu0 %v211, 104
    %v891 = vpop.permute.xlu0 %890
    %v894 = vsel %vm216, %v884, 0
    %896 = vmatpush.msra.mxu0 0.0
    %897 = vmatpush.msra.mxu0 0.0
    %898 = vmatpush.msra.mxu0 0.0
    %899 = vmatpush.msra.mxu0 0.0
    %900 = vmatpush.msra.mxu0 0.0
    %901 = vmatpush.msra.mxu0 0.0
    %902 = vmatpush.msra.mxu0 0.0
    %903 = vmatpush.msra.mxu0 0.0
    %904 = vmatpush.msra.mxu0 0.0
    %905 = vmatpush.msra.mxu0 0.0
    %906 = vmatpush.msra.mxu0 0.0
    %907 = vmatpush.msra.mxu0 0.0
    %908 = vmatpush.msra.mxu0 0.0
    %909 = vmatpush.msra.mxu0 0.0
    %910 = vmatpush.msra.mxu0 0.0
    %911 = vmatpush.msra.mxu0 %v891
    %912 = vmatmul.f32.gmra.mxu0 %v894
    %v913 = vpop.f32.mrf.mxu0
    %v914 = vadd.f32 0.0, %v913
    %915 = vdwg.mxu0
    %916 = vrot.lane.b32.xlu0 %v214, 104
    %v917 = vpop.permute.xlu0 %916
    %v920 = vsel %vm216, %v885, 0
    %922 = vmatpush.msra.mxu0 0.0
    %923 = vmatpush.msra.mxu0 0.0
    %924 = vmatpush.msra.mxu0 0.0
    %925 = vmatpush.msra.mxu0 0.0
    %926 = vmatpush.msra.mxu0 0.0
    %927 = vmatpush.msra.mxu0 0.0
    %928 = vmatpush.msra.mxu0 0.0
    %929 = vmatpush.msra.mxu0 0.0
    %930 = vmatpush.msra.mxu0 0.0
    %931 = vmatpush.msra.mxu0 0.0
    %932 = vmatpush.msra.mxu0 0.0
    %933 = vmatpush.msra.mxu0 0.0
    %934 = vmatpush.msra.mxu0 0.0
    %935 = vmatpush.msra.mxu0 0.0
    %936 = vmatpush.msra.mxu0 0.0
    %937 = vmatpush.msra.mxu0 %v917
    %938 = vmatmul.f32.gmra.mxu0 %v920
    %v939 = vpop.f32.mrf.mxu0
    %v940 = vadd.f32 0.0, %v939
    %941 = vdwg.mxu0
    %s942 = scalar_lea.vmem [#allocation10], 24
    %v943 = vld [vmem:[%s942] sm:$0xff]
    %v945 = vsel %vm216, %v914, 0
    %v948 = vsel %vm216, %v940, 0
    %950 = vmatpush.msra.mxu0 0.0
    %951 = vmatpush.msra.mxu0 0.0
    %952 = vmatpush.msra.mxu0 0.0
    %953 = vmatpush.msra.mxu0 0.0
    %954 = vmatpush.msra.mxu0 0.0
    %955 = vmatpush.msra.mxu0 0.0
    %956 = vmatpush.msra.mxu0 0.0
    %957 = vmatpush.msra.mxu0 0.0
    %958 = vmatpush.msra.mxu0 0.0
    %959 = vmatpush.msra.mxu0 0.0
    %960 = vmatpush.msra.mxu0 0.0
    %961 = vmatpush.msra.mxu0 0.0
    %962 = vmatpush.msra.mxu0 0.0
    %963 = vmatpush.msra.mxu0 0.0
    %964 = vmatpush.msra.mxu0 0.0
    %965 = vmatpush.msra.mxu0 %v943
    %966 = vmatmul.f32.gmra.mxu0 %v945
    %v967 = vpop.f32.mrf.mxu0
    %v968 = vadd.f32 0.0, %v967
    %969 = vmatmul.f32.gmra.mxu0 %v948
    %v970 = vpop.f32.mrf.mxu0
    %v971 = vadd.f32 0.0, %v970
    %972 = vdwg.mxu0
    %v973 = vadd.f32 %v780, %v968
    %v974 = vadd.f32 %v781, %v971
    %v975 = vld [vmem:[%s8] sm:$0x1]
    %v977 = vperm.slane %v975, 0
    %v979 = vadd.f32 %v973, %v977
    %v980 = vadd.f32 %v974, %v977
    %981 = vst.msk [vmem:[#allocation11] sm:$0xff] %vm124, %v979
    %982 = vst.msk [vmem:[#allocation11 + $0x8] sm:$0xff] %vm124, %v980
    // Predicated region
    $region58: #{tpu_custom_call.1} parent=1 // pred_check
      _
    $region59: #{tpu_custom_call.1} parent=1 // pred_check_branch
      %984 = sbr.rel (0) target = $region61
    $region60: #{tpu_custom_call.1} parent=1 // pred_region
      %986 = vsyncadd [#allocation4], 0
      %s987 = sshll.u32 [#allocation11], 4
      %s988 = int_to_ptr.vmem [resolvable:$true] %s987
      %s989 = sshll.u32 %s9, 4
      %s990 = int_to_ptr.hbm [resolvable:$true] %s989
      %995 = dma.vmem_to_hbm [thread:$0]  %s988, 256, %s990, [#allocation4], 128, 128, 8
    $region61: #{tpu_custom_call.1} parent=1 // pred_fallthru
      _
    // Predicated region
    $region62: #{tpu_custom_call.1} parent=1 // pred_check
      _
    $region63: #{tpu_custom_call.1} parent=1 // pred_check_branch
      %997 = sbr.rel (0) target = $region65
    $region64: #{tpu_custom_call.1} parent=1 // pred_region
      %999 = vsyncadd [#allocation13], 0
      %s1000 = sshll.u32 [#allocation12], 4
      %s1001 = int_to_ptr.vmem [resolvable:$true] %s1000
      %s1002 = sshll.u32 %s10, 4
      %s1003 = int_to_ptr.hbm [resolvable:$true] %s1002
      %1008 = dma.vmem_to_hbm [thread:$0]  %s1001, 1024, %s1003, [#allocation13], 128, 128, 8
    $region65: #{tpu_custom_call.1} parent=1 // pred_fallthru
      _
    // Predicated region
    $region66: #{tpu_custom_call.1} parent=1 // pred_check
      _
    $region67: #{tpu_custom_call.1} parent=1 // pred_check_branch
      %1010 = sbr.rel (0) target = $region69
    $region68: #{tpu_custom_call.1} parent=1 // pred_region
      %1012 = dma.done [#allocation4], 256
    $region69: #{tpu_custom_call.1} parent=1 // pred_fallthru
      _
    // Predicated region
    $region70: #{tpu_custom_call.1} parent=1 // pred_check
      _
    $region71: #{tpu_custom_call.1} parent=1 // pred_check_branch
      %1014 = sbr.rel (0) target = $region73
    $region72: #{tpu_custom_call.1} parent=1 // pred_region
      %1016 = dma.done [#allocation13], 1024
    $region73: #{tpu_custom_call.1} parent=1 // pred_fallthru
      _
    %1017 = vsyncpa [#allocation3], 1
    %1018 = vsyncpa [#allocation6], 1
    %1019 = vsyncpa [#allocation9], 1
    %1020 = vsyncpa [#allocation4], 1
    %1021 = vsyncpa [#allocation13], 1

// kernel: tpu_custom_call.1
$region0: #{tpu_custom_call.1}
  #allocation0 [shape = 'u32[]', space=smem, size = 0x4, offset = 0x4, fixed_abs, tag = 'smem constant byte address 0x4 - core index']
  #allocation1 [shape = 'u32[72,128]{1,0:T(1,128)}', space=vmem, size = 0x9000, scoped, tag = 'internal scratch']
  %s0 = inlined_call_operand.hbm [shape: f32[2,8,32], index: 0, kind: input, shape index: {}]
  %s1 = inlined_call_operand.hbm [shape: f32[32,32], index: 1, kind: input, shape index: {}]
  %s2 = inlined_call_operand.vmem [shape: f32[1,32], index: 2, kind: input, shape index: {}]
  %s3 = inlined_call_operand.hbm [shape: f32[32,32], index: 3, kind: input, shape index: {}]
  %s4 = inlined_call_operand.vmem [shape: f32[1,32], index: 4, kind: input, shape index: {}]
  %s5 = inlined_call_operand.hbm [shape: f32[32,32], index: 5, kind: input, shape index: {}]
  %s6 = inlined_call_operand.vmem [shape: f32[1,32], index: 6, kind: input, shape index: {}]
  %s7 = inlined_call_operand.hbm [shape: f32[4,8,32], index: 7, kind: input, shape index: {}]
  %s8 = inlined_call_operand.vmem [shape: f32[1,32], index: 8, kind: input, shape index: {}]
  %s9 = inlined_call_operand.hbm [shape: f32[2,8,32], index: 9, kind: output, shape index: {0}]
  %s10 = inlined_call_operand.hbm [shape: f32[2,4,8,8], index: 10, kind: output, shape index: {1}]
  %11 = xla_tuple %s9, %s10
  %s12 = sld [smem:[#allocation0]]
  $region74: #{tpu_custom_call.1} parent=0
    _
  %s14 = ssub.s32 1, %s12
  %s15 = scalar_select 0, %s14, %s12
  $region1: #{tpu_custom_call.1} parent=0
    #allocation2 [shape = 'u8[8192]{0}', space=vmem, size = 0x2000, scoped, tag = 'input window, operand 0, single buffered']
    #allocation3 [shape = 's32[1]{0}', space=sflag, size = 0x4, scoped, tag = 'scoped memory for tpu_custom_call.1']
    #allocation4 [shape = 's32[1]{0}', space=sflag, size = 0x4, scoped, tag = 'scoped memory for tpu_custom_call.1']
    #allocation5 [shape = 'u8[16384]{0}', space=vmem, size = 0x4000, scoped, tag = 'input window, operand 1, single buffered']
    #allocation6 [shape = 's32[1]{0}', space=sflag, size = 0x4, scoped, tag = 'scoped memory for tpu_custom_call.1']
    #allocation7 [shape = 'u8[16384]{0}', space=vmem, size = 0x4000, scoped, tag = 'input window, operand 3, single buffered']
    #allocation8 [shape = 'u8[16384]{0}', space=vmem, size = 0x4000, scoped, tag = 'input window, operand 5, single buffered']
    #allocation9 [shape = 's32[1]{0}', space=sflag, size = 0x4, scoped, tag = 'scoped memory for tpu_custom_call.1']
    #allocation10 [shape = 'u8[16384]{0}', space=vmem, size = 0x4000, scoped, tag = 'input window, operand 7, single buffered']
    #allocation11 [shape = 'u8[8192]{0}', space=vmem, size = 0x2000, scoped, tag = 'output window, operand 0, single buffered']
    #allocation12 [shape = 'u8[32768]{0}', space=vmem, size = 0x8000, scoped, tag = 'output window, operand 1, single buffered']
    #allocation13 [shape = 's32[1]{0}', space=sflag, size = 0x4, scoped, tag = 'scoped memory for tpu_custom_call.1']
    %16 = vsyncpa [#allocation3], 0
    %17 = vsyncpa [#allocation6], 0
    %18 = vsyncpa [#allocation9], 0
    %19 = vsyncpa [#allocation4], 0
    %20 = vsyncpa [#allocation13], 0
    // Predicated region
    $region2: #{tpu_custom_call.1} parent=1 // pred_check
      _
    $region3: #{tpu_custom_call.1} parent=1 // pred_check_branch
      %22 = sbr.rel (0) target = $region5
    $region4: #{tpu_custom_call.1} parent=1 // pred_region
      %24 = vsyncadd [#allocation3], 0
      %s25 = sshll.u32 %s0, 4
      %s26 = int_to_ptr.hbm [resolvable:$true] %s25
      %s27 = sshll.u32 [#allocation2], 4
      %s28 = int_to_ptr.vmem [resolvable:$true] %s27
      %33 = dma.hbm_to_vmem [thread:$0]  %s26, 256, %s28, [#allocation3], 128, 128, 8
    $region5: #{tpu_custom_call.1} parent=1 // pred_fallthru
      _
    // Predicated region
    $region6: #{tpu_custom_call.1} parent=1 // pred_check
      _
    $region7: #{tpu_custom_call.1} parent=1 // pred_check_branch
      %35 = sbr.rel (0) target = $region9
    $region8: #{tpu_custom_call.1} parent=1 // pred_region
      %37 = vsyncadd [#allocation6], 0
      %s38 = sshll.u32 %s1, 4
      %s39 = int_to_ptr.hbm [resolvable:$true] %s38
      %s40 = sshll.u32 [#allocation5], 4
      %s41 = int_to_ptr.vmem [resolvable:$true] %s40
      %46 = dma.hbm_to_vmem [thread:$0]  %s39, 512, %s41, [#allocation6], 128, 128, 8
    $region9: #{tpu_custom_call.1} parent=1 // pred_fallthru
      _
    // Predicated region
    $region10: #{tpu_custom_call.1} parent=1 // pred_check
      _
    $region11: #{tpu_custom_call.1} parent=1 // pred_check_branch
      %48 = sbr.rel (0) target = $region13
    $region12: #{tpu_custom_call.1} parent=1 // pred_region
      _
    $region13: #{tpu_custom_call.1} parent=1 // pred_fallthru
      _
    // Predicated region
    $region14: #{tpu_custom_call.1} parent=1 // pred_check
      _
    $region15: #{tpu_custom_call.1} parent=1 // pred_check_branch
      %50 = sbr.rel (0) target = $region17
    $region16: #{tpu_custom_call.1} parent=1 // pred_region
      %52 = vsyncadd [#allocation6], 0
      %s53 = sshll.u32 %s3, 4
      %s54 = int_to_ptr.hbm [resolvable:$true] %s53
      %s55 = sshll.u32 [#allocation7], 4
      %s56 = int_to_ptr.vmem [resolvable:$true] %s55
      %61 = dma.hbm_to_vmem [thread:$0]  %s54, 512, %s56, [#allocation6], 128, 128, 8
    $region17: #{tpu_custom_call.1} parent=1 // pred_fallthru
      _
    // Predicated region
    $region18: #{tpu_custom_call.1} parent=1 // pred_check
      _
    $region19: #{tpu_custom_call.1} parent=1 // pred_check_branch
      %63 = sbr.rel (0) target = $region21
    $region20: #{tpu_custom_call.1} parent=1 // pred_region
      _
    $region21: #{tpu_custom_call.1} parent=1 // pred_fallthru
      _
    // Predicated region
    $region22: #{tpu_custom_call.1} parent=1 // pred_check
      _
    $region23: #{tpu_custom_call.1} parent=1 // pred_check_branch
      %65 = sbr.rel (0) target = $region25
    $region24: #{tpu_custom_call.1} parent=1 // pred_region
      %67 = vsyncadd [#allocation9], 0
      %s68 = sshll.u32 %s5, 4
      %s69 = int_to_ptr.hbm [resolvable:$true] %s68
      %s70 = sshll.u32 [#allocation8], 4
      %s71 = int_to_ptr.vmem [resolvable:$true] %s70
      %76 = dma.hbm_to_vmem [thread:$0]  %s69, 512, %s71, [#allocation9], 128, 128, 8
    $region25: #{tpu_custom_call.1} parent=1 // pred_fallthru
      _
    // Predicated region
    $region26: #{tpu_custom_call.1} parent=1 // pred_check
      _
    $region27: #{tpu_custom_call.1} parent=1 // pred_check_branch
      %78 = sbr.rel (0) target = $region29
    $region28: #{tpu_custom_call.1} parent=1 // pred_region
      _
    $region29: #{tpu_custom_call.1} parent=1 // pred_fallthru
      _
    // Predicated region
    $region30: #{tpu_custom_call.1} parent=1 // pred_check
      _
    $region31: #{tpu_custom_call.1} parent=1 // pred_check_branch
      %80 = sbr.rel (0) target = $region33
    $region32: #{tpu_custom_call.1} parent=1 // pred_region
      %82 = vsyncadd [#allocation9], 0
      %s83 = sshll.u32 %s7, 4
      %s84 = int_to_ptr.hbm [resolvable:$true] %s83
      %s85 = sshll.u32 [#allocation10], 4
      %s86 = int_to_ptr.vmem [resolvable:$true] %s85
      %91 = dma.hbm_to_vmem [thread:$0]  %s84, 512, %s86, [#allocation9], 128, 128, 8
    $region33: #{tpu_custom_call.1} parent=1 // pred_fallthru
      _
    // Predicated region
    $region34: #{tpu_custom_call.1} parent=1 // pred_check
      _
    $region35: #{tpu_custom_call.1} parent=1 // pred_check_branch
      %93 = sbr.rel (0) target = $region37
    $region36: #{tpu_custom_call.1} parent=1 // pred_region
      _
    $region37: #{tpu_custom_call.1} parent=1 // pred_fallthru
      _
    // Predicated region
    $region38: #{tpu_custom_call.1} parent=1 // pred_check
      _
    $region39: #{tpu_custom_call.1} parent=1 // pred_check_branch
      %95 = sbr.rel (0) target = $region41
    $region40: #{tpu_custom_call.1} parent=1 // pred_region
      %97 = dma.done [#allocation3], 256
    $region41: #{tpu_custom_call.1} parent=1 // pred_fallthru
      _
    // Predicated region
    $region42: #{tpu_custom_call.1} parent=1 // pred_check
      _
    $region43: #{tpu_custom_call.1} parent=1 // pred_check_branch
      %99 = sbr.rel (0) target = $region45
    $region44: #{tpu_custom_call.1} parent=1 // pred_region
      %101 = dma.done [#allocation6], 512
    $region45: #{tpu_custom_call.1} parent=1 // pred_fallthru
      _
    // Predicated region
    $region46: #{tpu_custom_call.1} parent=1 // pred_check
      _
    $region47: #{tpu_custom_call.1} parent=1 // pred_check_branch
      %103 = sbr.rel (0) target = $region49
    $region48: #{tpu_custom_call.1} parent=1 // pred_region
      %105 = dma.done [#allocation6], 512
    $region49: #{tpu_custom_call.1} parent=1 // pred_fallthru
      _
    // Predicated region
    $region50: #{tpu_custom_call.1} parent=1 // pred_check
      _
    $region51: #{tpu_custom_call.1} parent=1 // pred_check_branch
      %107 = sbr.rel (0) target = $region53
    $region52: #{tpu_custom_call.1} parent=1 // pred_region
      %109 = dma.done [#allocation9], 512
    $region53: #{tpu_custom_call.1} parent=1 // pred_fallthru
      _
    // Predicated region
    $region54: #{tpu_custom_call.1} parent=1 // pred_check
      _
    $region55: #{tpu_custom_call.1} parent=1 // pred_check_branch
      %111 = sbr.rel (0) target = $region57
    $region56: #{tpu_custom_call.1} parent=1 // pred_region
      %113 = dma.done [#allocation9], 512
    $region57: #{tpu_custom_call.1} parent=1 // pred_fallthru
      _
    %v114 = vld [vmem:[#allocation2] sm:$0xff]
    %v115 = vld [vmem:[#allocation2 + $0x8] sm:$0xff]
    %v116 = vld [vmem:[#allocation5] sm:$0xff]
    %v117 = vld [vmem:[#allocation5 + $0x8] sm:$0xff]
    %v118 = vld [vmem:[#allocation5 + $0x10] sm:$0xff]
    %v119 = vld [vmem:[#allocation5 + $0x18] sm:$0xff]
    %v120 = vld [vmem:[%s2] sm:$0x1]
    %v122 = vperm.slane %v120, 0
    %vm124 = vcmask 261120
    %v126 = vsel %vm124, %v114, 0
    %v129 = vsel %vm124, %v115, 0
    %131 = vmatpush.msra.mxu0 0.0
    %132 = vmatpush.msra.mxu0 0.0
    %133 = vmatpush.msra.mxu0 0.0
    %134 = vmatpush.msra.mxu0 0.0
    %135 = vmatpush.msra.mxu0 0.0
    %136 = vmatpush.msra.mxu0 0.0
    %137 = vmatpush.msra.mxu0 0.0
    %138 = vmatpush.msra.mxu0 0.0
    %139 = vmatpush.msra.mxu0 0.0
    %140 = vmatpush.msra.mxu0 0.0
    %141 = vmatpush.msra.mxu0 0.0
    %142 = vmatpush.msra.mxu0 0.0
    %143 = vmatpush.msra.mxu0 %v119
    %144 = vmatpush.msra.mxu0 %v118
    %145 = vmatpush.msra.mxu0 %v117
    %146 = vmatpush.msra.mxu0 %v116
    %147 = vmatmul.f32.gmra.mxu0 %v126
    %v148 = vpop.f32.mrf.mxu0
    %v149 = vadd.f32 %v122, %v148
    %150 = vmatmul.f32.gmra.mxu0 %v129
    %v151 = vpop.f32.mrf.mxu0
    %v152 = vadd.f32 %v122, %v151
    %153 = vdwg.mxu0
    %v154 = vld [vmem:[#allocation7] sm:$0xff]
    %v155 = vld [vmem:[#allocation7 + $0x8] sm:$0xff]
    %v156 = vld [vmem:[#allocation7 + $0x10] sm:$0xff]
    %v157 = vld [vmem:[#allocation7 + $0x18] sm:$0xff]
    %v158 = vld [vmem:[%s4] sm:$0x1]
    %v160 = vperm.slane %v158, 0
    %162 = vmatpush.msra.mxu0 0.0
    %163 = vmatpush.msra.mxu0 0.0
    %164 = vmatpush.msra.mxu0 0.0
    %165 = vmatpush.msra.mxu0 0.0
    %166 = vmatpush.msra.mxu0 0.0
    %167 = vmatpush.msra.mxu0 0.0
    %168 = vmatpush.msra.mxu0 0.0
    %169 = vmatpush.msra.mxu0 0.0
    %170 = vmatpush.msra.mxu0 0.0
    %171 = vmatpush.msra.mxu0 0.0
    %172 = vmatpush.msra.mxu0 0.0
    %173 = vmatpush.msra.mxu0 0.0
    %174 = vmatpush.msra.mxu0 %v157
    %175 = vmatpush.msra.mxu0 %v156
    %176 = vmatpush.msra.mxu0 %v155
    %177 = vmatpush.msra.mxu0 %v154
    %178 = vmatmul.f32.gmra.mxu0 %v126
    %v179 = vpop.f32.mrf.mxu0
    %v180 = vadd.f32 %v160, %v179
    %181 = vmatmul.f32.gmra.mxu0 %v129
    %v182 = vpop.f32.mrf.mxu0
    %v183 = vadd.f32 %v160, %v182
    %184 = vdwg.mxu0
    %v185 = vld [vmem:[#allocation8] sm:$0xff]
    %v186 = vld [vmem:[#allocation8 + $0x8] sm:$0xff]
    %v187 = vld [vmem:[#allocation8 + $0x10] sm:$0xff]
    %v188 = vld [vmem:[#allocation8 + $0x18] sm:$0xff]
    %v189 = vld [vmem:[%s6] sm:$0x1]
    %v191 = vperm.slane %v189, 0
    %193 = vmatpush.msra.mxu0 0.0
    %194 = vmatpush.msra.mxu0 0.0
    %195 = vmatpush.msra.mxu0 0.0
    %196 = vmatpush.msra.mxu0 0.0
    %197 = vmatpush.msra.mxu0 0.0
    %198 = vmatpush.msra.mxu0 0.0
    %199 = vmatpush.msra.mxu0 0.0
    %200 = vmatpush.msra.mxu0 0.0
    %201 = vmatpush.msra.mxu0 0.0
    %202 = vmatpush.msra.mxu0 0.0
    %203 = vmatpush.msra.mxu0 0.0
    %204 = vmatpush.msra.mxu0 0.0
    %205 = vmatpush.msra.mxu0 %v188
    %206 = vmatpush.msra.mxu0 %v187
    %207 = vmatpush.msra.mxu0 %v186
    %208 = vmatpush.msra.mxu0 %v185
    %209 = vmatmul.f32.gmra.mxu0 %v126
    %v210 = vpop.f32.mrf.mxu0
    %v211 = vadd.f32 %v191, %v210
    %212 = vmatmul.f32.gmra.mxu0 %v129
    %v213 = vpop.f32.mrf.mxu0
    %v214 = vadd.f32 %v191, %v213
    %215 = vdwg.mxu0
    %vm216 = vcmask 64512
    %v218 = vsel %vm216, %v149, 0
    %v221 = vsel %vm216, %v180, 0
    %223 = vmatpush.xpose.msra.mxu0 0.0
    %224 = vmatpush.xpose.msra.mxu0 0.0
    %225 = vmatpush.xpose.msra.mxu0 0.0
    %226 = vmatpush.xpose.msra.mxu0 0.0
    %227 = vmatpush.xpose.msra.mxu0 0.0
    %228 = vmatpush.xpose.msra.mxu0 0.0
    %229 = vmatpush.xpose.msra.mxu0 0.0
    %230 = vmatpush.xpose.msra.mxu0 0.0
    %231 = vmatpush.xpose.msra.mxu0 0.0
    %232 = vmatpush.xpose.msra.mxu0 0.0
    %233 = vmatpush.xpose.msra.mxu0 0.0
    %234 = vmatpush.xpose.msra.mxu0 0.0
    %235 = vmatpush.xpose.msra.mxu0 0.0
    %236 = vmatpush.xpose.msra.mxu0 0.0
    %237 = vmatpush.xpose.msra.mxu0 0.0
    %238 = vmatpush.xpose.msra.mxu0 %v221
    %239 = vmatmul.f32.gmra.mxu0 %v218
    %v240 = vpop.f32.mrf.mxu0
    %v241 = vadd.f32 0.0, %v240
    %242 = vdwg.mxu0
    %v244 = vsel %vm216, %v152, 0
    %v247 = vsel %vm216, %v183, 0
    %249 = vmatpush.xpose.msra.mxu0 0.0
    %250 = vmatpush.xpose.msra.mxu0 0.0
    %251 = vmatpush.xpose.msra.mxu0 0.0
    %252 = vmatpush.xpose.msra.mxu0 0.0
    %253 = vmatpush.xpose.msra.mxu0 0.0
    %254 = vmatpush.xpose.msra.mxu0 0.0
    %255 = vmatpush.xpose.msra.mxu0 0.0
    %256 = vmatpush.xpose.msra.mxu0 0.0
    %257 = vmatpush.xpose.msra.mxu0 0.0
    %258 = vmatpush.xpose.msra.mxu0 0.0
    %259 = vmatpush.xpose.msra.mxu0 0.0
    %260 = vmatpush.xpose.msra.mxu0 0.0
    %261 = vmatpush.xpose.msra.mxu0 0.0
    %262 = vmatpush.xpose.msra.mxu0 0.0
    %263 = vmatpush.xpose.msra.mxu0 0.0
    %264 = vmatpush.xpose.msra.mxu0 %v247
    %265 = vmatmul.f32.gmra.mxu0 %v244
    %v266 = vpop.f32.mrf.mxu0
    %v267 = vadd.f32 0.0, %v266
    %268 = vdwg.mxu0
    %v269 = vsel %vm216, %v241, -inf
    %270 = vmax.xlane.f32.xlu0 %v269
    %v271 = vpop.xlane.xlu0 %270
    %v272 = vsel %vm216, %v267, -inf
    %273 = vmax.xlane.f32.xlu0 %v272
    %v274 = vpop.xlane.xlu0 %273
    %v275 = vsub.f32 %v241, %v271
    %v276 = vsub.f32 %v267, %v274
    %v277 = vmul.f32 %v275, 1.442695
    %v278 = vpow.pop %v277
    %v279 = vmul.f32 %v276, 1.442695
    %v280 = vpow.pop %v279
    %v281 = vsel %vm216, %v278, 0.0
    %282 = vadd.xlane.f32.xlu0 %v281
    %v283 = vpop.xlane.xlu0 %282
    %v284 = vsel %vm216, %v280, 0.0
    %285 = vadd.xlane.f32.xlu0 %v284
    %v286 = vpop.xlane.xlu0 %285
    %v287 = vrcp.pop %v283
    %v288 = vmul.f32 %v283, %v287
    %v289 = vsub.f32 1.0, %v288
    %v290 = vmul.f32 %v287, %v289
    %v291 = vadd.f32 %v287, %v290
    %vm292 = vweird.f32 %v283
    %vm293 = vweird.f32 %v287
    %vm294 = vmor %vm292, %vm293
    %v295 = vsel %vm294, %v287, %v291
    %v296 = vand.u32 2147483647, %v283
    %vm297 = vcmp.eq.f32.partialorder %v296, 8.507059e+37
    %v298 = vand.u32 %v283, 2147483648
    %v299 = vor.u32 1.1754944e-38, %v298
    %v300 = vsel %vm297, %v299, %v295
    %v301 = vrcp.pop %v286
    %v302 = vmul.f32 %v286, %v301
    %v303 = vsub.f32 1.0, %v302
    %v304 = vmul.f32 %v301, %v303
    %v305 = vadd.f32 %v301, %v304
    %vm306 = vweird.f32 %v286
    %vm307 = vweird.f32 %v301
    %vm308 = vmor %vm306, %vm307
    %v309 = vsel %vm308, %v301, %v305
    %v310 = vand.u32 2147483647, %v286
    %vm311 = vcmp.eq.f32.partialorder %v310, 8.507059e+37
    %v312 = vand.u32 %v286, 2147483648
    %v313 = vor.u32 1.1754944e-38, %v312
    %v314 = vsel %vm311, %v313, %v309
    %v315 = vmul.f32 %v278, %v300
    %v316 = vmul.f32 %v280, %v314
    %317 = vst.msk [vmem:[#allocation12] sm:$0xff] %vm216, %v315
    %s318 = scalar_lea.vmem [#allocation12], 32
    %319 = vst.msk [vmem:[%s318] sm:$0xff] %vm216, %v316
    %v321 = vsel %vm216, %v315, 0
    %323 = vmatpush.msra.mxu0 0.0
    %324 = vmatpush.msra.mxu0 0.0
    %325 = vmatpush.msra.mxu0 0.0
    %326 = vmatpush.msra.mxu0 0.0
    %327 = vmatpush.msra.mxu0 0.0
    %328 = vmatpush.msra.mxu0 0.0
    %329 = vmatpush.msra.mxu0 0.0
    %330 = vmatpush.msra.mxu0 0.0
    %331 = vmatpush.msra.mxu0 0.0
    %332 = vmatpush.msra.mxu0 0.0
    %333 = vmatpush.msra.mxu0 0.0
    %334 = vmatpush.msra.mxu0 0.0
    %335 = vmatpush.msra.mxu0 0.0
    %336 = vmatpush.msra.mxu0 0.0
    %337 = vmatpush.msra.mxu0 0.0
    %338 = vmatpush.msra.mxu0 %v211
    %339 = vmatmul.f32.gmra.mxu0 %v321
    %v340 = vpop.f32.mrf.mxu0
    %v341 = vadd.f32 0.0, %v340
    %342 = vdwg.mxu0
    %v344 = vsel %vm216, %v316, 0
    %346 = vmatpush.msra.mxu0 0.0
    %347 = vmatpush.msra.mxu0 0.0
    %348 = vmatpush.msra.mxu0 0.0
    %349 = vmatpush.msra.mxu0 0.0
    %350 = vmatpush.msra.mxu0 0.0
    %351 = vmatpush.msra.mxu0 0.0
    %352 = vmatpush.msra.mxu0 0.0
    %353 = vmatpush.msra.mxu0 0.0
    %354 = vmatpush.msra.mxu0 0.0
    %355 = vmatpush.msra.mxu0 0.0
    %356 = vmatpush.msra.mxu0 0.0
    %357 = vmatpush.msra.mxu0 0.0
    %358 = vmatpush.msra.mxu0 0.0
    %359 = vmatpush.msra.mxu0 0.0
    %360 = vmatpush.msra.mxu0 0.0
    %361 = vmatpush.msra.mxu0 %v214
    %362 = vmatmul.f32.gmra.mxu0 %v344
    %v363 = vpop.f32.mrf.mxu0
    %v364 = vadd.f32 0.0, %v363
    %365 = vdwg.mxu0
    %v366 = vld [vmem:[#allocation10] sm:$0xff]
    %367 = vrot.lane.b32.xlu0 %v149, 120
    %v368 = vpop.permute.xlu0 %367
    %369 = vrot.lane.b32.xlu0 %v180, 120
    %v370 = vpop.permute.xlu0 %369
    %v371 = vsel %vm216, %v368, 0
    %v373 = vsel %vm216, %v370, 0
    %375 = vmatpush.xpose.msra.mxu0 0.0
    %376 = vmatpush.xpose.msra.mxu0 0.0
    %377 = vmatpush.xpose.msra.mxu0 0.0
    %378 = vmatpush.xpose.msra.mxu0 0.0
    %379 = vmatpush.xpose.msra.mxu0 0.0
    %380 = vmatpush.xpose.msra.mxu0 0.0
    %381 = vmatpush.xpose.msra.mxu0 0.0
    %382 = vmatpush.xpose.msra.mxu0 0.0
    %383 = vmatpush.xpose.msra.mxu0 0.0
    %384 = vmatpush.xpose.msra.mxu0 0.0
    %385 = vmatpush.xpose.msra.mxu0 0.0
    %386 = vmatpush.xpose.msra.mxu0 0.0
    %387 = vmatpush.xpose.msra.mxu0 0.0
    %388 = vmatpush.xpose.msra.mxu0 0.0
    %389 = vmatpush.xpose.msra.mxu0 0.0
    %390 = vmatpush.xpose.msra.mxu0 %v373
    %391 = vmatmul.f32.gmra.mxu0 %v371
    %v392 = vpop.f32.mrf.mxu0
    %v393 = vadd.f32 0.0, %v392
    %394 = vdwg.mxu0
    %395 = vrot.lane.b32.xlu0 %v152, 120
    %v396 = vpop.permute.xlu0 %395
    %397 = vrot.lane.b32.xlu0 %v183, 120
    %v398 = vpop.permute.xlu0 %397
    %v399 = vsel %vm216, %v396, 0
    %v401 = vsel %vm216, %v398, 0
    %403 = vmatpush.xpose.msra.mxu0 0.0
    %404 = vmatpush.xpose.msra.mxu0 0.0
    %405 = vmatpush.xpose.msra.mxu0 0.0
    %406 = vmatpush.xpose.msra.mxu0 0.0
    %407 = vmatpush.xpose.msra.mxu0 0.0
    %408 = vmatpush.xpose.msra.mxu0 0.0
    %409 = vmatpush.xpose.msra.mxu0 0.0
    %410 = vmatpush.xpose.msra.mxu0 0.0
    %411 = vmatpush.xpose.msra.mxu0 0.0
    %412 = vmatpush.xpose.msra.mxu0 0.0
    %413 = vmatpush.xpose.msra.mxu0 0.0
    %414 = vmatpush.xpose.msra.mxu0 0.0
    %415 = vmatpush.xpose.msra.mxu0 0.0
    %416 = vmatpush.xpose.msra.mxu0 0.0
    %417 = vmatpush.xpose.msra.mxu0 0.0
    %418 = vmatpush.xpose.msra.mxu0 %v401
    %419 = vmatmul.f32.gmra.mxu0 %v399
    %v420 = vpop.f32.mrf.mxu0
    %v421 = vadd.f32 0.0, %v420
    %422 = vdwg.mxu0
    %v423 = vsel %vm216, %v393, -inf
    %424 = vmax.xlane.f32.xlu0 %v423
    %v425 = vpop.xlane.xlu0 %424
    %v426 = vsel %vm216, %v421, -inf
    %427 = vmax.xlane.f32.xlu0 %v426
    %v428 = vpop.xlane.xlu0 %427
    %v429 = vsub.f32 %v393, %v425
    %v430 = vsub.f32 %v421, %v428
    %v431 = vmul.f32 %v429, 1.442695
    %v432 = vpow.pop %v431
    %v433 = vmul.f32 %v430, 1.442695
    %v434 = vpow.pop %v433
    %v435 = vsel %vm216, %v432, 0.0
    %436 = vadd.xlane.f32.xlu0 %v435
    %v437 = vpop.xlane.xlu0 %436
    %v438 = vsel %vm216, %v434, 0.0
    %439 = vadd.xlane.f32.xlu0 %v438
    %v440 = vpop.xlane.xlu0 %439
    %v441 = vrcp.pop %v437
    %v442 = vmul.f32 %v437, %v441
    %v443 = vsub.f32 1.0, %v442
    %v444 = vmul.f32 %v441, %v443
    %v445 = vadd.f32 %v441, %v444
    %vm446 = vweird.f32 %v437
    %vm447 = vweird.f32 %v441
    %vm448 = vmor %vm446, %vm447
    %v449 = vsel %vm448, %v441, %v445
    %v450 = vand.u32 2147483647, %v437
    %vm451 = vcmp.eq.f32.partialorder %v450, 8.507059e+37
    %v452 = vand.u32 %v437, 2147483648
    %v453 = vor.u32 1.1754944e-38, %v452
    %v454 = vsel %vm451, %v453, %v449
    %v455 = vrcp.pop %v440
    %v456 = vmul.f32 %v440, %v455
    %v457 = vsub.f32 1.0, %v456
    %v458 = vmul.f32 %v455, %v457
    %v459 = vadd.f32 %v455, %v458
    %vm460 = vweird.f32 %v440
    %vm461 = vweird.f32 %v455
    %vm462 = vmor %vm460, %vm461
    %v463 = vsel %vm462, %v455, %v459
    %v464 = vand.u32 2147483647, %v440
    %vm465 = vcmp.eq.f32.partialorder %v464, 8.507059e+37
    %v466 = vand.u32 %v440, 2147483648
    %v467 = vor.u32 1.1754944e-38, %v466
    %v468 = vsel %vm465, %v467, %v463
    %v469 = vmul.f32 %v432, %v454
    %v470 = vmul.f32 %v434, %v468
    %s471 = scalar_lea.vmem [#allocation12], 8
    %472 = vst.msk [vmem:[%s471] sm:$0xff] %vm216, %v469
    %s473 = scalar_lea.vmem [#allocation12], 40
    %474 = vst.msk [vmem:[%s473] sm:$0xff] %vm216, %v470
    %476 = vrot.lane.b32.xlu0 %v211, 120
    %v477 = vpop.permute.xlu0 %476
    %v480 = vsel %vm216, %v469, 0
    %482 = vmatpush.msra.mxu0 0.0
    %483 = vmatpush.msra.mxu0 0.0
    %484 = vmatpush.msra.mxu0 0.0
    %485 = vmatpush.msra.mxu0 0.0
    %486 = vmatpush.msra.mxu0 0.0
    %487 = vmatpush.msra.mxu0 0.0
    %488 = vmatpush.msra.mxu0 0.0
    %489 = vmatpush.msra.mxu0 0.0
    %490 = vmatpush.msra.mxu0 0.0
    %491 = vmatpush.msra.mxu0 0.0
    %492 = vmatpush.msra.mxu0 0.0
    %493 = vmatpush.msra.mxu0 0.0
    %494 = vmatpush.msra.mxu0 0.0
    %495 = vmatpush.msra.mxu0 0.0
    %496 = vmatpush.msra.mxu0 0.0
    %497 = vmatpush.msra.mxu0 %v477
    %498 = vmatmul.f32.gmra.mxu0 %v480
    %v499 = vpop.f32.mrf.mxu0
    %v500 = vadd.f32 0.0, %v499
    %501 = vdwg.mxu0
    %503 = vrot.lane.b32.xlu0 %v214, 120
    %v504 = vpop.permute.xlu0 %503
    %v507 = vsel %vm216, %v470, 0
    %509 = vmatpush.msra.mxu0 0.0
    %510 = vmatpush.msra.mxu0 0.0
    %511 = vmatpush.msra.mxu0 0.0
    %512 = vmatpush.msra.mxu0 0.0
    %513 = vmatpush.msra.mxu0 0.0
    %514 = vmatpush.msra.mxu0 0.0
    %515 = vmatpush.msra.mxu0 0.0
    %516 = vmatpush.msra.mxu0 0.0
    %517 = vmatpush.msra.mxu0 0.0
    %518 = vmatpush.msra.mxu0 0.0
    %519 = vmatpush.msra.mxu0 0.0
    %520 = vmatpush.msra.mxu0 0.0
    %521 = vmatpush.msra.mxu0 0.0
    %522 = vmatpush.msra.mxu0 0.0
    %523 = vmatpush.msra.mxu0 0.0
    %524 = vmatpush.msra.mxu0 %v504
    %525 = vmatmul.f32.gmra.mxu0 %v507
    %v526 = vpop.f32.mrf.mxu0
    %v527 = vadd.f32 0.0, %v526
    %528 = vdwg.mxu0
    %s529 = scalar_lea.vmem [#allocation10], 8
    %v530 = vld [vmem:[%s529] sm:$0xff]
    %v532 = vsel %vm216, %v500, 0
    %v535 = vsel %vm216, %v527, 0
    %537 = vmatpush.msra.mxu0 0.0
    %538 = vmatpush.msra.mxu0 0.0
    %539 = vmatpush.msra.mxu0 0.0
    %540 = vmatpush.msra.mxu0 0.0
    %541 = vmatpush.msra.mxu0 0.0
    %542 = vmatpush.msra.mxu0 0.0
    %543 = vmatpush.msra.mxu0 0.0
    %544 = vmatpush.msra.mxu0 0.0
    %545 = vmatpush.msra.mxu0 0.0
    %546 = vmatpush.msra.mxu0 0.0
    %547 = vmatpush.msra.mxu0 0.0
    %548 = vmatpush.msra.mxu0 0.0
    %549 = vmatpush.msra.mxu0 0.0
    %550 = vmatpush.msra.mxu0 0.0
    %551 = vmatpush.msra.mxu0 0.0
    %552 = vmatpush.msra.mxu0 %v530
    %553 = vmatmul.f32.gmra.mxu0 %v532
    %v554 = vpop.f32.mrf.mxu0
    %v555 = vadd.f32 0.0, %v554
    %556 = vmatmul.f32.gmra.mxu0 %v535
    %v557 = vpop.f32.mrf.mxu0
    %v558 = vadd.f32 0.0, %v557
    %559 = vdwg.mxu0
    %v561 = vsel %vm216, %v341, 0
    %v564 = vsel %vm216, %v364, 0
    %566 = vmatpush.msra.mxu0 0.0
    %567 = vmatpush.msra.mxu0 0.0
    %568 = vmatpush.msra.mxu0 0.0
    %569 = vmatpush.msra.mxu0 0.0
    %570 = vmatpush.msra.mxu0 0.0
    %571 = vmatpush.msra.mxu0 0.0
    %572 = vmatpush.msra.mxu0 0.0
    %573 = vmatpush.msra.mxu0 0.0
    %574 = vmatpush.msra.mxu0 0.0
    %575 = vmatpush.msra.mxu0 0.0
    %576 = vmatpush.msra.mxu0 0.0
    %577 = vmatpush.msra.mxu0 0.0
    %578 = vmatpush.msra.mxu0 0.0
    %579 = vmatpush.msra.mxu0 0.0
    %580 = vmatpush.msra.mxu0 0.0
    %581 = vmatpush.msra.mxu0 %v366
    %582 = vmatmul.f32.gmra.mxu0 %v561
    %v583 = vpop.f32.mrf.mxu0
    %v584 = vadd.f32 %v555, %v583
    %585 = vmatmul.f32.gmra.mxu0 %v564
    %v586 = vpop.f32.mrf.mxu0
    %v587 = vadd.f32 %v558, %v586
    %588 = vdwg.mxu0
    %589 = vrot.lane.b32.xlu0 %v149, 112
    %v590 = vpop.permute.xlu0 %589
    %591 = vrot.lane.b32.xlu0 %v180, 112
    %v592 = vpop.permute.xlu0 %591
    %v593 = vsel %vm216, %v590, 0
    %v595 = vsel %vm216, %v592, 0
    %597 = vmatpush.xpose.msra.mxu0 0.0
    %598 = vmatpush.xpose.msra.mxu0 0.0
    %599 = vmatpush.xpose.msra.mxu0 0.0
    %600 = vmatpush.xpose.msra.mxu0 0.0
    %601 = vmatpush.xpose.msra.mxu0 0.0
    %602 = vmatpush.xpose.msra.mxu0 0.0
    %603 = vmatpush.xpose.msra.mxu0 0.0
    %604 = vmatpush.xpose.msra.mxu0 0.0
    %605 = vmatpush.xpose.msra.mxu0 0.0
    %606 = vmatpush.xpose.msra.mxu0 0.0
    %607 = vmatpush.xpose.msra.mxu0 0.0
    %608 = vmatpush.xpose.msra.mxu0 0.0
    %609 = vmatpush.xpose.msra.mxu0 0.0
    %610 = vmatpush.xpose.msra.mxu0 0.0
    %611 = vmatpush.xpose.msra.mxu0 0.0
    %612 = vmatpush.xpose.msra.mxu0 %v595
    %613 = vmatmul.f32.gmra.mxu0 %v593
    %v614 = vpop.f32.mrf.mxu0
    %v615 = vadd.f32 0.0, %v614
    %616 = vdwg.mxu0
    %617 = vrot.lane.b32.xlu0 %v152, 112
    %v618 = vpop.permute.xlu0 %617
    %619 = vrot.lane.b32.xlu0 %v183, 112
    %v620 = vpop.permute.xlu0 %619
    %v621 = vsel %vm216, %v618, 0
    %v623 = vsel %vm216, %v620, 0
    %625 = vmatpush.xpose.msra.mxu0 0.0
    %626 = vmatpush.xpose.msra.mxu0 0.0
    %627 = vmatpush.xpose.msra.mxu0 0.0
    %628 = vmatpush.xpose.msra.mxu0 0.0
    %629 = vmatpush.xpose.msra.mxu0 0.0
    %630 = vmatpush.xpose.msra.mxu0 0.0
    %631 = vmatpush.xpose.msra.mxu0 0.0
    %632 = vmatpush.xpose.msra.mxu0 0.0
    %633 = vmatpush.xpose.msra.mxu0 0.0
    %634 = vmatpush.xpose.msra.mxu0 0.0
    %635 = vmatpush.xpose.msra.mxu0 0.0
    %636 = vmatpush.xpose.msra.mxu0 0.0
    %637 = vmatpush.xpose.msra.mxu0 0.0
    %638 = vmatpush.xpose.msra.mxu0 0.0
    %639 = vmatpush.xpose.msra.mxu0 0.0
    %640 = vmatpush.xpose.msra.mxu0 %v623
    %641 = vmatmul.f32.gmra.mxu0 %v621
    %v642 = vpop.f32.mrf.mxu0
    %v643 = vadd.f32 0.0, %v642
    %644 = vdwg.mxu0
    %v645 = vsel %vm216, %v615, -inf
    %646 = vmax.xlane.f32.xlu0 %v645
    %v647 = vpop.xlane.xlu0 %646
    %v648 = vsel %vm216, %v643, -inf
    %649 = vmax.xlane.f32.xlu0 %v648
    %v650 = vpop.xlane.xlu0 %649
    %v651 = vsub.f32 %v615, %v647
    %v652 = vsub.f32 %v643, %v650
    %v653 = vmul.f32 %v651, 1.442695
    %v654 = vpow.pop %v653
    %v655 = vmul.f32 %v652, 1.442695
    %v656 = vpow.pop %v655
    %v657 = vsel %vm216, %v654, 0.0
    %658 = vadd.xlane.f32.xlu0 %v657
    %v659 = vpop.xlane.xlu0 %658
    %v660 = vsel %vm216, %v656, 0.0
    %661 = vadd.xlane.f32.xlu0 %v660
    %v662 = vpop.xlane.xlu0 %661
    %v663 = vrcp.pop %v659
    %v664 = vmul.f32 %v659, %v663
    %v665 = vsub.f32 1.0, %v664
    %v666 = vmul.f32 %v663, %v665
    %v667 = vadd.f32 %v663, %v666
    %vm668 = vweird.f32 %v659
    %vm669 = vweird.f32 %v663
    %vm670 = vmor %vm668, %vm669
    %v671 = vsel %vm670, %v663, %v667
    %v672 = vand.u32 2147483647, %v659
    %vm673 = vcmp.eq.f32.partialorder %v672, 8.507059e+37
    %v674 = vand.u32 %v659, 2147483648
    %v675 = vor.u32 1.1754944e-38, %v674
    %v676 = vsel %vm673, %v675, %v671
    %v677 = vrcp.pop %v662
    %v678 = vmul.f32 %v662, %v677
    %v679 = vsub.f32 1.0, %v678
    %v680 = vmul.f32 %v677, %v679
    %v681 = vadd.f32 %v677, %v680
    %vm682 = vweird.f32 %v662
    %vm683 = vweird.f32 %v677
    %vm684 = vmor %vm682, %vm683
    %v685 = vsel %vm684, %v677, %v681
    %v686 = vand.u32 2147483647, %v662
    %vm687 = vcmp.eq.f32.partialorder %v686, 8.507059e+37
    %v688 = vand.u32 %v662, 2147483648
    %v689 = vor.u32 1.1754944e-38, %v688
    %v690 = vsel %vm687, %v689, %v685
    %v691 = vmul.f32 %v654, %v676
    %v692 = vmul.f32 %v656, %v690
    %s693 = scalar_lea.vmem [#allocation12], 16
    %694 = vst.msk [vmem:[%s693] sm:$0xff] %vm216, %v691
    %s695 = scalar_lea.vmem [#allocation12], 48
    %696 = vst.msk [vmem:[%s695] sm:$0xff] %vm216, %v692
    %697 = vrot.lane.b32.xlu0 %v211, 112
    %v698 = vpop.permute.xlu0 %697
    %v701 = vsel %vm216, %v691, 0
    %703 = vmatpush.msra.mxu0 0.0
    %704 = vmatpush.msra.mxu0 0.0
    %705 = vmatpush.msra.mxu0 0.0
    %706 = vmatpush.msra.mxu0 0.0
    %707 = vmatpush.msra.mxu0 0.0
    %708 = vmatpush.msra.mxu0 0.0
    %709 = vmatpush.msra.mxu0 0.0
    %710 = vmatpush.msra.mxu0 0.0
    %711 = vmatpush.msra.mxu0 0.0
    %712 = vmatpush.msra.mxu0 0.0
    %713 = vmatpush.msra.mxu0 0.0
    %714 = vmatpush.msra.mxu0 0.0
    %715 = vmatpush.msra.mxu0 0.0
    %716 = vmatpush.msra.mxu0 0.0
    %717 = vmatpush.msra.mxu0 0.0
    %718 = vmatpush.msra.mxu0 %v698
    %719 = vmatmul.f32.gmra.mxu0 %v701
    %v720 = vpop.f32.mrf.mxu0
    %v721 = vadd.f32 0.0, %v720
    %722 = vdwg.mxu0
    %723 = vrot.lane.b32.xlu0 %v214, 112
    %v724 = vpop.permute.xlu0 %723
    %v727 = vsel %vm216, %v692, 0
    %729 = vmatpush.msra.mxu0 0.0
    %730 = vmatpush.msra.mxu0 0.0
    %731 = vmatpush.msra.mxu0 0.0
    %732 = vmatpush.msra.mxu0 0.0
    %733 = vmatpush.msra.mxu0 0.0
    %734 = vmatpush.msra.mxu0 0.0
    %735 = vmatpush.msra.mxu0 0.0
    %736 = vmatpush.msra.mxu0 0.0
    %737 = vmatpush.msra.mxu0 0.0
    %738 = vmatpush.msra.mxu0 0.0
    %739 = vmatpush.msra.mxu0 0.0
    %740 = vmatpush.msra.mxu0 0.0
    %741 = vmatpush.msra.mxu0 0.0
    %742 = vmatpush.msra.mxu0 0.0
    %743 = vmatpush.msra.mxu0 0.0
    %744 = vmatpush.msra.mxu0 %v724
    %745 = vmatmul.f32.gmra.mxu0 %v727
    %v746 = vpop.f32.mrf.mxu0
    %v747 = vadd.f32 0.0, %v746
    %748 = vdwg.mxu0
    %s749 = scalar_lea.vmem [#allocation10], 16
    %v750 = vld [vmem:[%s749] sm:$0xff]
    %v752 = vsel %vm216, %v721, 0
    %v755 = vsel %vm216, %v747, 0
    %757 = vmatpush.msra.mxu0 0.0
    %758 = vmatpush.msra.mxu0 0.0
    %759 = vmatpush.msra.mxu0 0.0
    %760 = vmatpush.msra.mxu0 0.0
    %761 = vmatpush.msra.mxu0 0.0
    %762 = vmatpush.msra.mxu0 0.0
    %763 = vmatpush.msra.mxu0 0.0
    %764 = vmatpush.msra.mxu0 0.0
    %765 = vmatpush.msra.mxu0 0.0
    %766 = vmatpush.msra.mxu0 0.0
    %767 = vmatpush.msra.mxu0 0.0
    %768 = vmatpush.msra.mxu0 0.0
    %769 = vmatpush.msra.mxu0 0.0
    %770 = vmatpush.msra.mxu0 0.0
    %771 = vmatpush.msra.mxu0 0.0
    %772 = vmatpush.msra.mxu0 %v750
    %773 = vmatmul.f32.gmra.mxu0 %v752
    %v774 = vpop.f32.mrf.mxu0
    %v775 = vadd.f32 0.0, %v774
    %776 = vmatmul.f32.gmra.mxu0 %v755
    %v777 = vpop.f32.mrf.mxu0
    %v778 = vadd.f32 0.0, %v777
    %779 = vdwg.mxu0
    %v780 = vadd.f32 %v584, %v775
    %v781 = vadd.f32 %v587, %v778
    %782 = vrot.lane.b32.xlu0 %v149, 104
    %v783 = vpop.permute.xlu0 %782
    %784 = vrot.lane.b32.xlu0 %v180, 104
    %v785 = vpop.permute.xlu0 %784
    %v786 = vsel %vm216, %v783, 0
    %v788 = vsel %vm216, %v785, 0
    %790 = vmatpush.xpose.msra.mxu0 0.0
    %791 = vmatpush.xpose.msra.mxu0 0.0
    %792 = vmatpush.xpose.msra.mxu0 0.0
    %793 = vmatpush.xpose.msra.mxu0 0.0
    %794 = vmatpush.xpose.msra.mxu0 0.0
    %795 = vmatpush.xpose.msra.mxu0 0.0
    %796 = vmatpush.xpose.msra.mxu0 0.0
    %797 = vmatpush.xpose.msra.mxu0 0.0
    %798 = vmatpush.xpose.msra.mxu0 0.0
    %799 = vmatpush.xpose.msra.mxu0 0.0
    %800 = vmatpush.xpose.msra.mxu0 0.0
    %801 = vmatpush.xpose.msra.mxu0 0.0
    %802 = vmatpush.xpose.msra.mxu0 0.0
    %803 = vmatpush.xpose.msra.mxu0 0.0
    %804 = vmatpush.xpose.msra.mxu0 0.0
    %805 = vmatpush.xpose.msra.mxu0 %v788
    %806 = vmatmul.f32.gmra.mxu0 %v786
    %v807 = vpop.f32.mrf.mxu0
    %v808 = vadd.f32 0.0, %v807
    %809 = vdwg.mxu0
    %810 = vrot.lane.b32.xlu0 %v152, 104
    %v811 = vpop.permute.xlu0 %810
    %812 = vrot.lane.b32.xlu0 %v183, 104
    %v813 = vpop.permute.xlu0 %812
    %v814 = vsel %vm216, %v811, 0
    %v816 = vsel %vm216, %v813, 0
    %818 = vmatpush.xpose.msra.mxu0 0.0
    %819 = vmatpush.xpose.msra.mxu0 0.0
    %820 = vmatpush.xpose.msra.mxu0 0.0
    %821 = vmatpush.xpose.msra.mxu0 0.0
    %822 = vmatpush.xpose.msra.mxu0 0.0
    %823 = vmatpush.xpose.msra.mxu0 0.0
    %824 = vmatpush.xpose.msra.mxu0 0.0
    %825 = vmatpush.xpose.msra.mxu0 0.0
    %826 = vmatpush.xpose.msra.mxu0 0.0
    %827 = vmatpush.xpose.msra.mxu0 0.0
    %828 = vmatpush.xpose.msra.mxu0 0.0
    %829 = vmatpush.xpose.msra.mxu0 0.0
    %830 = vmatpush.xpose.msra.mxu0 0.0
    %831 = vmatpush.xpose.msra.mxu0 0.0
    %832 = vmatpush.xpose.msra.mxu0 0.0
    %833 = vmatpush.xpose.msra.mxu0 %v816
    %834 = vmatmul.f32.gmra.mxu0 %v814
    %v835 = vpop.f32.mrf.mxu0
    %v836 = vadd.f32 0.0, %v835
    %837 = vdwg.mxu0
    %v838 = vsel %vm216, %v808, -inf
    %839 = vmax.xlane.f32.xlu0 %v838
    %v840 = vpop.xlane.xlu0 %839
    %v841 = vsel %vm216, %v836, -inf
    %842 = vmax.xlane.f32.xlu0 %v841
    %v843 = vpop.xlane.xlu0 %842
    %v844 = vsub.f32 %v808, %v840
    %v845 = vsub.f32 %v836, %v843
    %v846 = vmul.f32 %v844, 1.442695
    %v847 = vpow.pop %v846
    %v848 = vmul.f32 %v845, 1.442695
    %v849 = vpow.pop %v848
    %v850 = vsel %vm216, %v847, 0.0
    %851 = vadd.xlane.f32.xlu0 %v850
    %v852 = vpop.xlane.xlu0 %851
    %v853 = vsel %vm216, %v849, 0.0
    %854 = vadd.xlane.f32.xlu0 %v853
    %v855 = vpop.xlane.xlu0 %854
    %v856 = vrcp.pop %v852
    %v857 = vmul.f32 %v852, %v856
    %v858 = vsub.f32 1.0, %v857
    %v859 = vmul.f32 %v856, %v858
    %v860 = vadd.f32 %v856, %v859
    %vm861 = vweird.f32 %v852
    %vm862 = vweird.f32 %v856
    %vm863 = vmor %vm861, %vm862
    %v864 = vsel %vm863, %v856, %v860
    %v865 = vand.u32 2147483647, %v852
    %vm866 = vcmp.eq.f32.partialorder %v865, 8.507059e+37
    %v867 = vand.u32 %v852, 2147483648
    %v868 = vor.u32 1.1754944e-38, %v867
    %v869 = vsel %vm866, %v868, %v864
    %v870 = vrcp.pop %v855
    %v871 = vmul.f32 %v855, %v870
    %v872 = vsub.f32 1.0, %v871
    %v873 = vmul.f32 %v870, %v872
    %v874 = vadd.f32 %v870, %v873
    %vm875 = vweird.f32 %v855
    %vm876 = vweird.f32 %v870
    %vm877 = vmor %vm875, %vm876
    %v878 = vsel %vm877, %v870, %v874
    %v879 = vand.u32 2147483647, %v855
    %vm880 = vcmp.eq.f32.partialorder %v879, 8.507059e+37
    %v881 = vand.u32 %v855, 2147483648
    %v882 = vor.u32 1.1754944e-38, %v881
    %v883 = vsel %vm880, %v882, %v878
    %v884 = vmul.f32 %v847, %v869
    %v885 = vmul.f32 %v849, %v883
    %s886 = scalar_lea.vmem [#allocation12], 24
    %887 = vst.msk [vmem:[%s886] sm:$0xff] %vm216, %v884
    %s888 = scalar_lea.vmem [#allocation12], 56
    %889 = vst.msk [vmem:[%s888] sm:$0xff] %vm216, %v885
    %890 = vrot.lane.b32.xlu0 %v211, 104
    %v891 = vpop.permute.xlu0 %890
    %v894 = vsel %vm216, %v884, 0
    %896 = vmatpush.msra.mxu0 0.0
    %897 = vmatpush.msra.mxu0 0.0
    %898 = vmatpush.msra.mxu0 0.0
    %899 = vmatpush.msra.mxu0 0.0
    %900 = vmatpush.msra.mxu0 0.0
    %901 = vmatpush.msra.mxu0 0.0
    %902 = vmatpush.msra.mxu0 0.0
    %903 = vmatpush.msra.mxu0 0.0
    %904 = vmatpush.msra.mxu0 0.0
    %905 = vmatpush.msra.mxu0 0.0
    %906 = vmatpush.msra.mxu0 0.0
    %907 = vmatpush.msra.mxu0 0.0
    %908 = vmatpush.msra.mxu0 0.0
    %909 = vmatpush.msra.mxu0 0.0
    %910 = vmatpush.msra.mxu0 0.0
    %911 = vmatpush.msra.mxu0 %v891
    %912 = vmatmul.f32.gmra.mxu0 %v894
    %v913 = vpop.f32.mrf.mxu0
    %v914 = vadd.f32 0.0, %v913
    %915 = vdwg.mxu0
    %916 = vrot.lane.b32.xlu0 %v214, 104
    %v917 = vpop.permute.xlu0 %916
    %v920 = vsel %vm216, %v885, 0
    %922 = vmatpush.msra.mxu0 0.0
    %923 = vmatpush.msra.mxu0 0.0
    %924 = vmatpush.msra.mxu0 0.0
    %925 = vmatpush.msra.mxu0 0.0
    %926 = vmatpush.msra.mxu0 0.0
    %927 = vmatpush.msra.mxu0 0.0
    %928 = vmatpush.msra.mxu0 0.0
    %929 = vmatpush.msra.mxu0 0.0
    %930 = vmatpush.msra.mxu0 0.0
    %931 = vmatpush.msra.mxu0 0.0
    %932 = vmatpush.msra.mxu0 0.0
    %933 = vmatpush.msra.mxu0 0.0
    %934 = vmatpush.msra.mxu0 0.0
    %935 = vmatpush.msra.mxu0 0.0
    %936 = vmatpush.msra.mxu0 0.0
    %937 = vmatpush.msra.mxu0 %v917
    %938 = vmatmul.f32.gmra.mxu0 %v920
    %v939 = vpop.f32.mrf.mxu0
    %v940 = vadd.f32 0.0, %v939
    %941 = vdwg.mxu0
    %s942 = scalar_lea.vmem [#allocation10], 24
    %v943 = vld [vmem:[%s942] sm:$0xff]
    %v945 = vsel %vm216, %v914, 0
    %v948 = vsel %vm216, %v940, 0
    %950 = vmatpush.msra.mxu0 0.0
    %951 = vmatpush.msra.mxu0 0.0
    %952 = vmatpush.msra.mxu0 0.0
    %953 = vmatpush.msra.mxu0 0.0
    %954 = vmatpush.msra.mxu0 0.0
    %955 = vmatpush.msra.mxu0 0.0
    %956 = vmatpush.msra.mxu0 0.0
    %957 = vmatpush.msra.mxu0 0.0
    %958 = vmatpush.msra.mxu0 0.0
    %959 = vmatpush.msra.mxu0 0.0
    %960 = vmatpush.msra.mxu0 0.0
    %961 = vmatpush.msra.mxu0 0.0
    %962 = vmatpush.msra.mxu0 0.0
    %963 = vmatpush.msra.mxu0 0.0
    %964 = vmatpush.msra.mxu0 0.0
    %965 = vmatpush.msra.mxu0 %v943
    %966 = vmatmul.f32.gmra.mxu0 %v945
    %v967 = vpop.f32.mrf.mxu0
    %v968 = vadd.f32 0.0, %v967
    %969 = vmatmul.f32.gmra.mxu0 %v948
    %v970 = vpop.f32.mrf.mxu0
    %v971 = vadd.f32 0.0, %v970
    %972 = vdwg.mxu0
    %v973 = vadd.f32 %v780, %v968
    %v974 = vadd.f32 %v781, %v971
    %v975 = vld [vmem:[%s8] sm:$0x1]
    %v977 = vperm.slane %v975, 0
    %v979 = vadd.f32 %v973, %v977
    %v980 = vadd.f32 %v974, %v977
    %981 = vst.msk [vmem:[#allocation11] sm:$0xff] %vm124, %v979
    %982 = vst.msk [vmem:[#allocation11 + $0x8] sm:$0xff] %vm124, %v980
    // Predicated region
    $region58: #{tpu_custom_call.1} parent=1 // pred_check
      _
    $region59: #{tpu_custom_call.1} parent=1 // pred_check_branch
      %984 = sbr.rel (0) target = $region61
    $region60: #{tpu_custom_call.1} parent=1 // pred_region
      %986 = vsyncadd [#allocation4], 0
      %s987 = sshll.u32 [#allocation11], 4
      %s988 = int_to_ptr.vmem [resolvable:$true] %s987
      %s989 = sshll.u32 %s9, 4
      %s990 = int_to_ptr.hbm [resolvable:$true] %s989
      %995 = dma.vmem_to_hbm [thread:$0]  %s988, 256, %s990, [#allocation4], 128, 128, 8
    $region61: #{tpu_custom_call.1} parent=1 // pred_fallthru
      _
    // Predicated region
    $region62: #{tpu_custom_call.1} parent=1 // pred_check
      _
    $region63: #{tpu_custom_call.1} parent=1 // pred_check_branch
      %997 = sbr.rel (0) target = $region65
    $region64: #{tpu_custom_call.1} parent=1 // pred_region
      %999 = vsyncadd [#allocation13], 0
      %s1000 = sshll.u32 [#allocation12], 4
      %s1001 = int_to_ptr.vmem [resolvable:$true] %s1000
      %s1002 = sshll.u32 %s10, 4
      %s1003 = int_to_ptr.hbm [resolvable:$true] %s1002
      %1008 = dma.vmem_to_hbm [thread:$0]  %s1001, 1024, %s1003, [#allocation13], 128, 128, 8
    $region65: #{tpu_custom_call.1} parent=1 // pred_fallthru
      _
    // Predicated region
    $region66: #{tpu_custom_call.1} parent=1 // pred_check
      _
    $region67: #{tpu_custom_call.1} parent=1 // pred_check_branch
      %1010 = sbr.rel (0) target = $region69
    $region68: #{tpu_custom_call.1} parent=1 // pred_region
      %1012 = dma.done [#allocation4], 256
    $region69: #{tpu_custom_call.1} parent=1 // pred_fallthru
      _
    // Predicated region
    $region70: #{tpu_custom_call.1} parent=1 // pred_check
      _
    $region71: #{tpu_custom_call.1} parent=1 // pred_check_branch
      %1014 = sbr.rel (0) target = $region73
    $region72: #{tpu_custom_call.1} parent=1 // pred_region
      %1016 = dma.done [#allocation13], 1024
    $region73: #{tpu_custom_call.1} parent=1 // pred_fallthru
      _
    %1017 = vsyncpa [#allocation3], 1
    %1018 = vsyncpa [#allocation6], 1
    %1019 = vsyncpa [#allocation9], 1
    %1020 = vsyncpa [#allocation4], 1
    %1021 = vsyncpa [#allocation13], 1

</llo_original>
